<compile_context>
chip_gen: v7x
topology: tpu7x:2x2x1
jax: 0.10.0
libtpu: 0.0.40
codegen_flags: <defaults>
</compile_context>

<pallas_src>
import functools

import jax
import jax.numpy as jnp
from jax import lax
from jax.experimental import pallas as pl
from jax.experimental.pallas import tpu as pltpu


def _mha_flash_kernel(xq_ref, xkv_ref, wq_ref, wk_ref, wv_ref, wproj_ref,
                      o_ref, q_sc, m_sc, l_sc, acc_sc, *, num_heads):
    # xq_ref:    (1, tq,  C)   query-side rows of x for this (b, i)
    # xkv_ref:   (1, tkv, C)   key/value-side rows of x for this kv step
    # wq/wk/wv:  (H, C, d)     per-head projection weights (scale folded into wq)
    # wproj_ref: (H, d, C)     per-head rows of the output projection
    # o_ref:     (1, tq, C)
    # scratch:   q_sc (H,tq,d) native dtype; m/l (H,tq,1) f32; acc (H,tq,d) f32
    kv = pl.program_id(2)
    last_kv = pl.num_programs(2) - 1
    cdtype = xq_ref.dtype  # native compute dtype fed to the MXU

    @pl.when(kv == 0)
    def _():
        xq = xq_ref[0]                                                # (tq, C)
        for h in range(num_heads):                                    # static unroll
            q_sc[h] = jnp.dot(xq, wq_ref[h],
                              preferred_element_type=jnp.float32).astype(cdtype)
        m_sc[...] = jnp.full_like(m_sc, -jnp.inf)
        l_sc[...] = jnp.zeros_like(l_sc)
        acc_sc[...] = jnp.zeros_like(acc_sc)

    xkv = xkv_ref[0]                                                  # (tkv, C)
    for h in range(num_heads):
        # k/v projection for this kv tile (native-dtype MXU inputs, f32 accum).
        k_h = jnp.dot(xkv, wk_ref[h],
                      preferred_element_type=jnp.float32).astype(cdtype)   # (tkv, d)
        v_h = jnp.dot(xkv, wv_ref[h],
                      preferred_element_type=jnp.float32).astype(cdtype)   # (tkv, d)
        q_h = q_sc[h]                                                      # (tq, d)

        # Scores: contract the last dim of both operands -> no explicit k transpose.
        s = lax.dot_general(q_h, k_h, (((1,), (1,)), ((), ())),
                            preferred_element_type=jnp.float32)            # (tq, tkv)

        # Online softmax update (f32).
        m_prev = m_sc[h]
        m_new = jnp.maximum(m_prev, jnp.max(s, axis=-1, keepdims=True))
        alpha = jnp.exp(m_prev - m_new)
        p = jnp.exp(s - m_new)
        l_sc[h] = alpha * l_sc[h] + jnp.sum(p, axis=-1, keepdims=True)
        acc_sc[h] = alpha * acc_sc[h] + jnp.dot(p.astype(cdtype), v_h,
                                                preferred_element_type=jnp.float32)
        m_sc[h] = m_new

    @pl.when(kv == last_kv)
    def _():
        tq, in_ch = o_ref.shape[1], o_ref.shape[2]
        out = jnp.zeros((tq, in_ch), jnp.float32)
        for h in range(num_heads):
            inv_l = pl.reciprocal(l_sc[h], approx=True)                # EUP, ~free
            head = (acc_sc[h] * inv_l).astype(cdtype)                  # (tq, d)
            # Per-head output projection accumulated -> no concatenate needed.
            out = out + jnp.dot(head, wproj_ref[h],
                                preferred_element_type=jnp.float32)    # (tq, C)
        o_ref[0] = out.astype(o_ref.dtype)
    # TODO(synk): attention mask / attn_bias / dropout not implemented (forward is
    # exercised with the eval-mode defaults: mask=None, attn_bias=None, p=0).


def _pick_tile(n):
    """Largest of (256, 128) dividing n, else whole axis (small / ragged N)."""
    for t in (256, 128):
        if n % t == 0:
            return t
    return n


def _padded_tile_bytes(shape, itemsize):
    """Conservative VMEM footprint: last dim -> 128 lanes, 2nd-last -> 8 sublanes."""
    s = list(shape)
    s[-1] = -(-s[-1] // 128) * 128
    if len(s) >= 2:
        s[-2] = -(-s[-2] // 8) * 8
    n = 1
    for v in s:
        n *= v
    return n * itemsize


def multi_head_attention(x, w_qkv_t, w_proj_t, *, num_heads):
    """x: (B, N, in_ch); w_qkv_t: (in_ch, 3*hid); w_proj_t: (hid, in_ch)."""
    b, n, in_ch = x.shape
    three_hid = w_qkv_t.shape[1]
    hid_ch = three_hid // 3
    assert three_hid == 3 * hid_ch
    assert hid_ch % num_heads == 0, "hid_ch must be divisible by num_heads"
    d = hid_ch // num_heads
    assert w_proj_t.shape == (hid_ch, in_ch)

    # Head-major weight layouts (leading head axis => no lane-crossing slices).
    # PyTorch column order of linear_qkv is (qkv, head, dim) => reshape is exact.
    w = w_qkv_t.reshape(in_ch, 3, num_heads, d).transpose(1, 2, 0, 3)  # (3, H, C, d)
    scale = d ** (-0.5)
    wq = (w[0] * scale).astype(w_qkv_t.dtype)   # fold 1/sqrt(d) into Wq (free)
    wk = w[1]
    wv = w[2]
    wp = w_proj_t.reshape(num_heads, d, in_ch)  # (H, d, C)

    tq = _pick_tile(n)
    tkv = _pick_tile(n)
    grid = (b, n // tq, n // tkv)

    # Size the scoped VMEM limit from the actual resident set (double-buffered
    # blocks + persistent scratch + per-head f32 score temporaries + margin).
    xb = x.dtype.itemsize
    wbytes = wq.dtype.itemsize
    blocks = (_padded_tile_bytes((1, tq, in_ch), xb)
              + _padded_tile_bytes((1, tkv, in_ch), xb)
              + 3 * _padded_tile_bytes((num_heads, in_ch, d), wbytes)
              + _padded_tile_bytes((num_heads, d, in_ch), wbytes)
              + _padded_tile_bytes((1, tq, in_ch), x.dtype.itemsize))
    scratch = (_padded_tile_bytes((num_heads, tq, d), xb)       # q_sc
               + _padded_tile_bytes((num_heads, tq, d), 4)      # acc
               + 2 * _padded_tile_bytes((num_heads, tq, 1), 4)) # m, l
    temps = 2 * num_heads * _padded_tile_bytes((tq, tkv), 4)
    vmem_limit = int(min(2 * blocks + scratch + temps + (8 << 20), 100 << 20))

    kernel = functools.partial(_mha_flash_kernel, num_heads=num_heads)

    return pl.pallas_call(
        kernel,
        out_shape=jax.ShapeDtypeStruct((b, n, in_ch), x.dtype),
        grid_spec=pltpu.PrefetchScalarGridSpec(
            num_scalar_prefetch=0,
            grid=grid,
            in_specs=[
                # x, query-side rows (constant across the kv axis -> no re-DMA).
                pl.BlockSpec((1, tq, in_ch), lambda bb, i, j: (bb, i, 0)),
                # x, key/value-side rows for the current kv tile.
                pl.BlockSpec((1, tkv, in_ch), lambda bb, i, j: (bb, j, 0)),
                # Weights: constant index_map -> fetched once and kept resident.
                pl.BlockSpec((num_heads, in_ch, d), lambda bb, i, j: (0, 0, 0)),
                pl.BlockSpec((num_heads, in_ch, d), lambda bb, i, j: (0, 0, 0)),
                pl.BlockSpec((num_heads, in_ch, d), lambda bb, i, j: (0, 0, 0)),
                pl.BlockSpec((num_heads, d, in_ch), lambda bb, i, j: (0, 0, 0)),
            ],
            out_specs=pl.BlockSpec((1, tq, in_ch), lambda bb, i, j: (bb, i, 0)),
            scratch_shapes=[
                pltpu.VMEM((num_heads, tq, d), x.dtype),       # q (scaled)
                pltpu.VMEM((num_heads, tq, 1), jnp.float32),   # running max
                pltpu.VMEM((num_heads, tq, 1), jnp.float32),   # running sum
                pltpu.VMEM((num_heads, tq, d), jnp.float32),   # un-normalized acc
            ],
        ),
        compiler_params=pltpu.CompilerParams(
            dimension_semantics=("parallel", "parallel", "arbitrary"),
            vmem_limit_bytes=vmem_limit,
        ),
    )(x, x, wq, wk, wv, wp)


def _reference(x, w_qkv_t, w_proj_t, num_heads):
    """Pure-JAX reference mirroring the PyTorch forward."""
    b, n, _ = x.shape
    hid_ch = w_qkv_t.shape[1] // 3
    d = hid_ch // num_heads
    qkv = jnp.einsum("bnc,ck->bnk", x, w_qkv_t)              # (B, N, 3*hid)
    qkv = qkv.reshape(b, n, 3, num_heads, d).transpose(2, 0, 3, 1, 4)
    q, k, v = qkv[0], qkv[1], qkv[2]                         # (B, H, N, d)
    attn = jnp.einsum("bhnd,bhmd->bhnm", q, k) * (d ** -0.5)
    a = jax.nn.softmax(attn, axis=-1)
    o = jnp.einsum("bhnm,bhmd->bhnd", a, v)                  # (B, H, N, d)
    o = o.transpose(0, 2, 1, 3).reshape(b, n, hid_ch)
    return jnp.einsum("bnh,hc->bnc", o, w_proj_t)


if __name__ == "__main__":
    # Small shapes consistent with the module's forward.
    batch, num, in_ch = 2, 8, 32
    hid_ch, num_heads = 32, 4

    key = jax.random.PRNGKey(0)
    kx, kqkv, kproj = jax.random.split(key, 3)

    x = jax.random.normal(kx, (batch, num, in_ch), dtype=jnp.float32)

    # PyTorch-Linear-like init U(-1/sqrt(fan_in), 1/sqrt(fan_in)), pre-transposed (in, out).
    lim_qkv = 1.0 / (in_ch ** 0.5)
    w_qkv_t = jax.random.uniform(
        kqkv, (in_ch, 3 * hid_ch), minval=-lim_qkv, maxval=lim_qkv, dtype=jnp.float32
    )
    lim_proj = 1.0 / (hid_ch ** 0.5)
    w_proj_t = jax.random.uniform(
        kproj, (hid_ch, in_ch), minval=-lim_proj, maxval=lim_proj, dtype=jnp.float32
    )

    out = multi_head_attention(x, w_qkv_t, w_proj_t, num_heads=num_heads)
    out = jax.block_until_ready(out)

    ref = _reference(x, w_qkv_t, w_proj_t, num_heads)
    assert out.shape == (batch, num, in_ch)
    # Tolerance slightly loosened for the approximate (EUP) reciprocal in the
    # final softmax normalization; real bugs produce O(0.1-1) errors.
    assert jnp.allclose(out, ref, atol=5e-3, rtol=5e-3), "mismatch vs reference"

    print("KERNEL_OK")
</pallas_src>

<mosaic_0001>
module attributes {stable_mosaic.version = 11 : i64} {
  func.func @_mha_flash_kernel(%arg0: i32, %arg1: i32, %arg2: i32, %arg3: memref<1x8x32xf32, #tpu.memory_space<vmem>>, %arg4: memref<1x8x32xf32, #tpu.memory_space<vmem>>, %arg5: memref<4x32x8xf32, #tpu.memory_space<vmem>>, %arg6: memref<4x32x8xf32, #tpu.memory_space<vmem>>, %arg7: memref<4x32x8xf32, #tpu.memory_space<vmem>>, %arg8: memref<4x8x32xf32, #tpu.memory_space<vmem>>, %arg9: memref<1x8x32xf32, #tpu.memory_space<vmem>>, %arg10: memref<4x8x8xf32, #tpu.memory_space<vmem>>, %arg11: memref<4x8x1xf32, #tpu.memory_space<vmem>>, %arg12: memref<4x8x1xf32, #tpu.memory_space<vmem>>, %arg13: memref<4x8x8xf32, #tpu.memory_space<vmem>>) attributes {dimension_semantics = [#tpu.dimension_semantics<parallel>, #tpu.dimension_semantics<parallel>, #tpu.dimension_semantics<arbitrary>], iteration_bounds = array<i64: 2, 1, 1>, scalar_prefetch = 0 : i64, scratch_operands = 4 : i64, tpu.core_type = #tpu.core_type<tc>, window_params = [{transform_indices = @transform_0, window_bounds = array<i64: 1, 8, 32>}, {transform_indices = @transform_1, window_bounds = array<i64: 1, 8, 32>}, {pipeline_mode = #tpu.pipeline_mode<synchronous>, transform_indices = @transform_2, window_bounds = array<i64: 4, 32, 8>}, {pipeline_mode = #tpu.pipeline_mode<synchronous>, transform_indices = @transform_3, window_bounds = array<i64: 4, 32, 8>}, {pipeline_mode = #tpu.pipeline_mode<synchronous>, transform_indices = @transform_4, window_bounds = array<i64: 4, 32, 8>}, {pipeline_mode = #tpu.pipeline_mode<synchronous>, transform_indices = @transform_5, window_bounds = array<i64: 4, 8, 32>}, {transform_indices = @transform_6, window_bounds = array<i64: 1, 8, 32>}]} {
    %c0_i32 = arith.constant 0 : i32
    %0 = arith.cmpi eq, %arg2, %c0_i32 : i32
    %1 = arith.extui %0 : i1 to i32
    %c0_i32_0 = arith.constant 0 : i32
    %2 = arith.cmpi ne, %1, %c0_i32_0 : i32
    scf.if %2 {
      %c0_133 = arith.constant 0 : index
      %c0_134 = arith.constant 0 : index
      %c0_135 = arith.constant 0 : index
      %168 = vector.load %arg3[%c0_133, %c0_134, %c0_135] : memref<1x8x32xf32, #tpu.memory_space<vmem>>, vector<1x8x32xf32>
      %169 = vector.shape_cast %168 : vector<1x8x32xf32> to vector<8x32xf32>
      %c0_136 = arith.constant 0 : index
      %c0_137 = arith.constant 0 : index
      %c0_138 = arith.constant 0 : index
      %170 = vector.load %arg5[%c0_136, %c0_137, %c0_138] : memref<4x32x8xf32, #tpu.memory_space<vmem>>, vector<1x32x8xf32>
      %171 = vector.shape_cast %170 : vector<1x32x8xf32> to vector<32x8xf32>
      %cst_139 = arith.constant dense<0.000000e+00> : vector<8x8xf32>
      %172 = tpu.matmul %169, %171, %cst_139 {dimension_numbers = #tpu.dot_dimension_numbers<[1], [0], [0], [1], [0, 0, 1, 1], [], []>} : vector<8x32xf32>, vector<32x8xf32>, vector<8x8xf32> -> vector<8x8xf32>
      %c0_140 = arith.constant 0 : index
      %c0_141 = arith.constant 0 : index
      %c0_142 = arith.constant 0 : index
      %173 = vector.load %arg10[%c0_140, %c0_141, %c0_142] : memref<4x8x8xf32, #tpu.memory_space<vmem>>, vector<1x8x8xf32>
      %174 = vector.shape_cast %173 : vector<1x8x8xf32> to vector<8x8xf32>
      %175 = vector.shape_cast %172 : vector<8x8xf32> to vector<1x8x8xf32>
      tpu.vector_store %arg10[%c0_140, %c0_141, %c0_142], %175 {strides = array<i32>} : memref<4x8x8xf32, #tpu.memory_space<vmem>>, vector<1x8x8xf32>,
      %c1_143 = arith.constant 1 : index
      %c0_144 = arith.constant 0 : index
      %c0_145 = arith.constant 0 : index
      %176 = vector.load %arg5[%c1_143, %c0_144, %c0_145] : memref<4x32x8xf32, #tpu.memory_space<vmem>>, vector<1x32x8xf32>
      %177 = vector.shape_cast %176 : vector<1x32x8xf32> to vector<32x8xf32>
      %cst_146 = arith.constant dense<0.000000e+00> : vector<8x8xf32>
      %178 = tpu.matmul %169, %177, %cst_146 {dimension_numbers = #tpu.dot_dimension_numbers<[1], [0], [0], [1], [0, 0, 1, 1], [], []>} : vector<8x32xf32>, vector<32x8xf32>, vector<8x8xf32> -> vector<8x8xf32>
      %c1_147 = arith.constant 1 : index
      %c0_148 = arith.constant 0 : index
      %c0_149 = arith.constant 0 : index
      %179 = vector.load %arg10[%c1_147, %c0_148, %c0_149] : memref<4x8x8xf32, #tpu.memory_space<vmem>>, vector<1x8x8xf32>
      %180 = vector.shape_cast %179 : vector<1x8x8xf32> to vector<8x8xf32>
      %181 = vector.shape_cast %178 : vector<8x8xf32> to vector<1x8x8xf32>
      tpu.vector_store %arg10[%c1_147, %c0_148, %c0_149], %181 {strides = array<i32>} : memref<4x8x8xf32, #tpu.memory_space<vmem>>, vector<1x8x8xf32>,
      %c2_150 = arith.constant 2 : index
      %c0_151 = arith.constant 0 : index
      %c0_152 = arith.constant 0 : index
      %182 = vector.load %arg5[%c2_150, %c0_151, %c0_152] : memref<4x32x8xf32, #tpu.memory_space<vmem>>, vector<1x32x8xf32>
      %183 = vector.shape_cast %182 : vector<1x32x8xf32> to vector<32x8xf32>
      %cst_153 = arith.constant dense<0.000000e+00> : vector<8x8xf32>
      %184 = tpu.matmul %169, %183, %cst_153 {dimension_numbers = #tpu.dot_dimension_numbers<[1], [0], [0], [1], [0, 0, 1, 1], [], []>} : vector<8x32xf32>, vector<32x8xf32>, vector<8x8xf32> -> vector<8x8xf32>
      %c2_154 = arith.constant 2 : index
      %c0_155 = arith.constant 0 : index
      %c0_156 = arith.constant 0 : index
      %185 = vector.load %arg10[%c2_154, %c0_155, %c0_156] : memref<4x8x8xf32, #tpu.memory_space<vmem>>, vector<1x8x8xf32>
      %186 = vector.shape_cast %185 : vector<1x8x8xf32> to vector<8x8xf32>
      %187 = vector.shape_cast %184 : vector<8x8xf32> to vector<1x8x8xf32>
      tpu.vector_store %arg10[%c2_154, %c0_155, %c0_156], %187 {strides = array<i32>} : memref<4x8x8xf32, #tpu.memory_space<vmem>>, vector<1x8x8xf32>,
      %c3_157 = arith.constant 3 : index
      %c0_158 = arith.constant 0 : index
      %c0_159 = arith.constant 0 : index
      %188 = vector.load %arg5[%c3_157, %c0_158, %c0_159] : memref<4x32x8xf32, #tpu.memory_space<vmem>>, vector<1x32x8xf32>
      %189 = vector.shape_cast %188 : vector<1x32x8xf32> to vector<32x8xf32>
      %cst_160 = arith.constant dense<0.000000e+00> : vector<8x8xf32>
      %190 = tpu.matmul %169, %189, %cst_160 {dimension_numbers = #tpu.dot_dimension_numbers<[1], [0], [0], [1], [0, 0, 1, 1], [], []>} : vector<8x32xf32>, vector<32x8xf32>, vector<8x8xf32> -> vector<8x8xf32>
      %c3_161 = arith.constant 3 : index
      %c0_162 = arith.constant 0 : index
      %c0_163 = arith.constant 0 : index
      %191 = vector.load %arg10[%c3_161, %c0_162, %c0_163] : memref<4x8x8xf32, #tpu.memory_space<vmem>>, vector<1x8x8xf32>
      %192 = vector.shape_cast %191 : vector<1x8x8xf32> to vector<8x8xf32>
      %193 = vector.shape_cast %190 : vector<8x8xf32> to vector<1x8x8xf32>
      tpu.vector_store %arg10[%c3_161, %c0_162, %c0_163], %193 {strides = array<i32>} : memref<4x8x8xf32, #tpu.memory_space<vmem>>, vector<1x8x8xf32>,
      %cst_164 = arith.constant 0xFF800000 : f32
      %194 = vector.broadcast %cst_164 : f32 to vector<4x8x1xf32>
      %c0_165 = arith.constant 0 : index
      %c0_166 = arith.constant 0 : index
      %c0_167 = arith.constant 0 : index
      %195 = vector.load %arg11[%c0_165, %c0_166, %c0_167] : memref<4x8x1xf32, #tpu.memory_space<vmem>>, vector<4x8x1xf32>
      tpu.vector_store %arg11[%c0_165, %c0_166, %c0_167], %194 {strides = array<i32>} : memref<4x8x1xf32, #tpu.memory_space<vmem>>, vector<4x8x1xf32>,
      %cst_168 = arith.constant 0.000000e+00 : f32
      %196 = vector.broadcast %cst_168 : f32 to vector<4x8x1xf32>
      %c0_169 = arith.constant 0 : index
      %c0_170 = arith.constant 0 : index
      %c0_171 = arith.constant 0 : index
      %197 = vector.load %arg12[%c0_169, %c0_170, %c0_171] : memref<4x8x1xf32, #tpu.memory_space<vmem>>, vector<4x8x1xf32>
      tpu.vector_store %arg12[%c0_169, %c0_170, %c0_171], %196 {strides = array<i32>} : memref<4x8x1xf32, #tpu.memory_space<vmem>>, vector<4x8x1xf32>,
      %cst_172 = arith.constant 0.000000e+00 : f32
      %198 = vector.broadcast %cst_172 : f32 to vector<4x8x8xf32>
      %c0_173 = arith.constant 0 : index
      %c0_174 = arith.constant 0 : index
      %c0_175 = arith.constant 0 : index
      %199 = vector.load %arg13[%c0_173, %c0_174, %c0_175] : memref<4x8x8xf32, #tpu.memory_space<vmem>>, vector<4x8x8xf32>
      tpu.vector_store %arg13[%c0_173, %c0_174, %c0_175], %198 {strides = array<i32>} : memref<4x8x8xf32, #tpu.memory_space<vmem>>, vector<4x8x8xf32>,
    } else {
    }
    %c0 = arith.constant 0 : index
    %c0_1 = arith.constant 0 : index
    %c0_2 = arith.constant 0 : index
    %3 = vector.load %arg4[%c0, %c0_1, %c0_2] : memref<1x8x32xf32, #tpu.memory_space<vmem>>, vector<1x8x32xf32>
    %4 = vector.shape_cast %3 : vector<1x8x32xf32> to vector<8x32xf32>
    %c0_3 = arith.constant 0 : index
    %c0_4 = arith.constant 0 : index
    %c0_5 = arith.constant 0 : index
    %5 = vector.load %arg6[%c0_3, %c0_4, %c0_5] : memref<4x32x8xf32, #tpu.memory_space<vmem>>, vector<1x32x8xf32>
    %6 = vector.shape_cast %5 : vector<1x32x8xf32> to vector<32x8xf32>
    %cst = arith.constant dense<0.000000e+00> : vector<8x8xf32>
    %7 = tpu.matmul %4, %6, %cst {dimension_numbers = #tpu.dot_dimension_numbers<[1], [0], [0], [1], [0, 0, 1, 1], [], []>} : vector<8x32xf32>, vector<32x8xf32>, vector<8x8xf32> -> vector<8x8xf32>
    %c0_6 = arith.constant 0 : index
    %c0_7 = arith.constant 0 : index
    %c0_8 = arith.constant 0 : index
    %8 = vector.load %arg7[%c0_6, %c0_7, %c0_8] : memref<4x32x8xf32, #tpu.memory_space<vmem>>, vector<1x32x8xf32>
    %9 = vector.shape_cast %8 : vector<1x32x8xf32> to vector<32x8xf32>
    %cst_9 = arith.constant dense<0.000000e+00> : vector<8x8xf32>
    %10 = tpu.matmul %4, %9, %cst_9 {dimension_numbers = #tpu.dot_dimension_numbers<[1], [0], [0], [1], [0, 0, 1, 1], [], []>} : vector<8x32xf32>, vector<32x8xf32>, vector<8x8xf32> -> vector<8x8xf32>
    %c0_10 = arith.constant 0 : index
    %c0_11 = arith.constant 0 : index
    %c0_12 = arith.constant 0 : index
    %11 = vector.load %arg10[%c0_10, %c0_11, %c0_12] : memref<4x8x8xf32, #tpu.memory_space<vmem>>, vector<1x8x8xf32>
    %12 = vector.shape_cast %11 : vector<1x8x8xf32> to vector<8x8xf32>
    %cst_13 = arith.constant dense<0.000000e+00> : vector<8x8xf32>
    %13 = tpu.matmul %12, %7, %cst_13 {dimension_numbers = #tpu.dot_dimension_numbers<[1], [1], [0], [0], [0, 0, 1, 0], [], []>} : vector<8x8xf32>, vector<8x8xf32>, vector<8x8xf32> -> vector<8x8xf32>
    %c0_14 = arith.constant 0 : index
    %c0_15 = arith.constant 0 : index
    %c0_16 = arith.constant 0 : index
    %14 = vector.load %arg11[%c0_14, %c0_15, %c0_16] : memref<4x8x1xf32, #tpu.memory_space<vmem>>, vector<1x8x1xf32>
    %15 = vector.shape_cast %14 : vector<1x8x1xf32> to vector<8x1xf32>
    %cst_17 = arith.constant dense<0xFF800000> : vector<8xf32>
    %16 = vector.multi_reduction <maximumf>, %13, %cst_17 [1] : vector<8x8xf32> to vector<8xf32>
    %17 = vector.shape_cast %16 : vector<8xf32> to vector<8x1xf32>
    %18 = arith.maximumf %15, %17 : vector<8x1xf32>
    %19 = arith.subf %15, %18 : vector<8x1xf32>
    %20 = math.exp %19 : vector<8x1xf32>
    %21 = vector.broadcast %18 : vector<8x1xf32> to vector<8x8xf32>
    %22 = arith.subf %13, %21 : vector<8x8xf32>
    %23 = math.exp %22 : vector<8x8xf32>
    %c0_18 = arith.constant 0 : index
    %c0_19 = arith.constant 0 : index
    %c0_20 = arith.constant 0 : index
    %24 = vector.load %arg12[%c0_18, %c0_19, %c0_20] : memref<4x8x1xf32, #tpu.memory_space<vmem>>, vector<1x8x1xf32>
    %25 = vector.shape_cast %24 : vector<1x8x1xf32> to vector<8x1xf32>
    %26 = arith.mulf %20, %25 : vector<8x1xf32>
    %cst_21 = arith.constant dense<0.000000e+00> : vector<8xf32>
    %27 = vector.multi_reduction <add>, %23, %cst_21 [1] : vector<8x8xf32> to vector<8xf32>
    %28 = vector.shape_cast %27 : vector<8xf32> to vector<8x1xf32>
    %29 = arith.addf %26, %28 : vector<8x1xf32>
    %c0_22 = arith.constant 0 : index
    %c0_23 = arith.constant 0 : index
    %c0_24 = arith.constant 0 : index
    %30 = vector.load %arg12[%c0_22, %c0_23, %c0_24] : memref<4x8x1xf32, #tpu.memory_space<vmem>>, vector<1x8x1xf32>
    %31 = vector.shape_cast %30 : vector<1x8x1xf32> to vector<8x1xf32>
    %32 = vector.shape_cast %29 : vector<8x1xf32> to vector<1x8x1xf32>
    tpu.vector_store %arg12[%c0_22, %c0_23, %c0_24], %32 {strides = array<i32>} : memref<4x8x1xf32, #tpu.memory_space<vmem>>, vector<1x8x1xf32>,
    %c0_25 = arith.constant 0 : index
    %c0_26 = arith.constant 0 : index
    %c0_27 = arith.constant 0 : index
    %33 = vector.load %arg13[%c0_25, %c0_26, %c0_27] : memref<4x8x8xf32, #tpu.memory_space<vmem>>, vector<1x8x8xf32>
    %34 = vector.shape_cast %33 : vector<1x8x8xf32> to vector<8x8xf32>
    %35 = vector.broadcast %20 : vector<8x1xf32> to vector<8x8xf32>
    %36 = arith.mulf %35, %34 : vector<8x8xf32>
    %cst_28 = arith.constant dense<0.000000e+00> : vector<8x8xf32>
    %37 = tpu.matmul %23, %10, %cst_28 {dimension_numbers = #tpu.dot_dimension_numbers<[1], [0], [0], [1], [0, 0, 1, 1], [], []>} : vector<8x8xf32>, vector<8x8xf32>, vector<8x8xf32> -> vector<8x8xf32>
    %38 = arith.addf %36, %37 : vector<8x8xf32>
    %c0_29 = arith.constant 0 : index
    %c0_30 = arith.constant 0 : index
    %c0_31 = arith.constant 0 : index
    %39 = vector.load %arg13[%c0_29, %c0_30, %c0_31] : memref<4x8x8xf32, #tpu.memory_space<vmem>>, vector<1x8x8xf32>
    %40 = vector.shape_cast %39 : vector<1x8x8xf32> to vector<8x8xf32>
    %41 = vector.shape_cast %38 : vector<8x8xf32> to vector<1x8x8xf32>
    tpu.vector_store %arg13[%c0_29, %c0_30, %c0_31], %41 {strides = array<i32>} : memref<4x8x8xf32, #tpu.memory_space<vmem>>, vector<1x8x8xf32>,
    %c0_32 = arith.constant 0 : index
    %c0_33 = arith.constant 0 : index
    %c0_34 = arith.constant 0 : index
    %42 = vector.load %arg11[%c0_32, %c0_33, %c0_34] : memref<4x8x1xf32, #tpu.memory_space<vmem>>, vector<1x8x1xf32>
    %43 = vector.shape_cast %42 : vector<1x8x1xf32> to vector<8x1xf32>
    %44 = vector.shape_cast %18 : vector<8x1xf32> to vector<1x8x1xf32>
    tpu.vector_store %arg11[%c0_32, %c0_33, %c0_34], %44 {strides = array<i32>} : memref<4x8x1xf32, #tpu.memory_space<vmem>>, vector<1x8x1xf32>,
    %c1 = arith.constant 1 : index
    %c0_35 = arith.constant 0 : index
    %c0_36 = arith.constant 0 : index
    %45 = vector.load %arg6[%c1, %c0_35, %c0_36] : memref<4x32x8xf32, #tpu.memory_space<vmem>>, vector<1x32x8xf32>
    %46 = vector.shape_cast %45 : vector<1x32x8xf32> to vector<32x8xf32>
    %cst_37 = arith.constant dense<0.000000e+00> : vector<8x8xf32>
    %47 = tpu.matmul %4, %46, %cst_37 {dimension_numbers = #tpu.dot_dimension_numbers<[1], [0], [0], [1], [0, 0, 1, 1], [], []>} : vector<8x32xf32>, vector<32x8xf32>, vector<8x8xf32> -> vector<8x8xf32>
    %c1_38 = arith.constant 1 : index
    %c0_39 = arith.constant 0 : index
    %c0_40 = arith.constant 0 : index
    %48 = vector.load %arg7[%c1_38, %c0_39, %c0_40] : memref<4x32x8xf32, #tpu.memory_space<vmem>>, vector<1x32x8xf32>
    %49 = vector.shape_cast %48 : vector<1x32x8xf32> to vector<32x8xf32>
    %cst_41 = arith.constant dense<0.000000e+00> : vector<8x8xf32>
    %50 = tpu.matmul %4, %49, %cst_41 {dimension_numbers = #tpu.dot_dimension_numbers<[1], [0], [0], [1], [0, 0, 1, 1], [], []>} : vector<8x32xf32>, vector<32x8xf32>, vector<8x8xf32> -> vector<8x8xf32>
    %c1_42 = arith.constant 1 : index
    %c0_43 = arith.constant 0 : index
    %c0_44 = arith.constant 0 : index
    %51 = vector.load %arg10[%c1_42, %c0_43, %c0_44] : memref<4x8x8xf32, #tpu.memory_space<vmem>>, vector<1x8x8xf32>
    %52 = vector.shape_cast %51 : vector<1x8x8xf32> to vector<8x8xf32>
    %cst_45 = arith.constant dense<0.000000e+00> : vector<8x8xf32>
    %53 = tpu.matmul %52, %47, %cst_45 {dimension_numbers = #tpu.dot_dimension_numbers<[1], [1], [0], [0], [0, 0, 1, 0], [], []>} : vector<8x8xf32>, vector<8x8xf32>, vector<8x8xf32> -> vector<8x8xf32>
    %c1_46 = arith.constant 1 : index
    %c0_47 = arith.constant 0 : index
    %c0_48 = arith.constant 0 : index
    %54 = vector.load %arg11[%c1_46, %c0_47, %c0_48] : memref<4x8x1xf32, #tpu.memory_space<vmem>>, vector<1x8x1xf32>
    %55 = vector.shape_cast %54 : vector<1x8x1xf32> to vector<8x1xf32>
    %cst_49 = arith.constant dense<0xFF800000> : vector<8xf32>
    %56 = vector.multi_reduction <maximumf>, %53, %cst_49 [1] : vector<8x8xf32> to vector<8xf32>
    %57 = vector.shape_cast %56 : vector<8xf32> to vector<8x1xf32>
    %58 = arith.maximumf %55, %57 : vector<8x1xf32>
    %59 = arith.subf %55, %58 : vector<8x1xf32>
    %60 = math.exp %59 : vector<8x1xf32>
    %61 = vector.broadcast %58 : vector<8x1xf32> to vector<8x8xf32>
    %62 = arith.subf %53, %61 : vector<8x8xf32>
    %63 = math.exp %62 : vector<8x8xf32>
    %c1_50 = arith.constant 1 : index
    %c0_51 = arith.constant 0 : index
    %c0_52 = arith.constant 0 : index
    %64 = vector.load %arg12[%c1_50, %c0_51, %c0_52] : memref<4x8x1xf32, #tpu.memory_space<vmem>>, vector<1x8x1xf32>
    %65 = vector.shape_cast %64 : vector<1x8x1xf32> to vector<8x1xf32>
    %66 = arith.mulf %60, %65 : vector<8x1xf32>
    %cst_53 = arith.constant dense<0.000000e+00> : vector<8xf32>
    %67 = vector.multi_reduction <add>, %63, %cst_53 [1] : vector<8x8xf32> to vector<8xf32>
    %68 = vector.shape_cast %67 : vector<8xf32> to vector<8x1xf32>
    %69 = arith.addf %66, %68 : vector<8x1xf32>
    %c1_54 = arith.constant 1 : index
    %c0_55 = arith.constant 0 : index
    %c0_56 = arith.constant 0 : index
    %70 = vector.load %arg12[%c1_54, %c0_55, %c0_56] : memref<4x8x1xf32, #tpu.memory_space<vmem>>, vector<1x8x1xf32>
    %71 = vector.shape_cast %70 : vector<1x8x1xf32> to vector<8x1xf32>
    %72 = vector.shape_cast %69 : vector<8x1xf32> to vector<1x8x1xf32>
    tpu.vector_store %arg12[%c1_54, %c0_55, %c0_56], %72 {strides = array<i32>} : memref<4x8x1xf32, #tpu.memory_space<vmem>>, vector<1x8x1xf32>,
    %c1_57 = arith.constant 1 : index
    %c0_58 = arith.constant 0 : index
    %c0_59 = arith.constant 0 : index
    %73 = vector.load %arg13[%c1_57, %c0_58, %c0_59] : memref<4x8x8xf32, #tpu.memory_space<vmem>>, vector<1x8x8xf32>
    %74 = vector.shape_cast %73 : vector<1x8x8xf32> to vector<8x8xf32>
    %75 = vector.broadcast %60 : vector<8x1xf32> to vector<8x8xf32>
    %76 = arith.mulf %75, %74 : vector<8x8xf32>
    %cst_60 = arith.constant dense<0.000000e+00> : vector<8x8xf32>
    %77 = tpu.matmul %63, %50, %cst_60 {dimension_numbers = #tpu.dot_dimension_numbers<[1], [0], [0], [1], [0, 0, 1, 1], [], []>} : vector<8x8xf32>, vector<8x8xf32>, vector<8x8xf32> -> vector<8x8xf32>
    %78 = arith.addf %76, %77 : vector<8x8xf32>
    %c1_61 = arith.constant 1 : index
    %c0_62 = arith.constant 0 : index
    %c0_63 = arith.constant 0 : index
    %79 = vector.load %arg13[%c1_61, %c0_62, %c0_63] : memref<4x8x8xf32, #tpu.memory_space<vmem>>, vector<1x8x8xf32>
    %80 = vector.shape_cast %79 : vector<1x8x8xf32> to vector<8x8xf32>
    %81 = vector.shape_cast %78 : vector<8x8xf32> to vector<1x8x8xf32>
    tpu.vector_store %arg13[%c1_61, %c0_62, %c0_63], %81 {strides = array<i32>} : memref<4x8x8xf32, #tpu.memory_space<vmem>>, vector<1x8x8xf32>,
    %c1_64 = arith.constant 1 : index
    %c0_65 = arith.constant 0 : index
    %c0_66 = arith.constant 0 : index
    %82 = vector.load %arg11[%c1_64, %c0_65, %c0_66] : memref<4x8x1xf32, #tpu.memory_space<vmem>>, vector<1x8x1xf32>
    %83 = vector.shape_cast %82 : vector<1x8x1xf32> to vector<8x1xf32>
    %84 = vector.shape_cast %58 : vector<8x1xf32> to vector<1x8x1xf32>
    tpu.vector_store %arg11[%c1_64, %c0_65, %c0_66], %84 {strides = array<i32>} : memref<4x8x1xf32, #tpu.memory_space<vmem>>, vector<1x8x1xf32>,
    %c2 = arith.constant 2 : index
    %c0_67 = arith.constant 0 : index
    %c0_68 = arith.constant 0 : index
    %85 = vector.load %arg6[%c2, %c0_67, %c0_68] : memref<4x32x8xf32, #tpu.memory_space<vmem>>, vector<1x32x8xf32>
    %86 = vector.shape_cast %85 : vector<1x32x8xf32> to vector<32x8xf32>
    %cst_69 = arith.constant dense<0.000000e+00> : vector<8x8xf32>
    %87 = tpu.matmul %4, %86, %cst_69 {dimension_numbers = #tpu.dot_dimension_numbers<[1], [0], [0], [1], [0, 0, 1, 1], [], []>} : vector<8x32xf32>, vector<32x8xf32>, vector<8x8xf32> -> vector<8x8xf32>
    %c2_70 = arith.constant 2 : index
    %c0_71 = arith.constant 0 : index
    %c0_72 = arith.constant 0 : index
    %88 = vector.load %arg7[%c2_70, %c0_71, %c0_72] : memref<4x32x8xf32, #tpu.memory_space<vmem>>, vector<1x32x8xf32>
    %89 = vector.shape_cast %88 : vector<1x32x8xf32> to vector<32x8xf32>
    %cst_73 = arith.constant dense<0.000000e+00> : vector<8x8xf32>
    %90 = tpu.matmul %4, %89, %cst_73 {dimension_numbers = #tpu.dot_dimension_numbers<[1], [0], [0], [1], [0, 0, 1, 1], [], []>} : vector<8x32xf32>, vector<32x8xf32>, vector<8x8xf32> -> vector<8x8xf32>
    %c2_74 = arith.constant 2 : index
    %c0_75 = arith.constant 0 : index
    %c0_76 = arith.constant 0 : index
    %91 = vector.load %arg10[%c2_74, %c0_75, %c0_76] : memref<4x8x8xf32, #tpu.memory_space<vmem>>, vector<1x8x8xf32>
    %92 = vector.shape_cast %91 : vector<1x8x8xf32> to vector<8x8xf32>
    %cst_77 = arith.constant dense<0.000000e+00> : vector<8x8xf32>
    %93 = tpu.matmul %92, %87, %cst_77 {dimension_numbers = #tpu.dot_dimension_numbers<[1], [1], [0], [0], [0, 0, 1, 0], [], []>} : vector<8x8xf32>, vector<8x8xf32>, vector<8x8xf32> -> vector<8x8xf32>
    %c2_78 = arith.constant 2 : index
    %c0_79 = arith.constant 0 : index
    %c0_80 = arith.constant 0 : index
    %94 = vector.load %arg11[%c2_78, %c0_79, %c0_80] : memref<4x8x1xf32, #tpu.memory_space<vmem>>, vector<1x8x1xf32>
    %95 = vector.shape_cast %94 : vector<1x8x1xf32> to vector<8x1xf32>
    %cst_81 = arith.constant dense<0xFF800000> : vector<8xf32>
    %96 = vector.multi_reduction <maximumf>, %93, %cst_81 [1] : vector<8x8xf32> to vector<8xf32>
    %97 = vector.shape_cast %96 : vector<8xf32> to vector<8x1xf32>
    %98 = arith.maximumf %95, %97 : vector<8x1xf32>
    %99 = arith.subf %95, %98 : vector<8x1xf32>
    %100 = math.exp %99 : vector<8x1xf32>
    %101 = vector.broadcast %98 : vector<8x1xf32> to vector<8x8xf32>
    %102 = arith.subf %93, %101 : vector<8x8xf32>
    %103 = math.exp %102 : vector<8x8xf32>
    %c2_82 = arith.constant 2 : index
    %c0_83 = arith.constant 0 : index
    %c0_84 = arith.constant 0 : index
    %104 = vector.load %arg12[%c2_82, %c0_83, %c0_84] : memref<4x8x1xf32, #tpu.memory_space<vmem>>, vector<1x8x1xf32>
    %105 = vector.shape_cast %104 : vector<1x8x1xf32> to vector<8x1xf32>
    %106 = arith.mulf %100, %105 : vector<8x1xf32>
    %cst_85 = arith.constant dense<0.000000e+00> : vector<8xf32>
    %107 = vector.multi_reduction <add>, %103, %cst_85 [1] : vector<8x8xf32> to vector<8xf32>
    %108 = vector.shape_cast %107 : vector<8xf32> to vector<8x1xf32>
    %109 = arith.addf %106, %108 : vector<8x1xf32>
    %c2_86 = arith.constant 2 : index
    %c0_87 = arith.constant 0 : index
    %c0_88 = arith.constant 0 : index
    %110 = vector.load %arg12[%c2_86, %c0_87, %c0_88] : memref<4x8x1xf32, #tpu.memory_space<vmem>>, vector<1x8x1xf32>
    %111 = vector.shape_cast %110 : vector<1x8x1xf32> to vector<8x1xf32>
    %112 = vector.shape_cast %109 : vector<8x1xf32> to vector<1x8x1xf32>
    tpu.vector_store %arg12[%c2_86, %c0_87, %c0_88], %112 {strides = array<i32>} : memref<4x8x1xf32, #tpu.memory_space<vmem>>, vector<1x8x1xf32>,
    %c2_89 = arith.constant 2 : index
    %c0_90 = arith.constant 0 : index
    %c0_91 = arith.constant 0 : index
    %113 = vector.load %arg13[%c2_89, %c0_90, %c0_91] : memref<4x8x8xf32, #tpu.memory_space<vmem>>, vector<1x8x8xf32>
    %114 = vector.shape_cast %113 : vector<1x8x8xf32> to vector<8x8xf32>
    %115 = vector.broadcast %100 : vector<8x1xf32> to vector<8x8xf32>
    %116 = arith.mulf %115, %114 : vector<8x8xf32>
    %cst_92 = arith.constant dense<0.000000e+00> : vector<8x8xf32>
    %117 = tpu.matmul %103, %90, %cst_92 {dimension_numbers = #tpu.dot_dimension_numbers<[1], [0], [0], [1], [0, 0, 1, 1], [], []>} : vector<8x8xf32>, vector<8x8xf32>, vector<8x8xf32> -> vector<8x8xf32>
    %118 = arith.addf %116, %117 : vector<8x8xf32>
    %c2_93 = arith.constant 2 : index
    %c0_94 = arith.constant 0 : index
    %c0_95 = arith.constant 0 : index
    %119 = vector.load %arg13[%c2_93, %c0_94, %c0_95] : memref<4x8x8xf32, #tpu.memory_space<vmem>>, vector<1x8x8xf32>
    %120 = vector.shape_cast %119 : vector<1x8x8xf32> to vector<8x8xf32>
    %121 = vector.shape_cast %118 : vector<8x8xf32> to vector<1x8x8xf32>
    tpu.vector_store %arg13[%c2_93, %c0_94, %c0_95], %121 {strides = array<i32>} : memref<4x8x8xf32, #tpu.memory_space<vmem>>, vector<1x8x8xf32>,
    %c2_96 = arith.constant 2 : index
    %c0_97 = arith.constant 0 : index
    %c0_98 = arith.constant 0 : index
    %122 = vector.load %arg11[%c2_96, %c0_97, %c0_98] : memref<4x8x1xf32, #tpu.memory_space<vmem>>, vector<1x8x1xf32>
    %123 = vector.shape_cast %122 : vector<1x8x1xf32> to vector<8x1xf32>
    %124 = vector.shape_cast %98 : vector<8x1xf32> to vector<1x8x1xf32>
    tpu.vector_store %arg11[%c2_96, %c0_97, %c0_98], %124 {strides = array<i32>} : memref<4x8x1xf32, #tpu.memory_space<vmem>>, vector<1x8x1xf32>,
    %c3 = arith.constant 3 : index
    %c0_99 = arith.constant 0 : index
    %c0_100 = arith.constant 0 : index
    %125 = vector.load %arg6[%c3, %c0_99, %c0_100] : memref<4x32x8xf32, #tpu.memory_space<vmem>>, vector<1x32x8xf32>
    %126 = vector.shape_cast %125 : vector<1x32x8xf32> to vector<32x8xf32>
    %cst_101 = arith.constant dense<0.000000e+00> : vector<8x8xf32>
    %127 = tpu.matmul %4, %126, %cst_101 {dimension_numbers = #tpu.dot_dimension_numbers<[1], [0], [0], [1], [0, 0, 1, 1], [], []>} : vector<8x32xf32>, vector<32x8xf32>, vector<8x8xf32> -> vector<8x8xf32>
    %c3_102 = arith.constant 3 : index
    %c0_103 = arith.constant 0 : index
    %c0_104 = arith.constant 0 : index
    %128 = vector.load %arg7[%c3_102, %c0_103, %c0_104] : memref<4x32x8xf32, #tpu.memory_space<vmem>>, vector<1x32x8xf32>
    %129 = vector.shape_cast %128 : vector<1x32x8xf32> to vector<32x8xf32>
    %cst_105 = arith.constant dense<0.000000e+00> : vector<8x8xf32>
    %130 = tpu.matmul %4, %129, %cst_105 {dimension_numbers = #tpu.dot_dimension_numbers<[1], [0], [0], [1], [0, 0, 1, 1], [], []>} : vector<8x32xf32>, vector<32x8xf32>, vector<8x8xf32> -> vector<8x8xf32>
    %c3_106 = arith.constant 3 : index
    %c0_107 = arith.constant 0 : index
    %c0_108 = arith.constant 0 : index
    %131 = vector.load %arg10[%c3_106, %c0_107, %c0_108] : memref<4x8x8xf32, #tpu.memory_space<vmem>>, vector<1x8x8xf32>
    %132 = vector.shape_cast %131 : vector<1x8x8xf32> to vector<8x8xf32>
    %cst_109 = arith.constant dense<0.000000e+00> : vector<8x8xf32>
    %133 = tpu.matmul %132, %127, %cst_109 {dimension_numbers = #tpu.dot_dimension_numbers<[1], [1], [0], [0], [0, 0, 1, 0], [], []>} : vector<8x8xf32>, vector<8x8xf32>, vector<8x8xf32> -> vector<8x8xf32>
    %c3_110 = arith.constant 3 : index
    %c0_111 = arith.constant 0 : index
    %c0_112 = arith.constant 0 : index
    %134 = vector.load %arg11[%c3_110, %c0_111, %c0_112] : memref<4x8x1xf32, #tpu.memory_space<vmem>>, vector<1x8x1xf32>
    %135 = vector.shape_cast %134 : vector<1x8x1xf32> to vector<8x1xf32>
    %cst_113 = arith.constant dense<0xFF800000> : vector<8xf32>
    %136 = vector.multi_reduction <maximumf>, %133, %cst_113 [1] : vector<8x8xf32> to vector<8xf32>
    %137 = vector.shape_cast %136 : vector<8xf32> to vector<8x1xf32>
    %138 = arith.maximumf %135, %137 : vector<8x1xf32>
    %139 = arith.subf %135, %138 : vector<8x1xf32>
    %140 = math.exp %139 : vector<8x1xf32>
    %141 = vector.broadcast %138 : vector<8x1xf32> to vector<8x8xf32>
    %142 = arith.subf %133, %141 : vector<8x8xf32>
    %143 = math.exp %142 : vector<8x8xf32>
    %c3_114 = arith.constant 3 : index
    %c0_115 = arith.constant 0 : index
    %c0_116 = arith.constant 0 : index
    %144 = vector.load %arg12[%c3_114, %c0_115, %c0_116] : memref<4x8x1xf32, #tpu.memory_space<vmem>>, vector<1x8x1xf32>
    %145 = vector.shape_cast %144 : vector<1x8x1xf32> to vector<8x1xf32>
    %146 = arith.mulf %140, %145 : vector<8x1xf32>
    %cst_117 = arith.constant dense<0.000000e+00> : vector<8xf32>
    %147 = vector.multi_reduction <add>, %143, %cst_117 [1] : vector<8x8xf32> to vector<8xf32>
    %148 = vector.shape_cast %147 : vector<8xf32> to vector<8x1xf32>
    %149 = arith.addf %146, %148 : vector<8x1xf32>
    %c3_118 = arith.constant 3 : index
    %c0_119 = arith.constant 0 : index
    %c0_120 = arith.constant 0 : index
    %150 = vector.load %arg12[%c3_118, %c0_119, %c0_120] : memref<4x8x1xf32, #tpu.memory_space<vmem>>, vector<1x8x1xf32>
    %151 = vector.shape_cast %150 : vector<1x8x1xf32> to vector<8x1xf32>
    %152 = vector.shape_cast %149 : vector<8x1xf32> to vector<1x8x1xf32>
    tpu.vector_store %arg12[%c3_118, %c0_119, %c0_120], %152 {strides = array<i32>} : memref<4x8x1xf32, #tpu.memory_space<vmem>>, vector<1x8x1xf32>,
    %c3_121 = arith.constant 3 : index
    %c0_122 = arith.constant 0 : index
    %c0_123 = arith.constant 0 : index
    %153 = vector.load %arg13[%c3_121, %c0_122, %c0_123] : memref<4x8x8xf32, #tpu.memory_space<vmem>>, vector<1x8x8xf32>
    %154 = vector.shape_cast %153 : vector<1x8x8xf32> to vector<8x8xf32>
    %155 = vector.broadcast %140 : vector<8x1xf32> to vector<8x8xf32>
    %156 = arith.mulf %155, %154 : vector<8x8xf32>
    %cst_124 = arith.constant dense<0.000000e+00> : vector<8x8xf32>
    %157 = tpu.matmul %143, %130, %cst_124 {dimension_numbers = #tpu.dot_dimension_numbers<[1], [0], [0], [1], [0, 0, 1, 1], [], []>} : vector<8x8xf32>, vector<8x8xf32>, vector<8x8xf32> -> vector<8x8xf32>
    %158 = arith.addf %156, %157 : vector<8x8xf32>
    %c3_125 = arith.constant 3 : index
    %c0_126 = arith.constant 0 : index
    %c0_127 = arith.constant 0 : index
    %159 = vector.load %arg13[%c3_125, %c0_126, %c0_127] : memref<4x8x8xf32, #tpu.memory_space<vmem>>, vector<1x8x8xf32>
    %160 = vector.shape_cast %159 : vector<1x8x8xf32> to vector<8x8xf32>
    %161 = vector.shape_cast %158 : vector<8x8xf32> to vector<1x8x8xf32>
    tpu.vector_store %arg13[%c3_125, %c0_126, %c0_127], %161 {strides = array<i32>} : memref<4x8x8xf32, #tpu.memory_space<vmem>>, vector<1x8x8xf32>,
    %c3_128 = arith.constant 3 : index
    %c0_129 = arith.constant 0 : index
    %c0_130 = arith.constant 0 : index
    %162 = vector.load %arg11[%c3_128, %c0_129, %c0_130] : memref<4x8x1xf32, #tpu.memory_space<vmem>>, vector<1x8x1xf32>
    %163 = vector.shape_cast %162 : vector<1x8x1xf32> to vector<8x1xf32>
    %164 = vector.shape_cast %138 : vector<8x1xf32> to vector<1x8x1xf32>
    tpu.vector_store %arg11[%c3_128, %c0_129, %c0_130], %164 {strides = array<i32>} : memref<4x8x1xf32, #tpu.memory_space<vmem>>, vector<1x8x1xf32>,
    %c0_i32_131 = arith.constant 0 : i32
    %165 = arith.cmpi eq, %arg2, %c0_i32_131 : i32
    %166 = arith.extui %165 : i1 to i32
    %c0_i32_132 = arith.constant 0 : i32
    %167 = arith.cmpi ne, %166, %c0_i32_132 : i32
    scf.if %167 {
      %cst_133 = arith.constant 0.000000e+00 : f32
      %168 = vector.broadcast %cst_133 : f32 to vector<8x32xf32>
      %c0_134 = arith.constant 0 : index
      %c0_135 = arith.constant 0 : index
      %c0_136 = arith.constant 0 : index
      %169 = vector.load %arg12[%c0_134, %c0_135, %c0_136] : memref<4x8x1xf32, #tpu.memory_space<vmem>>, vector<1x8x1xf32>
      %170 = vector.shape_cast %169 : vector<1x8x1xf32> to vector<8x1xf32>
      %171 = tpu.reciprocal %170 {approx = true} : vector<8x1xf32> -> vector<8x1xf32>
      %c0_137 = arith.constant 0 : index
      %c0_138 = arith.constant 0 : index
      %c0_139 = arith.constant 0 : index
      %172 = vector.load %arg13[%c0_137, %c0_138, %c0_139] : memref<4x8x8xf32, #tpu.memory_space<vmem>>, vector<1x8x8xf32>
      %173 = vector.shape_cast %172 : vector<1x8x8xf32> to vector<8x8xf32>
      %174 = vector.broadcast %171 : vector<8x1xf32> to vector<8x8xf32>
      %175 = arith.mulf %173, %174 : vector<8x8xf32>
      %c0_140 = arith.constant 0 : index
      %c0_141 = arith.constant 0 : index
      %c0_142 = arith.constant 0 : index
      %176 = vector.load %arg8[%c0_140, %c0_141, %c0_142] : memref<4x8x32xf32, #tpu.memory_space<vmem>>, vector<1x8x32xf32>
      %177 = vector.shape_cast %176 : vector<1x8x32xf32> to vector<8x32xf32>
      %cst_143 = arith.constant dense<0.000000e+00> : vector<8x32xf32>
      %178 = tpu.matmul %175, %177, %cst_143 {dimension_numbers = #tpu.dot_dimension_numbers<[1], [0], [0], [1], [0, 0, 1, 1], [], []>} : vector<8x8xf32>, vector<8x32xf32>, vector<8x32xf32> -> vector<8x32xf32>
      %179 = arith.addf %168, %178 : vector<8x32xf32>
      %c1_144 = arith.constant 1 : index
      %c0_145 = arith.constant 0 : index
      %c0_146 = arith.constant 0 : index
      %180 = vector.load %arg12[%c1_144, %c0_145, %c0_146] : memref<4x8x1xf32, #tpu.memory_space<vmem>>, vector<1x8x1xf32>
      %181 = vector.shape_cast %180 : vector<1x8x1xf32> to vector<8x1xf32>
      %182 = tpu.reciprocal %181 {approx = true} : vector<8x1xf32> -> vector<8x1xf32>
      %c1_147 = arith.constant 1 : index
      %c0_148 = arith.constant 0 : index
      %c0_149 = arith.constant 0 : index
      %183 = vector.load %arg13[%c1_147, %c0_148, %c0_149] : memref<4x8x8xf32, #tpu.memory_space<vmem>>, vector<1x8x8xf32>
      %184 = vector.shape_cast %183 : vector<1x8x8xf32> to vector<8x8xf32>
      %185 = vector.broadcast %182 : vector<8x1xf32> to vector<8x8xf32>
      %186 = arith.mulf %184, %185 : vector<8x8xf32>
      %c1_150 = arith.constant 1 : index
      %c0_151 = arith.constant 0 : index
      %c0_152 = arith.constant 0 : index
      %187 = vector.load %arg8[%c1_150, %c0_151, %c0_152] : memref<4x8x32xf32, #tpu.memory_space<vmem>>, vector<1x8x32xf32>
      %188 = vector.shape_cast %187 : vector<1x8x32xf32> to vector<8x32xf32>
      %cst_153 = arith.constant dense<0.000000e+00> : vector<8x32xf32>
      %189 = tpu.matmul %186, %188, %cst_153 {dimension_numbers = #tpu.dot_dimension_numbers<[1], [0], [0], [1], [0, 0, 1, 1], [], []>} : vector<8x8xf32>, vector<8x32xf32>, vector<8x32xf32> -> vector<8x32xf32>
      %190 = arith.addf %179, %189 : vector<8x32xf32>
      %c2_154 = arith.constant 2 : index
      %c0_155 = arith.constant 0 : index
      %c0_156 = arith.constant 0 : index
      %191 = vector.load %arg12[%c2_154, %c0_155, %c0_156] : memref<4x8x1xf32, #tpu.memory_space<vmem>>, vector<1x8x1xf32>
      %192 = vector.shape_cast %191 : vector<1x8x1xf32> to vector<8x1xf32>
      %193 = tpu.reciprocal %192 {approx = true} : vector<8x1xf32> -> vector<8x1xf32>
      %c2_157 = arith.constant 2 : index
      %c0_158 = arith.constant 0 : index
      %c0_159 = arith.constant 0 : index
      %194 = vector.load %arg13[%c2_157, %c0_158, %c0_159] : memref<4x8x8xf32, #tpu.memory_space<vmem>>, vector<1x8x8xf32>
      %195 = vector.shape_cast %194 : vector<1x8x8xf32> to vector<8x8xf32>
      %196 = vector.broadcast %193 : vector<8x1xf32> to vector<8x8xf32>
      %197 = arith.mulf %195, %196 : vector<8x8xf32>
      %c2_160 = arith.constant 2 : index
      %c0_161 = arith.constant 0 : index
      %c0_162 = arith.constant 0 : index
      %198 = vector.load %arg8[%c2_160, %c0_161, %c0_162] : memref<4x8x32xf32, #tpu.memory_space<vmem>>, vector<1x8x32xf32>
      %199 = vector.shape_cast %198 : vector<1x8x32xf32> to vector<8x32xf32>
      %cst_163 = arith.constant dense<0.000000e+00> : vector<8x32xf32>
      %200 = tpu.matmul %197, %199, %cst_163 {dimension_numbers = #tpu.dot_dimension_numbers<[1], [0], [0], [1], [0, 0, 1, 1], [], []>} : vector<8x8xf32>, vector<8x32xf32>, vector<8x32xf32> -> vector<8x32xf32>
      %201 = arith.addf %190, %200 : vector<8x32xf32>
      %c3_164 = arith.constant 3 : index
      %c0_165 = arith.constant 0 : index
      %c0_166 = arith.constant 0 : index
      %202 = vector.load %arg12[%c3_164, %c0_165, %c0_166] : memref<4x8x1xf32, #tpu.memory_space<vmem>>, vector<1x8x1xf32>
      %203 = vector.shape_cast %202 : vector<1x8x1xf32> to vector<8x1xf32>
      %204 = tpu.reciprocal %203 {approx = true} : vector<8x1xf32> -> vector<8x1xf32>
      %c3_167 = arith.constant 3 : index
      %c0_168 = arith.constant 0 : index
      %c0_169 = arith.constant 0 : index
      %205 = vector.load %arg13[%c3_167, %c0_168, %c0_169] : memref<4x8x8xf32, #tpu.memory_space<vmem>>, vector<1x8x8xf32>
      %206 = vector.shape_cast %205 : vector<1x8x8xf32> to vector<8x8xf32>
      %207 = vector.broadcast %204 : vector<8x1xf32> to vector<8x8xf32>
      %208 = arith.mulf %206, %207 : vector<8x8xf32>
      %c3_170 = arith.constant 3 : index
      %c0_171 = arith.constant 0 : index
      %c0_172 = arith.constant 0 : index
      %209 = vector.load %arg8[%c3_170, %c0_171, %c0_172] : memref<4x8x32xf32, #tpu.memory_space<vmem>>, vector<1x8x32xf32>
      %210 = vector.shape_cast %209 : vector<1x8x32xf32> to vector<8x32xf32>
      %cst_173 = arith.constant dense<0.000000e+00> : vector<8x32xf32>
      %211 = tpu.matmul %208, %210, %cst_173 {dimension_numbers = #tpu.dot_dimension_numbers<[1], [0], [0], [1], [0, 0, 1, 1], [], []>} : vector<8x8xf32>, vector<8x32xf32>, vector<8x32xf32> -> vector<8x32xf32>
      %212 = arith.addf %201, %211 : vector<8x32xf32>
      %c0_174 = arith.constant 0 : index
      %c0_175 = arith.constant 0 : index
      %c0_176 = arith.constant 0 : index
      %213 = vector.load %arg9[%c0_174, %c0_175, %c0_176] : memref<1x8x32xf32, #tpu.memory_space<vmem>>, vector<1x8x32xf32>
      %214 = vector.shape_cast %213 : vector<1x8x32xf32> to vector<8x32xf32>
      %215 = vector.shape_cast %212 : vector<8x32xf32> to vector<1x8x32xf32>
      tpu.vector_store %arg9[%c0_174, %c0_175, %c0_176], %215 {strides = array<i32>} : memref<1x8x32xf32, #tpu.memory_space<vmem>>, vector<1x8x32xf32>,
    } else {
    }
    return
  }
  func.func @transform_0(%arg0: i32, %arg1: i32, %arg2: i32) -> (i32, i32, i32) {
    %c0_i32 = arith.constant 0 : i32
    %c0_i32_0 = arith.constant 0 : i32
    return %arg0, %arg1, %c0_i32 : i32, i32, i32
  }
  func.func @transform_1(%arg0: i32, %arg1: i32, %arg2: i32) -> (i32, i32, i32) {
    %c0_i32 = arith.constant 0 : i32
    %c0_i32_0 = arith.constant 0 : i32
    return %arg0, %arg2, %c0_i32 : i32, i32, i32
  }
  func.func @transform_2(%arg0: i32, %arg1: i32, %arg2: i32) -> (i32, i32, i32) {
    %c0_i32 = arith.constant 0 : i32
    %c0_i32_0 = arith.constant 0 : i32
    %c0_i32_1 = arith.constant 0 : i32
    %c0_i32_2 = arith.constant 0 : i32
    return %c0_i32, %c0_i32_0, %c0_i32_1 : i32, i32, i32
  }
  func.func @transform_3(%arg0: i32, %arg1: i32, %arg2: i32) -> (i32, i32, i32) {
    %c0_i32 = arith.constant 0 : i32
    %c0_i32_0 = arith.constant 0 : i32
    %c0_i32_1 = arith.constant 0 : i32
    %c0_i32_2 = arith.constant 0 : i32
    return %c0_i32, %c0_i32_0, %c0_i32_1 : i32, i32, i32
  }
  func.func @transform_4(%arg0: i32, %arg1: i32, %arg2: i32) -> (i32, i32, i32) {
    %c0_i32 = arith.constant 0 : i32
    %c0_i32_0 = arith.constant 0 : i32
    %c0_i32_1 = arith.constant 0 : i32
    %c0_i32_2 = arith.constant 0 : i32
    return %c0_i32, %c0_i32_0, %c0_i32_1 : i32, i32, i32
  }
  func.func @transform_5(%arg0: i32, %arg1: i32, %arg2: i32) -> (i32, i32, i32) {
    %c0_i32 = arith.constant 0 : i32
    %c0_i32_0 = arith.constant 0 : i32
    %c0_i32_1 = arith.constant 0 : i32
    %c0_i32_2 = arith.constant 0 : i32
    return %c0_i32, %c0_i32_0, %c0_i32_1 : i32, i32, i32
  }
  func.func @transform_6(%arg0: i32, %arg1: i32, %arg2: i32) -> (i32, i32, i32) {
    %c0_i32 = arith.constant 0 : i32
    %c0_i32_0 = arith.constant 0 : i32
    return %arg0, %arg1, %c0_i32 : i32, i32, i32
  }
}

</mosaic_0001>

<llo_original>
// kernel: tpu_custom_call.1
$region0: #{tpu_custom_call.1}
  #allocation0 [shape = 'u32[]', space=smem, size = 0x4, offset = 0x4, fixed_abs, tag = 'smem constant byte address 0x4 - core index']
  #allocation1 [shape = 'u32[144,128]{1,0:T(1,128)}', space=vmem, size = 0x12000, scoped, tag = 'internal scratch']
  #allocation2 [shape = 'f32[4,8,8]{2,1,0:T(8,128)}', space=vmem, size = 0x4000, scoped, tag = 'scratch operand']
  #allocation3 [shape = 'f32[4,8,1]{2,1,0:T(8,128)}', space=vmem, size = 0x4000, scoped, tag = 'scratch operand']
  #allocation4 [shape = 'f32[4,8,1]{2,1,0:T(8,128)}', space=vmem, size = 0x4000, scoped, tag = 'scratch operand']
  #allocation5 [shape = 'f32[4,8,8]{2,1,0:T(8,128)}', space=vmem, size = 0x4000, scoped, tag = 'scratch operand']
  %s0 = inlined_call_operand.vmem [shape: f32[2,8,32], index: 0, kind: input, shape index: {}]
  %s1 = inlined_call_operand.vmem [shape: f32[2,8,32], index: 1, kind: input, shape index: {}]
  %s2 = inlined_call_operand.vmem [shape: f32[4,32,8], index: 2, kind: input, shape index: {}]
  %s3 = inlined_call_operand.vmem [shape: f32[4,32,8], index: 3, kind: input, shape index: {}]
  %s4 = inlined_call_operand.vmem [shape: f32[4,32,8], index: 4, kind: input, shape index: {}]
  %s5 = inlined_call_operand.vmem [shape: f32[4,8,32], index: 5, kind: input, shape index: {}]
  %s6 = inlined_call_operand.hbm [shape: f32[2,8,32], index: 6, kind: output, shape index: {}]
  %s7 = sld [smem:[#allocation0]]
  $region65: #{tpu_custom_call.1} parent=0
    _
  %s9 = ssub.s32 1, %s7
  %s10 = scalar_select 0, %s9, %s7
  $region1: #{tpu_custom_call.1} parent=0
    #allocation6 [shape = 'u8[8192]{0}', space=vmem, size = 0x2000, scoped, tag = 'output window, operand 0']
    #allocation7 [shape = 's32[2]{0}', space=sflag, size = 0x8, scoped, tag = 'scoped memory for tpu_custom_call.1']
    %11 = vsyncpa [#allocation7], 0
    %s12 = scalar_lea.sflag [#allocation7], 1
    %13 = vsyncpa %s12, 0
    loop: start=0, step=1, limit=4
    $region2: #{tpu_custom_call.1} parent=1 // loop_pre_header
      _
    $region3: #{tpu_custom_call.1} parent=1 // loop_header
      %s15 = sphi 0, %s19
      %p16 = scmp.ge.s32.totalorder %s15, 4
      %s22 = sphi 0, %s41
      %s23 = sphi 0, %s37
      %s24 = sphi 0, %s33
      %s25 = sphi 0, %s22
      %s26 = sphi 0, %s23
      %s27 = sphi 0, %s24
      %s28 = sphi 0, %s25
      %s29 = sphi 0, %s26
      %s30 = sphi 0, %s27
      %s46 = sphi 0, %s48
      %s49 = sphi 0, %s46
      %s50 = sphi 0, %s49
      %s66 = sphi 0, %s50
      %s74 = sphi 0, %s76
      %s77 = sphi 0, %s74
      %s78 = sphi 0, %s77
      %s94 = sphi 0, %s78
      %s98 = sphi 0, %s98
      %s100 = sphi 0, %s98
      %s101 = sphi 0, %s100
      %s115 = sphi 0, %s101
      %s119 = sphi 0, %s119
      %s121 = sphi 0, %s119
      %s122 = sphi 0, %s121
      %s136 = sphi 0, %s122
      %s140 = sphi 0, %s140
      %s142 = sphi 0, %s140
      %s143 = sphi 0, %s142
      %s157 = sphi 0, %s143
      %s161 = sphi 0, %s161
      %s163 = sphi 0, %s161
      %s164 = sphi 0, %s163
      %s178 = sphi 0, %s164
      %s186 = sphi 0, %s188
      %s189 = sphi 0, %s186
      %s190 = sphi 0, %s189
      %s206 = sphi 0, %s190
    $region4: #{tpu_custom_call.1} parent=1 // loop_header_branch
      %18 = sbr.rel (%p16) target = $region8
    $region5: #{tpu_custom_call.1} parent=1 // loop_body
      %s20 = ssub.s32 %s15, 1
      %s21 = ssub.s32 %s15, 2
      %s31 = sadd.s32 1, %s24
      %p32 = scmp.ge.s32.totalorder %s31, 1
      %s33 = scalar_select %p32, 0, %s31
      %s34 = sadd.s32 1, %s23
      %s35 = scalar_select %p32, %s34, %s23
      %p36 = scmp.ge.s32.totalorder %s35, 1
      %s37 = scalar_select %p36, 0, %s35
      %s38 = sadd.s32 1, %s22
      %s39 = scalar_select %p36, %s38, %s22
      %p40 = scmp.ge.s32.totalorder %s39, 2
      %s41 = scalar_select %p40, 0, %s39
      %s42 = ssub.s32 %s22, %s41
      %s43 = ssub.s32 %s23, %s37
      %s44 = sor.u32 %s42, %s43
      %p45 = scmp.eq.s32.totalorder %s44, 0
      %s47 = sadd.s32 %s46, 1
      %s48 = scalar_select %p45, %s46, %s47
      %p51 = pneg %p45
      %p52 = scmp.eq.s32.totalorder %s15, 1
      %p53 = por %p51, %p52
      %p54 = scmp.ne.s32.totalorder %s46, %s49
      %p55 = scmp.eq.s32.totalorder %s15, 0
      %p56 = por %p54, %p55
      %p57 = scmp.ne.s32.totalorder %s46, %s49
      %p58 = scmp.eq.s32.totalorder %s20, 1
      %p59 = por %p57, %p58
      %p60 = scmp.ne.s32.totalorder %s49, %s50
      %p61 = scmp.eq.s32.totalorder %s20, 0
      %p62 = por %p60, %p61
      %p63 = scmp.ne.s32.totalorder %s49, %s50
      %p64 = scmp.eq.s32.totalorder %s21, 1
      %p65 = por %p63, %p64
      %p67 = scmp.ne.s32.totalorder %s50, %s66
      %p68 = scmp.eq.s32.totalorder %s21, 0
      %p69 = por %p67, %p68
      %s70 = ssub.s32 %s22, %s41
      %s71 = ssub.s32 %s24, %s33
      %s72 = sor.u32 %s70, %s71
      %p73 = scmp.eq.s32.totalorder %s72, 0
      %s75 = sadd.s32 %s74, 1
      %s76 = scalar_select %p73, %s74, %s75
      %p79 = pneg %p73
      %p80 = scmp.eq.s32.totalorder %s15, 1
      %p81 = por %p79, %p80
      %p82 = scmp.ne.s32.totalorder %s74, %s77
      %p83 = scmp.eq.s32.totalorder %s15, 0
      %p84 = por %p82, %p83
      %p85 = scmp.ne.s32.totalorder %s74, %s77
      %p86 = scmp.eq.s32.totalorder %s20, 1
      %p87 = por %p85, %p86
      %p88 = scmp.ne.s32.totalorder %s77, %s78
      %p89 = scmp.eq.s32.totalorder %s20, 0
      %p90 = por %p88, %p89
      %p91 = scmp.ne.s32.totalorder %s77, %s78
      %p92 = scmp.eq.s32.totalorder %s21, 1
      %p93 = por %p91, %p92
      %p95 = scmp.ne.s32.totalorder %s78, %s94
      %p96 = scmp.eq.s32.totalorder %s21, 0
      %p97 = por %p95, %p96
      %s99 = sadd.s32 %s98, 1
      %p102 = scmp.eq.s32.totalorder %s15, 1
      %p103 = scmp.ne.s32.totalorder %s98, %s100
      %p104 = scmp.eq.s32.totalorder %s15, 0
      %p105 = por %p103, %p104
      %p106 = scmp.ne.s32.totalorder %s98, %s100
      %p107 = scmp.eq.s32.totalorder %s20, 1
      %p108 = por %p106, %p107
      %p109 = scmp.ne.s32.totalorder %s100, %s101
      %p110 = scmp.eq.s32.totalorder %s20, 0
      %p111 = por %p109, %p110
      %p112 = scmp.ne.s32.totalorder %s100, %s101
      %p113 = scmp.eq.s32.totalorder %s21, 1
      %p114 = por %p112, %p113
      %p116 = scmp.ne.s32.totalorder %s101, %s115
      %p117 = scmp.eq.s32.totalorder %s21, 0
      %p118 = por %p116, %p117
      %s120 = sadd.s32 %s119, 1
      %p123 = scmp.eq.s32.totalorder %s15, 1
      %p124 = scmp.ne.s32.totalorder %s119, %s121
      %p125 = scmp.eq.s32.totalorder %s15, 0
      %p126 = por %p124, %p125
      %p127 = scmp.ne.s32.totalorder %s119, %s121
      %p128 = scmp.eq.s32.totalorder %s20, 1
      %p129 = por %p127, %p128
      %p130 = scmp.ne.s32.totalorder %s121, %s122
      %p131 = scmp.eq.s32.totalorder %s20, 0
      %p132 = por %p130, %p131
      %p133 = scmp.ne.s32.totalorder %s121, %s122
      %p134 = scmp.eq.s32.totalorder %s21, 1
      %p135 = por %p133, %p134
      %p137 = scmp.ne.s32.totalorder %s122, %s136
      %p138 = scmp.eq.s32.totalorder %s21, 0
      %p139 = por %p137, %p138
      %s141 = sadd.s32 %s140, 1
      %p144 = scmp.eq.s32.totalorder %s15, 1
      %p145 = scmp.ne.s32.totalorder %s140, %s142
      %p146 = scmp.eq.s32.totalorder %s15, 0
      %p147 = por %p145, %p146
      %p148 = scmp.ne.s32.totalorder %s140, %s142
      %p149 = scmp.eq.s32.totalorder %s20, 1
      %p150 = por %p148, %p149
      %p151 = scmp.ne.s32.totalorder %s142, %s143
      %p152 = scmp.eq.s32.totalorder %s20, 0
      %p153 = por %p151, %p152
      %p154 = scmp.ne.s32.totalorder %s142, %s143
      %p155 = scmp.eq.s32.totalorder %s21, 1
      %p156 = por %p154, %p155
      %p158 = scmp.ne.s32.totalorder %s143, %s157
      %p159 = scmp.eq.s32.totalorder %s21, 0
      %p160 = por %p158, %p159
      %s162 = sadd.s32 %s161, 1
      %p165 = scmp.eq.s32.totalorder %s15, 1
      %p166 = scmp.ne.s32.totalorder %s161, %s163
      %p167 = scmp.eq.s32.totalorder %s15, 0
      %p168 = por %p166, %p167
      %p169 = scmp.ne.s32.totalorder %s161, %s163
      %p170 = scmp.eq.s32.totalorder %s20, 1
      %p171 = por %p169, %p170
      %p172 = scmp.ne.s32.totalorder %s163, %s164
      %p173 = scmp.eq.s32.totalorder %s20, 0
      %p174 = por %p172, %p173
      %p175 = scmp.ne.s32.totalorder %s163, %s164
      %p176 = scmp.eq.s32.totalorder %s21, 1
      %p177 = por %p175, %p176
      %p179 = scmp.ne.s32.totalorder %s164, %s178
      %p180 = scmp.eq.s32.totalorder %s21, 0
      %p181 = por %p179, %p180
      %s182 = ssub.s32 %s22, %s41
      %s183 = ssub.s32 %s23, %s37
      %s184 = sor.u32 %s182, %s183
      %p185 = scmp.eq.s32.totalorder %s184, 0
      %s187 = sadd.s32 %s186, 1
      %s188 = scalar_select %p185, %s186, %s187
      %p191 = pneg %p185
      %p192 = scmp.eq.s32.totalorder %s15, 1
      %p193 = por %p191, %p192
      %p194 = scmp.ne.s32.totalorder %s186, %s189
      %p195 = scmp.eq.s32.totalorder %s15, 0
      %p196 = por %p194, %p195
      %p197 = scmp.ne.s32.totalorder %s186, %s189
      %p198 = scmp.eq.s32.totalorder %s20, 1
      %p199 = por %p197, %p198
      %p200 = scmp.ne.s32.totalorder %s189, %s190
      %p201 = scmp.eq.s32.totalorder %s20, 0
      %p202 = por %p200, %p201
      %p203 = scmp.ne.s32.totalorder %s189, %s190
      %p204 = scmp.eq.s32.totalorder %s21, 1
      %p205 = por %p203, %p204
      %p207 = scmp.ne.s32.totalorder %s190, %s206
      %p208 = scmp.eq.s32.totalorder %s21, 0
      %p209 = por %p207, %p208
      %p210 = scmp.le.s32.totalorder 1, %s15
      %p211 = scmp.lt.s32.totalorder %s15, 3
      %p212 = pnand %p210, %p211
      %p213 = pneg %p212
      // Predicated region
      $region9: #{tpu_custom_call.1} parent=5 // pred_check
        _
      $region10: #{tpu_custom_call.1} parent=5 // pred_check_branch
        %215 = sbr.rel (%p212) target = $region12
      $region11: #{tpu_custom_call.1} parent=5 // pred_region
        %s216 = ssub.s32 %s15, 1
        // Predicated region
        $region13: #{tpu_custom_call.1} parent=11 // pred_check
          %p217 = pneg %p111
        $region14: #{tpu_custom_call.1} parent=11 // pred_check_branch
          %219 = sbr.rel (%p217) target = $region16
        $region15: #{tpu_custom_call.1} parent=11 // pred_region
          _
        $region16: #{tpu_custom_call.1} parent=11 // pred_fallthru
          _
        // Predicated region
        $region17: #{tpu_custom_call.1} parent=11 // pred_check
          %p220 = pneg %p132
        $region18: #{tpu_custom_call.1} parent=11 // pred_check_branch
          %222 = sbr.rel (%p220) target = $region20
        $region19: #{tpu_custom_call.1} parent=11 // pred_region
          _
        $region20: #{tpu_custom_call.1} parent=11 // pred_fallthru
          _
        // Predicated region
        $region21: #{tpu_custom_call.1} parent=11 // pred_check
          %p223 = pneg %p153
        $region22: #{tpu_custom_call.1} parent=11 // pred_check_branch
          %225 = sbr.rel (%p223) target = $region24
        $region23: #{tpu_custom_call.1} parent=11 // pred_region
          _
        $region24: #{tpu_custom_call.1} parent=11 // pred_fallthru
          _
        // Predicated region
        $region25: #{tpu_custom_call.1} parent=11 // pred_check
          %p226 = pneg %p174
        $region26: #{tpu_custom_call.1} parent=11 // pred_check_branch
          %228 = sbr.rel (%p226) target = $region28
        $region27: #{tpu_custom_call.1} parent=11 // pred_region
          _
        $region28: #{tpu_custom_call.1} parent=11 // pred_fallthru
          _
      $region12: #{tpu_custom_call.1} parent=5 // pred_fallthru
        _
      %p229 = scmp.lt.s32.totalorder %s15, 2
      // Predicated region
      $region29: #{tpu_custom_call.1} parent=5 // pred_check
        %p230 = pneg %p229
      $region30: #{tpu_custom_call.1} parent=5 // pred_check_branch
        %232 = sbr.rel (%p230) target = $region32
      $region31: #{tpu_custom_call.1} parent=5 // pred_region
        // Predicated region
        $region33: #{tpu_custom_call.1} parent=31 // pred_check
          %p233 = pneg %p56
        $region34: #{tpu_custom_call.1} parent=31 // pred_check_branch
          %235 = sbr.rel (%p233) target = $region36
        $region35: #{tpu_custom_call.1} parent=31 // pred_region
          %p236 = scmp.lt.s32.totalorder %s22, 1
          %s237 = scalar_select %p236, %s22, 1
          %p238 = scmp.lt.s32.totalorder %s23, 0
          %s239 = scalar_select %p238, %s23, 0
          %s240 = sadd.s32 %s239, %s237
          %s241 = smul.addr %s240, 8
          %s242 = scalar_lea.vmem %s0, %s241
        $region36: #{tpu_custom_call.1} parent=31 // pred_fallthru
          _
        // Predicated region
        $region37: #{tpu_custom_call.1} parent=31 // pred_check
          %p243 = pneg %p84
        $region38: #{tpu_custom_call.1} parent=31 // pred_check_branch
          %245 = sbr.rel (%p243) target = $region40
        $region39: #{tpu_custom_call.1} parent=31 // pred_region
          %p246 = scmp.lt.s32.totalorder %s22, 1
          %s247 = scalar_select %p246, %s22, 1
          %p248 = scmp.lt.s32.totalorder %s24, 0
          %s249 = scalar_select %p248, %s24, 0
          %s250 = sadd.s32 %s249, %s247
          %s251 = smul.addr %s250, 8
          %s252 = scalar_lea.vmem %s1, %s251
        $region40: #{tpu_custom_call.1} parent=31 // pred_fallthru
          _
      $region32: #{tpu_custom_call.1} parent=5 // pred_fallthru
        _
      %p253 = scmp.le.s32.totalorder 1, %s15
      %p254 = scmp.lt.s32.totalorder %s15, 3
      %p255 = pnand %p253, %p254
      %p256 = pneg %p255
      // Predicated region
      $region41: #{tpu_custom_call.1} parent=5 // pred_check
        _
      $region42: #{tpu_custom_call.1} parent=5 // pred_check_branch
        %258 = sbr.rel (%p255) target = $region44
      $region43: #{tpu_custom_call.1} parent=5 // pred_region
        %s259 = ssub.s32 %s15, 1
        %p260 = scmp.lt.s32.totalorder %s25, 1
        %s261 = scalar_select %p260, %s25, 1
        %p262 = scmp.lt.s32.totalorder %s26, 0
        %s263 = scalar_select %p262, %s26, 0
        %s264 = sadd.s32 %s263, %s261
        %s265 = smul.addr %s264, 8
        %s266 = scalar_lea.vmem %s0, %s265
        %p267 = pneg %p62
        %p268 = pneg %p59
        %p269 = scmp.lt.s32.totalorder %s25, 1
        %s270 = scalar_select %p269, %s25, 1
        %p271 = scmp.lt.s32.totalorder %s27, 0
        %s272 = scalar_select %p271, %s27, 0
        %s273 = sadd.s32 %s272, %s270
        %s274 = smul.addr %s273, 8
        %s275 = scalar_lea.vmem %s1, %s274
        %p276 = pneg %p90
        %p277 = pneg %p87
        %p278 = pneg %p111
        %p279 = pneg %p108
        %p280 = pneg %p132
        %p281 = pneg %p129
        %p282 = pneg %p153
        %p283 = pneg %p150
        %p284 = pneg %p174
        %p285 = pneg %p171
        %p286 = pneg %p202
        %p287 = pneg %p199
        %s288 = sand.u32 %s189, 1
        %s289 = scalar_lea.sflag [#allocation7], %s288
        %s290 = sand.u32 %s189, 1
        %s291 = smul.addr %s290, 8
        %s292 = scalar_lea.vmem [#allocation6], %s291
        %p293 = scmp.lt.s32.totalorder %s25, 1
        %s294 = scalar_select %p293, %s25, 1
        %p295 = scmp.lt.s32.totalorder %s26, 0
        %s296 = scalar_select %p295, %s26, 0
        %s297 = sadd.s32 %s296, %s294
        %s298 = smul.addr %s297, 8
        %s299 = scalar_lea.vmem %s0, %s298
        %p300 = scmp.lt.s32.totalorder %s25, 1
        %s301 = scalar_select %p300, %s25, 1
        %p302 = scmp.lt.s32.totalorder %s27, 0
        %s303 = scalar_select %p302, %s27, 0
        %s304 = sadd.s32 %s303, %s301
        %s305 = smul.addr %s304, 8
        %s306 = scalar_lea.vmem %s1, %s305
        %p307 = scmp.eq.s32.totalorder %s27, 0
        // Predicated region
        $region45: #{tpu_custom_call.1} parent=43 // pred_check
          %p308 = pneg %p307
        $region46: #{tpu_custom_call.1} parent=43 // pred_check_branch
          %310 = sbr.rel (%p308) target = $region48
        $region47: #{tpu_custom_call.1} parent=43 // pred_region
          %v311 = vld [vmem:[%s299] sm:$0xff]
          %v312 = vld [vmem:[%s2] sm:$0xff]
          %v313 = vld [vmem:[%s2 + $0x8] sm:$0xff]
          %v314 = vld [vmem:[%s2 + $0x10] sm:$0xff]
          %v315 = vld [vmem:[%s2 + $0x18] sm:$0xff]
          %vm316 = vcmask 261120
          %v318 = vsel %vm316, %v311, 0
          %320 = vmatprep.subr.mxu0 0.0
          %321 = vmatpush1.msra.mxu0 %v312
          %322 = vmatprep.subr.mxu0 0.0
          %323 = vmatpush1.msra.mxu0 %v313
          %324 = vmatprep.subr.mxu0 0.0
          %325 = vmatpush1.msra.mxu0 %v314
          %326 = vmatprep.subr.mxu0 0.0
          %327 = vmatpush1.msra.mxu0 %v315
          %328 = vmatprep.subr.mxu0 0.0
          %329 = vmatpush1.msra.mxu0 0.0
          %330 = vmatprep.subr.mxu0 0.0
          %331 = vmatpush1.msra.mxu0 0.0
          %332 = vmatprep.subr.mxu0 0.0
          %333 = vmatpush1.msra.mxu0 0.0
          %334 = vmatprep.subr.mxu0 0.0
          %335 = vmatpush1.msra.mxu0 0.0
          %336 = vmatprep.subr.mxu0 0.0
          %337 = vmatpush1.msra.mxu0 0.0
          %338 = vmatprep.subr.mxu0 0.0
          %339 = vmatpush1.msra.mxu0 0.0
          %340 = vmatprep.subr.mxu0 0.0
          %341 = vmatpush1.msra.mxu0 0.0
          %342 = vmatprep.subr.mxu0 0.0
          %343 = vmatpush1.msra.mxu0 0.0
          %344 = vmatprep.subr.mxu0 0.0
          %345 = vmatpush1.msra.mxu0 0.0
          %346 = vmatprep.subr.mxu0 0.0
          %347 = vmatpush1.msra.mxu0 0.0
          %348 = vmatprep.subr.mxu0 0.0
          %349 = vmatpush1.msra.mxu0 0.0
          %350 = vmatprep.subr.mxu0 0.0
          %351 = vmatpush1.msra.mxu0 0.0
          %352 = vmatprep.subr.mxu0 0.0
          %353 = vmatpush1.msra.mxu0 0.0
          %354 = vmatprep.subr.mxu0 0.0
          %355 = vmatpush1.msra.mxu0 0.0
          %356 = vmatprep.subr.mxu0 0.0
          %357 = vmatpush1.msra.mxu0 0.0
          %358 = vmatprep.subr.mxu0 0.0
          %359 = vmatpush1.msra.mxu0 0.0
          %360 = vmatprep.subr.mxu0 0.0
          %361 = vmatpush1.msra.mxu0 0.0
          %362 = vmatprep.subr.mxu0 0.0
          %363 = vmatpush1.msra.mxu0 0.0
          %364 = vmatprep.subr.mxu0 0.0
          %365 = vmatpush1.msra.mxu0 0.0
          %366 = vmatprep.subr.mxu0 0.0
          %367 = vmatpush1.msra.mxu0 0.0
          %368 = vmatprep.subr.mxu0 0.0
          %369 = vmatpush1.msra.mxu0 0.0
          %370 = vmatprep.subr.mxu0 0.0
          %371 = vmatpush1.msra.mxu0 0.0
          %372 = vmatprep.subr.mxu0 0.0
          %373 = vmatpush1.msra.mxu0 0.0
          %374 = vmatprep.subr.mxu0 0.0
          %375 = vmatpush1.msra.mxu0 0.0
          %376 = vmatprep.subr.mxu0 0.0
          %377 = vmatpush1.msra.mxu0 0.0
          %378 = vmatprep.subr.mxu0 0.0
          %379 = vmatpush1.msra.mxu0 0.0
          %380 = vmatprep.subr.mxu0 0.0
          %381 = vmatpush1.msra.mxu0 0.0
          %382 = vmatprep.subr.mxu0 0.0
          %383 = vmatpush1.msra.mxu0 0.0
          %384 = vmatprep.mubr.f32.mxu0 0.0
          %385 = vmatmul.mubr.f32.gmra.mrb[0].mxu0 %v318
          %v386 = vpop.f32.mrb[0].mxu0
          %v387 = vadd.f32 0.0, %v386
          %v388 = vpop.f32.mrb[0].mxu0
          %389 = vdwg.mxu0
          %vm390 = vcmask 64512
          %391 = vst.msk [vmem:[#allocation2] sm:$0xff] %vm390, %v387
          %s392 = scalar_lea.vmem %s2, 32
          %v393 = vld [vmem:[%s392] sm:$0xff]
          %v394 = vld [vmem:[%s392 + $0x8] sm:$0xff]
          %v395 = vld [vmem:[%s392 + $0x10] sm:$0xff]
          %v396 = vld [vmem:[%s392 + $0x18] sm:$0xff]
          %397 = vmatprep.subr.mxu0 0.0
          %398 = vmatpush1.msra.mxu0 %v393
          %399 = vmatprep.subr.mxu0 0.0
          %400 = vmatpush1.msra.mxu0 %v394
          %401 = vmatprep.subr.mxu0 0.0
          %402 = vmatpush1.msra.mxu0 %v395
          %403 = vmatprep.subr.mxu0 0.0
          %404 = vmatpush1.msra.mxu0 %v396
          %405 = vmatprep.subr.mxu0 0.0
          %406 = vmatpush1.msra.mxu0 0.0
          %407 = vmatprep.subr.mxu0 0.0
          %408 = vmatpush1.msra.mxu0 0.0
          %409 = vmatprep.subr.mxu0 0.0
          %410 = vmatpush1.msra.mxu0 0.0
          %411 = vmatprep.subr.mxu0 0.0
          %412 = vmatpush1.msra.mxu0 0.0
          %413 = vmatprep.subr.mxu0 0.0
          %414 = vmatpush1.msra.mxu0 0.0
          %415 = vmatprep.subr.mxu0 0.0
          %416 = vmatpush1.msra.mxu0 0.0
          %417 = vmatprep.subr.mxu0 0.0
          %418 = vmatpush1.msra.mxu0 0.0
          %419 = vmatprep.subr.mxu0 0.0
          %420 = vmatpush1.msra.mxu0 0.0
          %421 = vmatprep.subr.mxu0 0.0
          %422 = vmatpush1.msra.mxu0 0.0
          %423 = vmatprep.subr.mxu0 0.0
          %424 = vmatpush1.msra.mxu0 0.0
          %425 = vmatprep.subr.mxu0 0.0
          %426 = vmatpush1.msra.mxu0 0.0
          %427 = vmatprep.subr.mxu0 0.0
          %428 = vmatpush1.msra.mxu0 0.0
          %429 = vmatprep.subr.mxu0 0.0
          %430 = vmatpush1.msra.mxu0 0.0
          %431 = vmatprep.subr.mxu0 0.0
          %432 = vmatpush1.msra.mxu0 0.0
          %433 = vmatprep.subr.mxu0 0.0
          %434 = vmatpush1.msra.mxu0 0.0
          %435 = vmatprep.subr.mxu0 0.0
          %436 = vmatpush1.msra.mxu0 0.0
          %437 = vmatprep.subr.mxu0 0.0
          %438 = vmatpush1.msra.mxu0 0.0
          %439 = vmatprep.subr.mxu0 0.0
          %440 = vmatpush1.msra.mxu0 0.0
          %441 = vmatprep.subr.mxu0 0.0
          %442 = vmatpush1.msra.mxu0 0.0
          %443 = vmatprep.subr.mxu0 0.0
          %444 = vmatpush1.msra.mxu0 0.0
          %445 = vmatprep.subr.mxu0 0.0
          %446 = vmatpush1.msra.mxu0 0.0
          %447 = vmatprep.subr.mxu0 0.0
          %448 = vmatpush1.msra.mxu0 0.0
          %449 = vmatprep.subr.mxu0 0.0
          %450 = vmatpush1.msra.mxu0 0.0
          %451 = vmatprep.subr.mxu0 0.0
          %452 = vmatpush1.msra.mxu0 0.0
          %453 = vmatprep.subr.mxu0 0.0
          %454 = vmatpush1.msra.mxu0 0.0
          %455 = vmatprep.subr.mxu0 0.0
          %456 = vmatpush1.msra.mxu0 0.0
          %457 = vmatprep.subr.mxu0 0.0
          %458 = vmatpush1.msra.mxu0 0.0
          %459 = vmatprep.subr.mxu0 0.0
          %460 = vmatpush1.msra.mxu0 0.0
          %461 = vmatprep.mubr.f32.mxu0 0.0
          %462 = vmatmul.mubr.f32.gmra.mrb[0].mxu0 %v318
          %v463 = vpop.f32.mrb[0].mxu0
          %v464 = vadd.f32 0.0, %v463
          %v465 = vpop.f32.mrb[0].mxu0
          %466 = vdwg.mxu0
          %s467 = scalar_lea.vmem [#allocation2], 8
          %468 = vst.msk [vmem:[%s467] sm:$0xff] %vm390, %v464
          %s469 = scalar_lea.vmem %s2, 64
          %v470 = vld [vmem:[%s469] sm:$0xff]
          %v471 = vld [vmem:[%s469 + $0x8] sm:$0xff]
          %v472 = vld [vmem:[%s469 + $0x10] sm:$0xff]
          %v473 = vld [vmem:[%s469 + $0x18] sm:$0xff]
          %474 = vmatprep.subr.mxu0 0.0
          %475 = vmatpush1.msra.mxu0 %v470
          %476 = vmatprep.subr.mxu0 0.0
          %477 = vmatpush1.msra.mxu0 %v471
          %478 = vmatprep.subr.mxu0 0.0
          %479 = vmatpush1.msra.mxu0 %v472
          %480 = vmatprep.subr.mxu0 0.0
          %481 = vmatpush1.msra.mxu0 %v473
          %482 = vmatprep.subr.mxu0 0.0
          %483 = vmatpush1.msra.mxu0 0.0
          %484 = vmatprep.subr.mxu0 0.0
          %485 = vmatpush1.msra.mxu0 0.0
          %486 = vmatprep.subr.mxu0 0.0
          %487 = vmatpush1.msra.mxu0 0.0
          %488 = vmatprep.subr.mxu0 0.0
          %489 = vmatpush1.msra.mxu0 0.0
          %490 = vmatprep.subr.mxu0 0.0
          %491 = vmatpush1.msra.mxu0 0.0
          %492 = vmatprep.subr.mxu0 0.0
          %493 = vmatpush1.msra.mxu0 0.0
          %494 = vmatprep.subr.mxu0 0.0
          %495 = vmatpush1.msra.mxu0 0.0
          %496 = vmatprep.subr.mxu0 0.0
          %497 = vmatpush1.msra.mxu0 0.0
          %498 = vmatprep.subr.mxu0 0.0
          %499 = vmatpush1.msra.mxu0 0.0
          %500 = vmatprep.subr.mxu0 0.0
          %501 = vmatpush1.msra.mxu0 0.0
          %502 = vmatprep.subr.mxu0 0.0
          %503 = vmatpush1.msra.mxu0 0.0
          %504 = vmatprep.subr.mxu0 0.0
          %505 = vmatpush1.msra.mxu0 0.0
          %506 = vmatprep.subr.mxu0 0.0
          %507 = vmatpush1.msra.mxu0 0.0
          %508 = vmatprep.subr.mxu0 0.0
          %509 = vmatpush1.msra.mxu0 0.0
          %510 = vmatprep.subr.mxu0 0.0
          %511 = vmatpush1.msra.mxu0 0.0
          %512 = vmatprep.subr.mxu0 0.0
          %513 = vmatpush1.msra.mxu0 0.0
          %514 = vmatprep.subr.mxu0 0.0
          %515 = vmatpush1.msra.mxu0 0.0
          %516 = vmatprep.subr.mxu0 0.0
          %517 = vmatpush1.msra.mxu0 0.0
          %518 = vmatprep.subr.mxu0 0.0
          %519 = vmatpush1.msra.mxu0 0.0
          %520 = vmatprep.subr.mxu0 0.0
          %521 = vmatpush1.msra.mxu0 0.0
          %522 = vmatprep.subr.mxu0 0.0
          %523 = vmatpush1.msra.mxu0 0.0
          %524 = vmatprep.subr.mxu0 0.0
          %525 = vmatpush1.msra.mxu0 0.0
          %526 = vmatprep.subr.mxu0 0.0
          %527 = vmatpush1.msra.mxu0 0.0
          %528 = vmatprep.subr.mxu0 0.0
          %529 = vmatpush1.msra.mxu0 0.0
          %530 = vmatprep.subr.mxu0 0.0
          %531 = vmatpush1.msra.mxu0 0.0
          %532 = vmatprep.subr.mxu0 0.0
          %533 = vmatpush1.msra.mxu0 0.0
          %534 = vmatprep.subr.mxu0 0.0
          %535 = vmatpush1.msra.mxu0 0.0
          %536 = vmatprep.subr.mxu0 0.0
          %537 = vmatpush1.msra.mxu0 0.0
          %538 = vmatprep.mubr.f32.mxu0 0.0
          %539 = vmatmul.mubr.f32.gmra.mrb[0].mxu0 %v318
          %v540 = vpop.f32.mrb[0].mxu0
          %v541 = vadd.f32 0.0, %v540
          %v542 = vpop.f32.mrb[0].mxu0
          %543 = vdwg.mxu0
          %s544 = scalar_lea.vmem [#allocation2], 16
          %545 = vst.msk [vmem:[%s544] sm:$0xff] %vm390, %v541
          %s546 = scalar_lea.vmem %s2, 96
          %v547 = vld [vmem:[%s546] sm:$0xff]
          %v548 = vld [vmem:[%s546 + $0x8] sm:$0xff]
          %v549 = vld [vmem:[%s546 + $0x10] sm:$0xff]
          %v550 = vld [vmem:[%s546 + $0x18] sm:$0xff]
          %551 = vmatprep.subr.mxu0 0.0
          %552 = vmatpush1.msra.mxu0 %v547
          %553 = vmatprep.subr.mxu0 0.0
          %554 = vmatpush1.msra.mxu0 %v548
          %555 = vmatprep.subr.mxu0 0.0
          %556 = vmatpush1.msra.mxu0 %v549
          %557 = vmatprep.subr.mxu0 0.0
          %558 = vmatpush1.msra.mxu0 %v550
          %559 = vmatprep.subr.mxu0 0.0
          %560 = vmatpush1.msra.mxu0 0.0
          %561 = vmatprep.subr.mxu0 0.0
          %562 = vmatpush1.msra.mxu0 0.0
          %563 = vmatprep.subr.mxu0 0.0
          %564 = vmatpush1.msra.mxu0 0.0
          %565 = vmatprep.subr.mxu0 0.0
          %566 = vmatpush1.msra.mxu0 0.0
          %567 = vmatprep.subr.mxu0 0.0
          %568 = vmatpush1.msra.mxu0 0.0
          %569 = vmatprep.subr.mxu0 0.0
          %570 = vmatpush1.msra.mxu0 0.0
          %571 = vmatprep.subr.mxu0 0.0
          %572 = vmatpush1.msra.mxu0 0.0
          %573 = vmatprep.subr.mxu0 0.0
          %574 = vmatpush1.msra.mxu0 0.0
          %575 = vmatprep.subr.mxu0 0.0
          %576 = vmatpush1.msra.mxu0 0.0
          %577 = vmatprep.subr.mxu0 0.0
          %578 = vmatpush1.msra.mxu0 0.0
          %579 = vmatprep.subr.mxu0 0.0
          %580 = vmatpush1.msra.mxu0 0.0
          %581 = vmatprep.subr.mxu0 0.0
          %582 = vmatpush1.msra.mxu0 0.0
          %583 = vmatprep.subr.mxu0 0.0
          %584 = vmatpush1.msra.mxu0 0.0
          %585 = vmatprep.subr.mxu0 0.0
          %586 = vmatpush1.msra.mxu0 0.0
          %587 = vmatprep.subr.mxu0 0.0
          %588 = vmatpush1.msra.mxu0 0.0
          %589 = vmatprep.subr.mxu0 0.0
          %590 = vmatpush1.msra.mxu0 0.0
          %591 = vmatprep.subr.mxu0 0.0
          %592 = vmatpush1.msra.mxu0 0.0
          %593 = vmatprep.subr.mxu0 0.0
          %594 = vmatpush1.msra.mxu0 0.0
          %595 = vmatprep.subr.mxu0 0.0
          %596 = vmatpush1.msra.mxu0 0.0
          %597 = vmatprep.subr.mxu0 0.0
          %598 = vmatpush1.msra.mxu0 0.0
          %599 = vmatprep.subr.mxu0 0.0
          %600 = vmatpush1.msra.mxu0 0.0
          %601 = vmatprep.subr.mxu0 0.0
          %602 = vmatpush1.msra.mxu0 0.0
          %603 = vmatprep.subr.mxu0 0.0
          %604 = vmatpush1.msra.mxu0 0.0
          %605 = vmatprep.subr.mxu0 0.0
          %606 = vmatpush1.msra.mxu0 0.0
          %607 = vmatprep.subr.mxu0 0.0
          %608 = vmatpush1.msra.mxu0 0.0
          %609 = vmatprep.subr.mxu0 0.0
          %610 = vmatpush1.msra.mxu0 0.0
          %611 = vmatprep.subr.mxu0 0.0
          %612 = vmatpush1.msra.mxu0 0.0
          %613 = vmatprep.subr.mxu0 0.0
          %614 = vmatpush1.msra.mxu0 0.0
          %615 = vmatprep.mubr.f32.mxu0 0.0
          %616 = vmatmul.mubr.f32.gmra.mrb[0].mxu0 %v318
          %v617 = vpop.f32.mrb[0].mxu0
          %v618 = vadd.f32 0.0, %v617
          %v619 = vpop.f32.mrb[0].mxu0
          %620 = vdwg.mxu0
          %s621 = scalar_lea.vmem [#allocation2], 24
          %622 = vst.msk [vmem:[%s621] sm:$0xff] %vm390, %v618
          %vm623 = vcmask 7168
          %624 = vst.msk [vmem:[#allocation3] sm:$0xff] %vm623, -inf
          %625 = vst.msk [vmem:[#allocation3 + $0x8] sm:$0xff] %vm623, -inf
          %626 = vst.msk [vmem:[#allocation3 + $0x10] sm:$0xff] %vm623, -inf
          %627 = vst.msk [vmem:[#allocation3 + $0x18] sm:$0xff] %vm623, -inf
          %628 = vst.msk [vmem:[#allocation4] sm:$0xff] %vm623, 0.0
          %629 = vst.msk [vmem:[#allocation4 + $0x8] sm:$0xff] %vm623, 0.0
          %630 = vst.msk [vmem:[#allocation4 + $0x10] sm:$0xff] %vm623, 0.0
          %631 = vst.msk [vmem:[#allocation4 + $0x18] sm:$0xff] %vm623, 0.0
          %632 = vst.msk [vmem:[#allocation5] sm:$0xff] %vm390, 0.0
          %633 = vst.msk [vmem:[#allocation5 + $0x8] sm:$0xff] %vm390, 0.0
          %634 = vst.msk [vmem:[#allocation5 + $0x10] sm:$0xff] %vm390, 0.0
          %635 = vst.msk [vmem:[#allocation5 + $0x18] sm:$0xff] %vm390, 0.0
        $region48: #{tpu_custom_call.1} parent=43 // pred_fallthru
          _
        %v636 = vld [vmem:[%s306] sm:$0xff]
        %v637 = vld [vmem:[%s3] sm:$0xff]
        %v638 = vld [vmem:[%s3 + $0x8] sm:$0xff]
        %v639 = vld [vmem:[%s3 + $0x10] sm:$0xff]
        %v640 = vld [vmem:[%s3 + $0x18] sm:$0xff]
        %vm641 = vcmask 261120
        %v643 = vsel %vm641, %v636, 0
        %645 = vmatprep.subr.mxu0 0.0
        %646 = vmatpush1.msra.mxu0 %v637
        %647 = vmatprep.subr.mxu0 0.0
        %648 = vmatpush1.msra.mxu0 %v638
        %649 = vmatprep.subr.mxu0 0.0
        %650 = vmatpush1.msra.mxu0 %v639
        %651 = vmatprep.subr.mxu0 0.0
        %652 = vmatpush1.msra.mxu0 %v640
        %653 = vmatprep.subr.mxu0 0.0
        %654 = vmatpush1.msra.mxu0 0.0
        %655 = vmatprep.subr.mxu0 0.0
        %656 = vmatpush1.msra.mxu0 0.0
        %657 = vmatprep.subr.mxu0 0.0
        %658 = vmatpush1.msra.mxu0 0.0
        %659 = vmatprep.subr.mxu0 0.0
        %660 = vmatpush1.msra.mxu0 0.0
        %661 = vmatprep.subr.mxu0 0.0
        %662 = vmatpush1.msra.mxu0 0.0
        %663 = vmatprep.subr.mxu0 0.0
        %664 = vmatpush1.msra.mxu0 0.0
        %665 = vmatprep.subr.mxu0 0.0
        %666 = vmatpush1.msra.mxu0 0.0
        %667 = vmatprep.subr.mxu0 0.0
        %668 = vmatpush1.msra.mxu0 0.0
        %669 = vmatprep.subr.mxu0 0.0
        %670 = vmatpush1.msra.mxu0 0.0
        %671 = vmatprep.subr.mxu0 0.0
        %672 = vmatpush1.msra.mxu0 0.0
        %673 = vmatprep.subr.mxu0 0.0
        %674 = vmatpush1.msra.mxu0 0.0
        %675 = vmatprep.subr.mxu0 0.0
        %676 = vmatpush1.msra.mxu0 0.0
        %677 = vmatprep.subr.mxu0 0.0
        %678 = vmatpush1.msra.mxu0 0.0
        %679 = vmatprep.subr.mxu0 0.0
        %680 = vmatpush1.msra.mxu0 0.0
        %681 = vmatprep.subr.mxu0 0.0
        %682 = vmatpush1.msra.mxu0 0.0
        %683 = vmatprep.subr.mxu0 0.0
        %684 = vmatpush1.msra.mxu0 0.0
        %685 = vmatprep.subr.mxu0 0.0
        %686 = vmatpush1.msra.mxu0 0.0
        %687 = vmatprep.subr.mxu0 0.0
        %688 = vmatpush1.msra.mxu0 0.0
        %689 = vmatprep.subr.mxu0 0.0
        %690 = vmatpush1.msra.mxu0 0.0
        %691 = vmatprep.subr.mxu0 0.0
        %692 = vmatpush1.msra.mxu0 0.0
        %693 = vmatprep.subr.mxu0 0.0
        %694 = vmatpush1.msra.mxu0 0.0
        %695 = vmatprep.subr.mxu0 0.0
        %696 = vmatpush1.msra.mxu0 0.0
        %697 = vmatprep.subr.mxu0 0.0
        %698 = vmatpush1.msra.mxu0 0.0
        %699 = vmatprep.subr.mxu0 0.0
        %700 = vmatpush1.msra.mxu0 0.0
        %701 = vmatprep.subr.mxu0 0.0
        %702 = vmatpush1.msra.mxu0 0.0
        %703 = vmatprep.subr.mxu0 0.0
        %704 = vmatpush1.msra.mxu0 0.0
        %705 = vmatprep.subr.mxu0 0.0
        %706 = vmatpush1.msra.mxu0 0.0
        %707 = vmatprep.subr.mxu0 0.0
        %708 = vmatpush1.msra.mxu0 0.0
        %709 = vmatprep.mubr.f32.mxu0 0.0
        %710 = vmatmul.mubr.f32.gmra.mrb[0].mxu0 %v643
        %v711 = vpop.f32.mrb[0].mxu0
        %v712 = vadd.f32 0.0, %v711
        %v713 = vpop.f32.mrb[0].mxu0
        %714 = vdwg.mxu0
        %v715 = vld [vmem:[%s4] sm:$0xff]
        %v716 = vld [vmem:[%s4 + $0x8] sm:$0xff]
        %v717 = vld [vmem:[%s4 + $0x10] sm:$0xff]
        %v718 = vld [vmem:[%s4 + $0x18] sm:$0xff]
        %719 = vmatprep.subr.mxu0 0.0
        %720 = vmatpush1.msra.mxu0 %v715
        %721 = vmatprep.subr.mxu0 0.0
        %722 = vmatpush1.msra.mxu0 %v716
        %723 = vmatprep.subr.mxu0 0.0
        %724 = vmatpush1.msra.mxu0 %v717
        %725 = vmatprep.subr.mxu0 0.0
        %726 = vmatpush1.msra.mxu0 %v718
        %727 = vmatprep.subr.mxu0 0.0
        %728 = vmatpush1.msra.mxu0 0.0
        %729 = vmatprep.subr.mxu0 0.0
        %730 = vmatpush1.msra.mxu0 0.0
        %731 = vmatprep.subr.mxu0 0.0
        %732 = vmatpush1.msra.mxu0 0.0
        %733 = vmatprep.subr.mxu0 0.0
        %734 = vmatpush1.msra.mxu0 0.0
        %735 = vmatprep.subr.mxu0 0.0
        %736 = vmatpush1.msra.mxu0 0.0
        %737 = vmatprep.subr.mxu0 0.0
        %738 = vmatpush1.msra.mxu0 0.0
        %739 = vmatprep.subr.mxu0 0.0
        %740 = vmatpush1.msra.mxu0 0.0
        %741 = vmatprep.subr.mxu0 0.0
        %742 = vmatpush1.msra.mxu0 0.0
        %743 = vmatprep.subr.mxu0 0.0
        %744 = vmatpush1.msra.mxu0 0.0
        %745 = vmatprep.subr.mxu0 0.0
        %746 = vmatpush1.msra.mxu0 0.0
        %747 = vmatprep.subr.mxu0 0.0
        %748 = vmatpush1.msra.mxu0 0.0
        %749 = vmatprep.subr.mxu0 0.0
        %750 = vmatpush1.msra.mxu0 0.0
        %751 = vmatprep.subr.mxu0 0.0
        %752 = vmatpush1.msra.mxu0 0.0
        %753 = vmatprep.subr.mxu0 0.0
        %754 = vmatpush1.msra.mxu0 0.0
        %755 = vmatprep.subr.mxu0 0.0
        %756 = vmatpush1.msra.mxu0 0.0
        %757 = vmatprep.subr.mxu0 0.0
        %758 = vmatpush1.msra.mxu0 0.0
        %759 = vmatprep.subr.mxu0 0.0
        %760 = vmatpush1.msra.mxu0 0.0
        %761 = vmatprep.subr.mxu0 0.0
        %762 = vmatpush1.msra.mxu0 0.0
        %763 = vmatprep.subr.mxu0 0.0
        %764 = vmatpush1.msra.mxu0 0.0
        %765 = vmatprep.subr.mxu0 0.0
        %766 = vmatpush1.msra.mxu0 0.0
        %767 = vmatprep.subr.mxu0 0.0
        %768 = vmatpush1.msra.mxu0 0.0
        %769 = vmatprep.subr.mxu0 0.0
        %770 = vmatpush1.msra.mxu0 0.0
        %771 = vmatprep.subr.mxu0 0.0
        %772 = vmatpush1.msra.mxu0 0.0
        %773 = vmatprep.subr.mxu0 0.0
        %774 = vmatpush1.msra.mxu0 0.0
        %775 = vmatprep.subr.mxu0 0.0
        %776 = vmatpush1.msra.mxu0 0.0
        %777 = vmatprep.subr.mxu0 0.0
        %778 = vmatpush1.msra.mxu0 0.0
        %779 = vmatprep.subr.mxu0 0.0
        %780 = vmatpush1.msra.mxu0 0.0
        %781 = vmatprep.subr.mxu0 0.0
        %782 = vmatpush1.msra.mxu0 0.0
        %783 = vmatprep.mubr.f32.mxu0 0.0
        %784 = vmatmul.mubr.f32.gmra.mrb[0].mxu0 %v643
        %v785 = vpop.f32.mrb[0].mxu0
        %v786 = vadd.f32 0.0, %v785
        %v787 = vpop.f32.mrb[0].mxu0
        %788 = vdwg.mxu0
        %v789 = vld [vmem:[#allocation2] sm:$0xff]
        %vm790 = vcmask 64512
        %v792 = vsel %vm790, %v789, 0
        %v795 = vsel %vm790, %v712, 0
        %797 = vmatprep.subr.mxu0 0.0
        %798 = vmatpush1.xpose.msra.mxu0 %v795
        %799 = vmatprep.subr.mxu0 0.0
        %800 = vmatpush1.xpose.msra.mxu0 0.0
        %801 = vmatprep.subr.mxu0 0.0
        %802 = vmatpush1.xpose.msra.mxu0 0.0
        %803 = vmatprep.subr.mxu0 0.0
        %804 = vmatpush1.xpose.msra.mxu0 0.0
        %805 = vmatprep.subr.mxu0 0.0
        %806 = vmatpush1.xpose.msra.mxu0 0.0
        %807 = vmatprep.subr.mxu0 0.0
        %808 = vmatpush1.xpose.msra.mxu0 0.0
        %809 = vmatprep.subr.mxu0 0.0
        %810 = vmatpush1.xpose.msra.mxu0 0.0
        %811 = vmatprep.subr.mxu0 0.0
        %812 = vmatpush1.xpose.msra.mxu0 0.0
        %813 = vmatprep.subr.mxu0 0.0
        %814 = vmatpush1.xpose.msra.mxu0 0.0
        %815 = vmatprep.subr.mxu0 0.0
        %816 = vmatpush1.xpose.msra.mxu0 0.0
        %817 = vmatprep.subr.mxu0 0.0
        %818 = vmatpush1.xpose.msra.mxu0 0.0
        %819 = vmatprep.subr.mxu0 0.0
        %820 = vmatpush1.xpose.msra.mxu0 0.0
        %821 = vmatprep.subr.mxu0 0.0
        %822 = vmatpush1.xpose.msra.mxu0 0.0
        %823 = vmatprep.subr.mxu0 0.0
        %824 = vmatpush1.xpose.msra.mxu0 0.0
        %825 = vmatprep.subr.mxu0 0.0
        %826 = vmatpush1.xpose.msra.mxu0 0.0
        %827 = vmatprep.subr.mxu0 0.0
        %828 = vmatpush1.xpose.msra.mxu0 0.0
        %829 = vmatprep.subr.mxu0 0.0
        %830 = vmatpush1.xpose.msra.mxu0 0.0
        %831 = vmatprep.subr.mxu0 0.0
        %832 = vmatpush1.xpose.msra.mxu0 0.0
        %833 = vmatprep.subr.mxu0 0.0
        %834 = vmatpush1.xpose.msra.mxu0 0.0
        %835 = vmatprep.subr.mxu0 0.0
        %836 = vmatpush1.xpose.msra.mxu0 0.0
        %837 = vmatprep.subr.mxu0 0.0
        %838 = vmatpush1.xpose.msra.mxu0 0.0
        %839 = vmatprep.subr.mxu0 0.0
        %840 = vmatpush1.xpose.msra.mxu0 0.0
        %841 = vmatprep.subr.mxu0 0.0
        %842 = vmatpush1.xpose.msra.mxu0 0.0
        %843 = vmatprep.subr.mxu0 0.0
        %844 = vmatpush1.xpose.msra.mxu0 0.0
        %845 = vmatprep.subr.mxu0 0.0
        %846 = vmatpush1.xpose.msra.mxu0 0.0
        %847 = vmatprep.subr.mxu0 0.0
        %848 = vmatpush1.xpose.msra.mxu0 0.0
        %849 = vmatprep.subr.mxu0 0.0
        %850 = vmatpush1.xpose.msra.mxu0 0.0
        %851 = vmatprep.subr.mxu0 0.0
        %852 = vmatpush1.xpose.msra.mxu0 0.0
        %853 = vmatprep.subr.mxu0 0.0
        %854 = vmatpush1.xpose.msra.mxu0 0.0
        %855 = vmatprep.subr.mxu0 0.0
        %856 = vmatpush1.xpose.msra.mxu0 0.0
        %857 = vmatprep.subr.mxu0 0.0
        %858 = vmatpush1.xpose.msra.mxu0 0.0
        %859 = vmatprep.subr.mxu0 0.0
        %860 = vmatpush1.xpose.msra.mxu0 0.0
        %861 = vmatprep.mubr.f32.mxu0 0.0
        %862 = vmatmul.mubr.f32.gmra.mrb[0].mxu0 %v792
        %v863 = vpop.f32.mrb[0].mxu0
        %v864 = vadd.f32 0.0, %v863
        %v865 = vpop.f32.mrb[0].mxu0
        %866 = vdwg.mxu0
        %v867 = vld [vmem:[#allocation3] sm:$0xff]
        %v868 = vsel %vm790, %v864, -inf
        %869 = vmax.xlane.f32.xlu0 %v868
        %v870 = vpop.xlane.xlu0 %869
        %v871 = vmax.f32 %v867, %v870
        %v872 = vsub.f32 %v867, %v871
        %v873 = vmul.f32 %v872, 1.442695
        %v874 = vpow.pop %v873
        %876 = vset.pattern.permute.xlu0 0
        %877 = vperm.xlu0 %876, %v871
        %v878 = vpop.permute.xlu0 %877
        %v880 = vsub.f32 %v864, %v878
        %v881 = vmul.f32 %v880, 1.442695
        %v882 = vpow.pop %v881
        %v883 = vld [vmem:[#allocation4] sm:$0xff]
        %v884 = vmul.f32 %v874, %v883
        %v885 = vsel %vm790, %v882, 0.0
        %886 = vadd.xlane.f32.xlu0 %v885
        %v887 = vpop.xlane.xlu0 %886
        %v888 = vadd.f32 %v884, %v887
        %vm889 = vcmask 7168
        %890 = vst.msk [vmem:[#allocation4] sm:$0xff] %vm889, %v888
        %v891 = vld [vmem:[#allocation5] sm:$0xff]
        %893 = vset.pattern.permute.xlu0 0
        %894 = vperm.xlu0 %893, %v874
        %v895 = vpop.permute.xlu0 %894
        %v897 = vmul.f32 %v895, %v891
        %v899 = vsel %vm790, %v882, 0
        %901 = vmatprep.subr.mxu0 0.0
        %902 = vmatpush1.msra.mxu0 %v786
        %903 = vmatprep.subr.mxu0 0.0
        %904 = vmatpush1.msra.mxu0 0.0
        %905 = vmatprep.subr.mxu0 0.0
        %906 = vmatpush1.msra.mxu0 0.0
        %907 = vmatprep.subr.mxu0 0.0
        %908 = vmatpush1.msra.mxu0 0.0
        %909 = vmatprep.subr.mxu0 0.0
        %910 = vmatpush1.msra.mxu0 0.0
        %911 = vmatprep.subr.mxu0 0.0
        %912 = vmatpush1.msra.mxu0 0.0
        %913 = vmatprep.subr.mxu0 0.0
        %914 = vmatpush1.msra.mxu0 0.0
        %915 = vmatprep.subr.mxu0 0.0
        %916 = vmatpush1.msra.mxu0 0.0
        %917 = vmatprep.subr.mxu0 0.0
        %918 = vmatpush1.msra.mxu0 0.0
        %919 = vmatprep.subr.mxu0 0.0
        %920 = vmatpush1.msra.mxu0 0.0
        %921 = vmatprep.subr.mxu0 0.0
        %922 = vmatpush1.msra.mxu0 0.0
        %923 = vmatprep.subr.mxu0 0.0
        %924 = vmatpush1.msra.mxu0 0.0
        %925 = vmatprep.subr.mxu0 0.0
        %926 = vmatpush1.msra.mxu0 0.0
        %927 = vmatprep.subr.mxu0 0.0
        %928 = vmatpush1.msra.mxu0 0.0
        %929 = vmatprep.subr.mxu0 0.0
        %930 = vmatpush1.msra.mxu0 0.0
        %931 = vmatprep.subr.mxu0 0.0
        %932 = vmatpush1.msra.mxu0 0.0
        %933 = vmatprep.subr.mxu0 0.0
        %934 = vmatpush1.msra.mxu0 0.0
        %935 = vmatprep.subr.mxu0 0.0
        %936 = vmatpush1.msra.mxu0 0.0
        %937 = vmatprep.subr.mxu0 0.0
        %938 = vmatpush1.msra.mxu0 0.0
        %939 = vmatprep.subr.mxu0 0.0
        %940 = vmatpush1.msra.mxu0 0.0
        %941 = vmatprep.subr.mxu0 0.0
        %942 = vmatpush1.msra.mxu0 0.0
        %943 = vmatprep.subr.mxu0 0.0
        %944 = vmatpush1.msra.mxu0 0.0
        %945 = vmatprep.subr.mxu0 0.0
        %946 = vmatpush1.msra.mxu0 0.0
        %947 = vmatprep.subr.mxu0 0.0
        %948 = vmatpush1.msra.mxu0 0.0
        %949 = vmatprep.subr.mxu0 0.0
        %950 = vmatpush1.msra.mxu0 0.0
        %951 = vmatprep.subr.mxu0 0.0
        %952 = vmatpush1.msra.mxu0 0.0
        %953 = vmatprep.subr.mxu0 0.0
        %954 = vmatpush1.msra.mxu0 0.0
        %955 = vmatprep.subr.mxu0 0.0
        %956 = vmatpush1.msra.mxu0 0.0
        %957 = vmatprep.subr.mxu0 0.0
        %958 = vmatpush1.msra.mxu0 0.0
        %959 = vmatprep.subr.mxu0 0.0
        %960 = vmatpush1.msra.mxu0 0.0
        %961 = vmatprep.subr.mxu0 0.0
        %962 = vmatpush1.msra.mxu0 0.0
        %963 = vmatprep.subr.mxu0 0.0
        %964 = vmatpush1.msra.mxu0 0.0
        %965 = vmatprep.mubr.f32.mxu0 0.0
        %966 = vmatmul.mubr.f32.gmra.mrb[0].mxu0 %v899
        %v967 = vpop.f32.mrb[0].mxu0
        %v968 = vadd.f32 0.0, %v967
        %v969 = vpop.f32.mrb[0].mxu0
        %970 = vdwg.mxu0
        %v971 = vadd.f32 %v897, %v968
        %972 = vst.msk [vmem:[#allocation5] sm:$0xff] %vm790, %v971
        %973 = vst.msk [vmem:[#allocation3] sm:$0xff] %vm889, %v871
        %s974 = scalar_lea.vmem %s3, 32
        %v975 = vld [vmem:[%s974] sm:$0xff]
        %v976 = vld [vmem:[%s974 + $0x8] sm:$0xff]
        %v977 = vld [vmem:[%s974 + $0x10] sm:$0xff]
        %v978 = vld [vmem:[%s974 + $0x18] sm:$0xff]
        %979 = vmatprep.subr.mxu0 0.0
        %980 = vmatpush1.msra.mxu0 %v975
        %981 = vmatprep.subr.mxu0 0.0
        %982 = vmatpush1.msra.mxu0 %v976
        %983 = vmatprep.subr.mxu0 0.0
        %984 = vmatpush1.msra.mxu0 %v977
        %985 = vmatprep.subr.mxu0 0.0
        %986 = vmatpush1.msra.mxu0 %v978
        %987 = vmatprep.subr.mxu0 0.0
        %988 = vmatpush1.msra.mxu0 0.0
        %989 = vmatprep.subr.mxu0 0.0
        %990 = vmatpush1.msra.mxu0 0.0
        %991 = vmatprep.subr.mxu0 0.0
        %992 = vmatpush1.msra.mxu0 0.0
        %993 = vmatprep.subr.mxu0 0.0
        %994 = vmatpush1.msra.mxu0 0.0
        %995 = vmatprep.subr.mxu0 0.0
        %996 = vmatpush1.msra.mxu0 0.0
        %997 = vmatprep.subr.mxu0 0.0
        %998 = vmatpush1.msra.mxu0 0.0
        %999 = vmatprep.subr.mxu0 0.0
        %1000 = vmatpush1.msra.mxu0 0.0
        %1001 = vmatprep.subr.mxu0 0.0
        %1002 = vmatpush1.msra.mxu0 0.0
        %1003 = vmatprep.subr.mxu0 0.0
        %1004 = vmatpush1.msra.mxu0 0.0
        %1005 = vmatprep.subr.mxu0 0.0
        %1006 = vmatpush1.msra.mxu0 0.0
        %1007 = vmatprep.subr.mxu0 0.0
        %1008 = vmatpush1.msra.mxu0 0.0
        %1009 = vmatprep.subr.mxu0 0.0
        %1010 = vmatpush1.msra.mxu0 0.0
        %1011 = vmatprep.subr.mxu0 0.0
        %1012 = vmatpush1.msra.mxu0 0.0
        %1013 = vmatprep.subr.mxu0 0.0
        %1014 = vmatpush1.msra.mxu0 0.0
        %1015 = vmatprep.subr.mxu0 0.0
        %1016 = vmatpush1.msra.mxu0 0.0
        %1017 = vmatprep.subr.mxu0 0.0
        %1018 = vmatpush1.msra.mxu0 0.0
        %1019 = vmatprep.subr.mxu0 0.0
        %1020 = vmatpush1.msra.mxu0 0.0
        %1021 = vmatprep.subr.mxu0 0.0
        %1022 = vmatpush1.msra.mxu0 0.0
        %1023 = vmatprep.subr.mxu0 0.0
        %1024 = vmatpush1.msra.mxu0 0.0
        %1025 = vmatprep.subr.mxu0 0.0
        %1026 = vmatpush1.msra.mxu0 0.0
        %1027 = vmatprep.subr.mxu0 0.0
        %1028 = vmatpush1.msra.mxu0 0.0
        %1029 = vmatprep.subr.mxu0 0.0
        %1030 = vmatpush1.msra.mxu0 0.0
        %1031 = vmatprep.subr.mxu0 0.0
        %1032 = vmatpush1.msra.mxu0 0.0
        %1033 = vmatprep.subr.mxu0 0.0
        %1034 = vmatpush1.msra.mxu0 0.0
        %1035 = vmatprep.subr.mxu0 0.0
        %1036 = vmatpush1.msra.mxu0 0.0
        %1037 = vmatprep.subr.mxu0 0.0
        %1038 = vmatpush1.msra.mxu0 0.0
        %1039 = vmatprep.subr.mxu0 0.0
        %1040 = vmatpush1.msra.mxu0 0.0
        %1041 = vmatprep.subr.mxu0 0.0
        %1042 = vmatpush1.msra.mxu0 0.0
        %1043 = vmatprep.mubr.f32.mxu0 0.0
        %1044 = vmatmul.mubr.f32.gmra.mrb[0].mxu0 %v643
        %v1045 = vpop.f32.mrb[0].mxu0
        %v1046 = vadd.f32 0.0, %v1045
        %v1047 = vpop.f32.mrb[0].mxu0
        %1048 = vdwg.mxu0
        %s1049 = scalar_lea.vmem %s4, 32
        %v1050 = vld [vmem:[%s1049] sm:$0xff]
        %v1051 = vld [vmem:[%s1049 + $0x8] sm:$0xff]
        %v1052 = vld [vmem:[%s1049 + $0x10] sm:$0xff]
        %v1053 = vld [vmem:[%s1049 + $0x18] sm:$0xff]
        %1054 = vmatprep.subr.mxu0 0.0
        %1055 = vmatpush1.msra.mxu0 %v1050
        %1056 = vmatprep.subr.mxu0 0.0
        %1057 = vmatpush1.msra.mxu0 %v1051
        %1058 = vmatprep.subr.mxu0 0.0
        %1059 = vmatpush1.msra.mxu0 %v1052
        %1060 = vmatprep.subr.mxu0 0.0
        %1061 = vmatpush1.msra.mxu0 %v1053
        %1062 = vmatprep.subr.mxu0 0.0
        %1063 = vmatpush1.msra.mxu0 0.0
        %1064 = vmatprep.subr.mxu0 0.0
        %1065 = vmatpush1.msra.mxu0 0.0
        %1066 = vmatprep.subr.mxu0 0.0
        %1067 = vmatpush1.msra.mxu0 0.0
        %1068 = vmatprep.subr.mxu0 0.0
        %1069 = vmatpush1.msra.mxu0 0.0
        %1070 = vmatprep.subr.mxu0 0.0
        %1071 = vmatpush1.msra.mxu0 0.0
        %1072 = vmatprep.subr.mxu0 0.0
        %1073 = vmatpush1.msra.mxu0 0.0
        %1074 = vmatprep.subr.mxu0 0.0
        %1075 = vmatpush1.msra.mxu0 0.0
        %1076 = vmatprep.subr.mxu0 0.0
        %1077 = vmatpush1.msra.mxu0 0.0
        %1078 = vmatprep.subr.mxu0 0.0
        %1079 = vmatpush1.msra.mxu0 0.0
        %1080 = vmatprep.subr.mxu0 0.0
        %1081 = vmatpush1.msra.mxu0 0.0
        %1082 = vmatprep.subr.mxu0 0.0
        %1083 = vmatpush1.msra.mxu0 0.0
        %1084 = vmatprep.subr.mxu0 0.0
        %1085 = vmatpush1.msra.mxu0 0.0
        %1086 = vmatprep.subr.mxu0 0.0
        %1087 = vmatpush1.msra.mxu0 0.0
        %1088 = vmatprep.subr.mxu0 0.0
        %1089 = vmatpush1.msra.mxu0 0.0
        %1090 = vmatprep.subr.mxu0 0.0
        %1091 = vmatpush1.msra.mxu0 0.0
        %1092 = vmatprep.subr.mxu0 0.0
        %1093 = vmatpush1.msra.mxu0 0.0
        %1094 = vmatprep.subr.mxu0 0.0
        %1095 = vmatpush1.msra.mxu0 0.0
        %1096 = vmatprep.subr.mxu0 0.0
        %1097 = vmatpush1.msra.mxu0 0.0
        %1098 = vmatprep.subr.mxu0 0.0
        %1099 = vmatpush1.msra.mxu0 0.0
        %1100 = vmatprep.subr.mxu0 0.0
        %1101 = vmatpush1.msra.mxu0 0.0
        %1102 = vmatprep.subr.mxu0 0.0
        %1103 = vmatpush1.msra.mxu0 0.0
        %1104 = vmatprep.subr.mxu0 0.0
        %1105 = vmatpush1.msra.mxu0 0.0
        %1106 = vmatprep.subr.mxu0 0.0
        %1107 = vmatpush1.msra.mxu0 0.0
        %1108 = vmatprep.subr.mxu0 0.0
        %1109 = vmatpush1.msra.mxu0 0.0
        %1110 = vmatprep.subr.mxu0 0.0
        %1111 = vmatpush1.msra.mxu0 0.0
        %1112 = vmatprep.subr.mxu0 0.0
        %1113 = vmatpush1.msra.mxu0 0.0
        %1114 = vmatprep.subr.mxu0 0.0
        %1115 = vmatpush1.msra.mxu0 0.0
        %1116 = vmatprep.subr.mxu0 0.0
        %1117 = vmatpush1.msra.mxu0 0.0
        %1118 = vmatprep.mubr.f32.mxu0 0.0
        %1119 = vmatmul.mubr.f32.gmra.mrb[0].mxu0 %v643
        %v1120 = vpop.f32.mrb[0].mxu0
        %v1121 = vadd.f32 0.0, %v1120
        %v1122 = vpop.f32.mrb[0].mxu0
        %1123 = vdwg.mxu0
        %s1124 = scalar_lea.vmem [#allocation2], 8
        %v1125 = vld [vmem:[%s1124] sm:$0xff]
        %v1127 = vsel %vm790, %v1125, 0
        %v1130 = vsel %vm790, %v1046, 0
        %1132 = vmatprep.subr.mxu0 0.0
        %1133 = vmatpush1.xpose.msra.mxu0 %v1130
        %1134 = vmatprep.subr.mxu0 0.0
        %1135 = vmatpush1.xpose.msra.mxu0 0.0
        %1136 = vmatprep.subr.mxu0 0.0
        %1137 = vmatpush1.xpose.msra.mxu0 0.0
        %1138 = vmatprep.subr.mxu0 0.0
        %1139 = vmatpush1.xpose.msra.mxu0 0.0
        %1140 = vmatprep.subr.mxu0 0.0
        %1141 = vmatpush1.xpose.msra.mxu0 0.0
        %1142 = vmatprep.subr.mxu0 0.0
        %1143 = vmatpush1.xpose.msra.mxu0 0.0
        %1144 = vmatprep.subr.mxu0 0.0
        %1145 = vmatpush1.xpose.msra.mxu0 0.0
        %1146 = vmatprep.subr.mxu0 0.0
        %1147 = vmatpush1.xpose.msra.mxu0 0.0
        %1148 = vmatprep.subr.mxu0 0.0
        %1149 = vmatpush1.xpose.msra.mxu0 0.0
        %1150 = vmatprep.subr.mxu0 0.0
        %1151 = vmatpush1.xpose.msra.mxu0 0.0
        %1152 = vmatprep.subr.mxu0 0.0
        %1153 = vmatpush1.xpose.msra.mxu0 0.0
        %1154 = vmatprep.subr.mxu0 0.0
        %1155 = vmatpush1.xpose.msra.mxu0 0.0
        %1156 = vmatprep.subr.mxu0 0.0
        %1157 = vmatpush1.xpose.msra.mxu0 0.0
        %1158 = vmatprep.subr.mxu0 0.0
        %1159 = vmatpush1.xpose.msra.mxu0 0.0
        %1160 = vmatprep.subr.mxu0 0.0
        %1161 = vmatpush1.xpose.msra.mxu0 0.0
        %1162 = vmatprep.subr.mxu0 0.0
        %1163 = vmatpush1.xpose.msra.mxu0 0.0
        %1164 = vmatprep.subr.mxu0 0.0
        %1165 = vmatpush1.xpose.msra.mxu0 0.0
        %1166 = vmatprep.subr.mxu0 0.0
        %1167 = vmatpush1.xpose.msra.mxu0 0.0
        %1168 = vmatprep.subr.mxu0 0.0
        %1169 = vmatpush1.xpose.msra.mxu0 0.0
        %1170 = vmatprep.subr.mxu0 0.0
        %1171 = vmatpush1.xpose.msra.mxu0 0.0
        %1172 = vmatprep.subr.mxu0 0.0
        %1173 = vmatpush1.xpose.msra.mxu0 0.0
        %1174 = vmatprep.subr.mxu0 0.0
        %1175 = vmatpush1.xpose.msra.mxu0 0.0
        %1176 = vmatprep.subr.mxu0 0.0
        %1177 = vmatpush1.xpose.msra.mxu0 0.0
        %1178 = vmatprep.subr.mxu0 0.0
        %1179 = vmatpush1.xpose.msra.mxu0 0.0
        %1180 = vmatprep.subr.mxu0 0.0
        %1181 = vmatpush1.xpose.msra.mxu0 0.0
        %1182 = vmatprep.subr.mxu0 0.0
        %1183 = vmatpush1.xpose.msra.mxu0 0.0
        %1184 = vmatprep.subr.mxu0 0.0
        %1185 = vmatpush1.xpose.msra.mxu0 0.0
        %1186 = vmatprep.subr.mxu0 0.0
        %1187 = vmatpush1.xpose.msra.mxu0 0.0
        %1188 = vmatprep.subr.mxu0 0.0
        %1189 = vmatpush1.xpose.msra.mxu0 0.0
        %1190 = vmatprep.subr.mxu0 0.0
        %1191 = vmatpush1.xpose.msra.mxu0 0.0
        %1192 = vmatprep.subr.mxu0 0.0
        %1193 = vmatpush1.xpose.msra.mxu0 0.0
        %1194 = vmatprep.subr.mxu0 0.0
        %1195 = vmatpush1.xpose.msra.mxu0 0.0
        %1196 = vmatprep.mubr.f32.mxu0 0.0
        %1197 = vmatmul.mubr.f32.gmra.mrb[0].mxu0 %v1127
        %v1198 = vpop.f32.mrb[0].mxu0
        %v1199 = vadd.f32 0.0, %v1198
        %v1200 = vpop.f32.mrb[0].mxu0
        %1201 = vdwg.mxu0
        %s1202 = scalar_lea.vmem [#allocation3], 8
        %v1203 = vld [vmem:[%s1202] sm:$0xff]
        %v1204 = vsel %vm790, %v1199, -inf
        %1205 = vmax.xlane.f32.xlu0 %v1204
        %v1206 = vpop.xlane.xlu0 %1205
        %v1207 = vmax.f32 %v1203, %v1206
        %v1208 = vsub.f32 %v1203, %v1207
        %v1209 = vmul.f32 %v1208, 1.442695
        %v1210 = vpow.pop %v1209
        %1212 = vset.pattern.permute.xlu0 0
        %1213 = vperm.xlu0 %1212, %v1207
        %v1214 = vpop.permute.xlu0 %1213
        %v1216 = vsub.f32 %v1199, %v1214
        %v1217 = vmul.f32 %v1216, 1.442695
        %v1218 = vpow.pop %v1217
        %s1219 = scalar_lea.vmem [#allocation4], 8
        %v1220 = vld [vmem:[%s1219] sm:$0xff]
        %v1221 = vmul.f32 %v1210, %v1220
        %v1222 = vsel %vm790, %v1218, 0.0
        %1223 = vadd.xlane.f32.xlu0 %v1222
        %v1224 = vpop.xlane.xlu0 %1223
        %v1225 = vadd.f32 %v1221, %v1224
        %1226 = vst.msk [vmem:[%s1219] sm:$0xff] %vm889, %v1225
        %s1227 = scalar_lea.vmem [#allocation5], 8
        %v1228 = vld [vmem:[%s1227] sm:$0xff]
        %1230 = vset.pattern.permute.xlu0 0
        %1231 = vperm.xlu0 %1230, %v1210
        %v1232 = vpop.permute.xlu0 %1231
        %v1234 = vmul.f32 %v1232, %v1228
        %v1236 = vsel %vm790, %v1218, 0
        %1238 = vmatprep.subr.mxu0 0.0
        %1239 = vmatpush1.msra.mxu0 %v1121
        %1240 = vmatprep.subr.mxu0 0.0
        %1241 = vmatpush1.msra.mxu0 0.0
        %1242 = vmatprep.subr.mxu0 0.0
        %1243 = vmatpush1.msra.mxu0 0.0
        %1244 = vmatprep.subr.mxu0 0.0
        %1245 = vmatpush1.msra.mxu0 0.0
        %1246 = vmatprep.subr.mxu0 0.0
        %1247 = vmatpush1.msra.mxu0 0.0
        %1248 = vmatprep.subr.mxu0 0.0
        %1249 = vmatpush1.msra.mxu0 0.0
        %1250 = vmatprep.subr.mxu0 0.0
        %1251 = vmatpush1.msra.mxu0 0.0
        %1252 = vmatprep.subr.mxu0 0.0
        %1253 = vmatpush1.msra.mxu0 0.0
        %1254 = vmatprep.subr.mxu0 0.0
        %1255 = vmatpush1.msra.mxu0 0.0
        %1256 = vmatprep.subr.mxu0 0.0
        %1257 = vmatpush1.msra.mxu0 0.0
        %1258 = vmatprep.subr.mxu0 0.0
        %1259 = vmatpush1.msra.mxu0 0.0
        %1260 = vmatprep.subr.mxu0 0.0
        %1261 = vmatpush1.msra.mxu0 0.0
        %1262 = vmatprep.subr.mxu0 0.0
        %1263 = vmatpush1.msra.mxu0 0.0
        %1264 = vmatprep.subr.mxu0 0.0
        %1265 = vmatpush1.msra.mxu0 0.0
        %1266 = vmatprep.subr.mxu0 0.0
        %1267 = vmatpush1.msra.mxu0 0.0
        %1268 = vmatprep.subr.mxu0 0.0
        %1269 = vmatpush1.msra.mxu0 0.0
        %1270 = vmatprep.subr.mxu0 0.0
        %1271 = vmatpush1.msra.mxu0 0.0
        %1272 = vmatprep.subr.mxu0 0.0
        %1273 = vmatpush1.msra.mxu0 0.0
        %1274 = vmatprep.subr.mxu0 0.0
        %1275 = vmatpush1.msra.mxu0 0.0
        %1276 = vmatprep.subr.mxu0 0.0
        %1277 = vmatpush1.msra.mxu0 0.0
        %1278 = vmatprep.subr.mxu0 0.0
        %1279 = vmatpush1.msra.mxu0 0.0
        %1280 = vmatprep.subr.mxu0 0.0
        %1281 = vmatpush1.msra.mxu0 0.0
        %1282 = vmatprep.subr.mxu0 0.0
        %1283 = vmatpush1.msra.mxu0 0.0
        %1284 = vmatprep.subr.mxu0 0.0
        %1285 = vmatpush1.msra.mxu0 0.0
        %1286 = vmatprep.subr.mxu0 0.0
        %1287 = vmatpush1.msra.mxu0 0.0
        %1288 = vmatprep.subr.mxu0 0.0
        %1289 = vmatpush1.msra.mxu0 0.0
        %1290 = vmatprep.subr.mxu0 0.0
        %1291 = vmatpush1.msra.mxu0 0.0
        %1292 = vmatprep.subr.mxu0 0.0
        %1293 = vmatpush1.msra.mxu0 0.0
        %1294 = vmatprep.subr.mxu0 0.0
        %1295 = vmatpush1.msra.mxu0 0.0
        %1296 = vmatprep.subr.mxu0 0.0
        %1297 = vmatpush1.msra.mxu0 0.0
        %1298 = vmatprep.subr.mxu0 0.0
        %1299 = vmatpush1.msra.mxu0 0.0
        %1300 = vmatprep.subr.mxu0 0.0
        %1301 = vmatpush1.msra.mxu0 0.0
        %1302 = vmatprep.mubr.f32.mxu0 0.0
        %1303 = vmatmul.mubr.f32.gmra.mrb[0].mxu0 %v1236
        %v1304 = vpop.f32.mrb[0].mxu0
        %v1305 = vadd.f32 0.0, %v1304
        %v1306 = vpop.f32.mrb[0].mxu0
        %1307 = vdwg.mxu0
        %v1308 = vadd.f32 %v1234, %v1305
        %1309 = vst.msk [vmem:[%s1227] sm:$0xff] %vm790, %v1308
        %1310 = vst.msk [vmem:[%s1202] sm:$0xff] %vm889, %v1207
        %s1311 = scalar_lea.vmem %s3, 64
        %v1312 = vld [vmem:[%s1311] sm:$0xff]
        %v1313 = vld [vmem:[%s1311 + $0x8] sm:$0xff]
        %v1314 = vld [vmem:[%s1311 + $0x10] sm:$0xff]
        %v1315 = vld [vmem:[%s1311 + $0x18] sm:$0xff]
        %1316 = vmatprep.subr.mxu0 0.0
        %1317 = vmatpush1.msra.mxu0 %v1312
        %1318 = vmatprep.subr.mxu0 0.0
        %1319 = vmatpush1.msra.mxu0 %v1313
        %1320 = vmatprep.subr.mxu0 0.0
        %1321 = vmatpush1.msra.mxu0 %v1314
        %1322 = vmatprep.subr.mxu0 0.0
        %1323 = vmatpush1.msra.mxu0 %v1315
        %1324 = vmatprep.subr.mxu0 0.0
        %1325 = vmatpush1.msra.mxu0 0.0
        %1326 = vmatprep.subr.mxu0 0.0
        %1327 = vmatpush1.msra.mxu0 0.0
        %1328 = vmatprep.subr.mxu0 0.0
        %1329 = vmatpush1.msra.mxu0 0.0
        %1330 = vmatprep.subr.mxu0 0.0
        %1331 = vmatpush1.msra.mxu0 0.0
        %1332 = vmatprep.subr.mxu0 0.0
        %1333 = vmatpush1.msra.mxu0 0.0
        %1334 = vmatprep.subr.mxu0 0.0
        %1335 = vmatpush1.msra.mxu0 0.0
        %1336 = vmatprep.subr.mxu0 0.0
        %1337 = vmatpush1.msra.mxu0 0.0
        %1338 = vmatprep.subr.mxu0 0.0
        %1339 = vmatpush1.msra.mxu0 0.0
        %1340 = vmatprep.subr.mxu0 0.0
        %1341 = vmatpush1.msra.mxu0 0.0
        %1342 = vmatprep.subr.mxu0 0.0
        %1343 = vmatpush1.msra.mxu0 0.0
        %1344 = vmatprep.subr.mxu0 0.0
        %1345 = vmatpush1.msra.mxu0 0.0
        %1346 = vmatprep.subr.mxu0 0.0
        %1347 = vmatpush1.msra.mxu0 0.0
        %1348 = vmatprep.subr.mxu0 0.0
        %1349 = vmatpush1.msra.mxu0 0.0
        %1350 = vmatprep.subr.mxu0 0.0
        %1351 = vmatpush1.msra.mxu0 0.0
        %1352 = vmatprep.subr.mxu0 0.0
        %1353 = vmatpush1.msra.mxu0 0.0
        %1354 = vmatprep.subr.mxu0 0.0
        %1355 = vmatpush1.msra.mxu0 0.0
        %1356 = vmatprep.subr.mxu0 0.0
        %1357 = vmatpush1.msra.mxu0 0.0
        %1358 = vmatprep.subr.mxu0 0.0
        %1359 = vmatpush1.msra.mxu0 0.0
        %1360 = vmatprep.subr.mxu0 0.0
        %1361 = vmatpush1.msra.mxu0 0.0
        %1362 = vmatprep.subr.mxu0 0.0
        %1363 = vmatpush1.msra.mxu0 0.0
        %1364 = vmatprep.subr.mxu0 0.0
        %1365 = vmatpush1.msra.mxu0 0.0
        %1366 = vmatprep.subr.mxu0 0.0
        %1367 = vmatpush1.msra.mxu0 0.0
        %1368 = vmatprep.subr.mxu0 0.0
        %1369 = vmatpush1.msra.mxu0 0.0
        %1370 = vmatprep.subr.mxu0 0.0
        %1371 = vmatpush1.msra.mxu0 0.0
        %1372 = vmatprep.subr.mxu0 0.0
        %1373 = vmatpush1.msra.mxu0 0.0
        %1374 = vmatprep.subr.mxu0 0.0
        %1375 = vmatpush1.msra.mxu0 0.0
        %1376 = vmatprep.subr.mxu0 0.0
        %1377 = vmatpush1.msra.mxu0 0.0
        %1378 = vmatprep.subr.mxu0 0.0
        %1379 = vmatpush1.msra.mxu0 0.0
        %1380 = vmatprep.mubr.f32.mxu0 0.0
        %1381 = vmatmul.mubr.f32.gmra.mrb[0].mxu0 %v643
        %v1382 = vpop.f32.mrb[0].mxu0
        %v1383 = vadd.f32 0.0, %v1382
        %v1384 = vpop.f32.mrb[0].mxu0
        %1385 = vdwg.mxu0
        %s1386 = scalar_lea.vmem %s4, 64
        %v1387 = vld [vmem:[%s1386] sm:$0xff]
        %v1388 = vld [vmem:[%s1386 + $0x8] sm:$0xff]
        %v1389 = vld [vmem:[%s1386 + $0x10] sm:$0xff]
        %v1390 = vld [vmem:[%s1386 + $0x18] sm:$0xff]
        %1391 = vmatprep.subr.mxu0 0.0
        %1392 = vmatpush1.msra.mxu0 %v1387
        %1393 = vmatprep.subr.mxu0 0.0
        %1394 = vmatpush1.msra.mxu0 %v1388
        %1395 = vmatprep.subr.mxu0 0.0
        %1396 = vmatpush1.msra.mxu0 %v1389
        %1397 = vmatprep.subr.mxu0 0.0
        %1398 = vmatpush1.msra.mxu0 %v1390
        %1399 = vmatprep.subr.mxu0 0.0
        %1400 = vmatpush1.msra.mxu0 0.0
        %1401 = vmatprep.subr.mxu0 0.0
        %1402 = vmatpush1.msra.mxu0 0.0
        %1403 = vmatprep.subr.mxu0 0.0
        %1404 = vmatpush1.msra.mxu0 0.0
        %1405 = vmatprep.subr.mxu0 0.0
        %1406 = vmatpush1.msra.mxu0 0.0
        %1407 = vmatprep.subr.mxu0 0.0
        %1408 = vmatpush1.msra.mxu0 0.0
        %1409 = vmatprep.subr.mxu0 0.0
        %1410 = vmatpush1.msra.mxu0 0.0
        %1411 = vmatprep.subr.mxu0 0.0
        %1412 = vmatpush1.msra.mxu0 0.0
        %1413 = vmatprep.subr.mxu0 0.0
        %1414 = vmatpush1.msra.mxu0 0.0
        %1415 = vmatprep.subr.mxu0 0.0
        %1416 = vmatpush1.msra.mxu0 0.0
        %1417 = vmatprep.subr.mxu0 0.0
        %1418 = vmatpush1.msra.mxu0 0.0
        %1419 = vmatprep.subr.mxu0 0.0
        %1420 = vmatpush1.msra.mxu0 0.0
        %1421 = vmatprep.subr.mxu0 0.0
        %1422 = vmatpush1.msra.mxu0 0.0
        %1423 = vmatprep.subr.mxu0 0.0
        %1424 = vmatpush1.msra.mxu0 0.0
        %1425 = vmatprep.subr.mxu0 0.0
        %1426 = vmatpush1.msra.mxu0 0.0
        %1427 = vmatprep.subr.mxu0 0.0
        %1428 = vmatpush1.msra.mxu0 0.0
        %1429 = vmatprep.subr.mxu0 0.0
        %1430 = vmatpush1.msra.mxu0 0.0
        %1431 = vmatprep.subr.mxu0 0.0
        %1432 = vmatpush1.msra.mxu0 0.0
        %1433 = vmatprep.subr.mxu0 0.0
        %1434 = vmatpush1.msra.mxu0 0.0
        %1435 = vmatprep.subr.mxu0 0.0
        %1436 = vmatpush1.msra.mxu0 0.0
        %1437 = vmatprep.subr.mxu0 0.0
        %1438 = vmatpush1.msra.mxu0 0.0
        %1439 = vmatprep.subr.mxu0 0.0
        %1440 = vmatpush1.msra.mxu0 0.0
        %1441 = vmatprep.subr.mxu0 0.0
        %1442 = vmatpush1.msra.mxu0 0.0
        %1443 = vmatprep.subr.mxu0 0.0
        %1444 = vmatpush1.msra.mxu0 0.0
        %1445 = vmatprep.subr.mxu0 0.0
        %1446 = vmatpush1.msra.mxu0 0.0
        %1447 = vmatprep.subr.mxu0 0.0
        %1448 = vmatpush1.msra.mxu0 0.0
        %1449 = vmatprep.subr.mxu0 0.0
        %1450 = vmatpush1.msra.mxu0 0.0
        %1451 = vmatprep.subr.mxu0 0.0
        %1452 = vmatpush1.msra.mxu0 0.0
        %1453 = vmatprep.subr.mxu0 0.0
        %1454 = vmatpush1.msra.mxu0 0.0
        %1455 = vmatprep.mubr.f32.mxu0 0.0
        %1456 = vmatmul.mubr.f32.gmra.mrb[0].mxu0 %v643
        %v1457 = vpop.f32.mrb[0].mxu0
        %v1458 = vadd.f32 0.0, %v1457
        %v1459 = vpop.f32.mrb[0].mxu0
        %1460 = vdwg.mxu0
        %s1461 = scalar_lea.vmem [#allocation2], 16
        %v1462 = vld [vmem:[%s1461] sm:$0xff]
        %v1464 = vsel %vm790, %v1462, 0
        %v1467 = vsel %vm790, %v1383, 0
        %1469 = vmatprep.subr.mxu0 0.0
        %1470 = vmatpush1.xpose.msra.mxu0 %v1467
        %1471 = vmatprep.subr.mxu0 0.0
        %1472 = vmatpush1.xpose.msra.mxu0 0.0
        %1473 = vmatprep.subr.mxu0 0.0
        %1474 = vmatpush1.xpose.msra.mxu0 0.0
        %1475 = vmatprep.subr.mxu0 0.0
        %1476 = vmatpush1.xpose.msra.mxu0 0.0
        %1477 = vmatprep.subr.mxu0 0.0
        %1478 = vmatpush1.xpose.msra.mxu0 0.0
        %1479 = vmatprep.subr.mxu0 0.0
        %1480 = vmatpush1.xpose.msra.mxu0 0.0
        %1481 = vmatprep.subr.mxu0 0.0
        %1482 = vmatpush1.xpose.msra.mxu0 0.0
        %1483 = vmatprep.subr.mxu0 0.0
        %1484 = vmatpush1.xpose.msra.mxu0 0.0
        %1485 = vmatprep.subr.mxu0 0.0
        %1486 = vmatpush1.xpose.msra.mxu0 0.0
        %1487 = vmatprep.subr.mxu0 0.0
        %1488 = vmatpush1.xpose.msra.mxu0 0.0
        %1489 = vmatprep.subr.mxu0 0.0
        %1490 = vmatpush1.xpose.msra.mxu0 0.0
        %1491 = vmatprep.subr.mxu0 0.0
        %1492 = vmatpush1.xpose.msra.mxu0 0.0
        %1493 = vmatprep.subr.mxu0 0.0
        %1494 = vmatpush1.xpose.msra.mxu0 0.0
        %1495 = vmatprep.subr.mxu0 0.0
        %1496 = vmatpush1.xpose.msra.mxu0 0.0
        %1497 = vmatprep.subr.mxu0 0.0
        %1498 = vmatpush1.xpose.msra.mxu0 0.0
        %1499 = vmatprep.subr.mxu0 0.0
        %1500 = vmatpush1.xpose.msra.mxu0 0.0
        %1501 = vmatprep.subr.mxu0 0.0
        %1502 = vmatpush1.xpose.msra.mxu0 0.0
        %1503 = vmatprep.subr.mxu0 0.0
        %1504 = vmatpush1.xpose.msra.mxu0 0.0
        %1505 = vmatprep.subr.mxu0 0.0
        %1506 = vmatpush1.xpose.msra.mxu0 0.0
        %1507 = vmatprep.subr.mxu0 0.0
        %1508 = vmatpush1.xpose.msra.mxu0 0.0
        %1509 = vmatprep.subr.mxu0 0.0
        %1510 = vmatpush1.xpose.msra.mxu0 0.0
        %1511 = vmatprep.subr.mxu0 0.0
        %1512 = vmatpush1.xpose.msra.mxu0 0.0
        %1513 = vmatprep.subr.mxu0 0.0
        %1514 = vmatpush1.xpose.msra.mxu0 0.0
        %1515 = vmatprep.subr.mxu0 0.0
        %1516 = vmatpush1.xpose.msra.mxu0 0.0
        %1517 = vmatprep.subr.mxu0 0.0
        %1518 = vmatpush1.xpose.msra.mxu0 0.0
        %1519 = vmatprep.subr.mxu0 0.0
        %1520 = vmatpush1.xpose.msra.mxu0 0.0
        %1521 = vmatprep.subr.mxu0 0.0
        %1522 = vmatpush1.xpose.msra.mxu0 0.0
        %1523 = vmatprep.subr.mxu0 0.0
        %1524 = vmatpush1.xpose.msra.mxu0 0.0
        %1525 = vmatprep.subr.mxu0 0.0
        %1526 = vmatpush1.xpose.msra.mxu0 0.0
        %1527 = vmatprep.subr.mxu0 0.0
        %1528 = vmatpush1.xpose.msra.mxu0 0.0
        %1529 = vmatprep.subr.mxu0 0.0
        %1530 = vmatpush1.xpose.msra.mxu0 0.0
        %1531 = vmatprep.subr.mxu0 0.0
        %1532 = vmatpush1.xpose.msra.mxu0 0.0
        %1533 = vmatprep.mubr.f32.mxu0 0.0
        %1534 = vmatmul.mubr.f32.gmra.mrb[0].mxu0 %v1464
        %v1535 = vpop.f32.mrb[0].mxu0
        %v1536 = vadd.f32 0.0, %v1535
        %v1537 = vpop.f32.mrb[0].mxu0
        %1538 = vdwg.mxu0
        %s1539 = scalar_lea.vmem [#allocation3], 16
        %v1540 = vld [vmem:[%s1539] sm:$0xff]
        %v1541 = vsel %vm790, %v1536, -inf
        %1542 = vmax.xlane.f32.xlu0 %v1541
        %v1543 = vpop.xlane.xlu0 %1542
        %v1544 = vmax.f32 %v1540, %v1543
        %v1545 = vsub.f32 %v1540, %v1544
        %v1546 = vmul.f32 %v1545, 1.442695
        %v1547 = vpow.pop %v1546
        %1549 = vset.pattern.permute.xlu0 0
        %1550 = vperm.xlu0 %1549, %v1544
        %v1551 = vpop.permute.xlu0 %1550
        %v1553 = vsub.f32 %v1536, %v1551
        %v1554 = vmul.f32 %v1553, 1.442695
        %v1555 = vpow.pop %v1554
        %s1556 = scalar_lea.vmem [#allocation4], 16
        %v1557 = vld [vmem:[%s1556] sm:$0xff]
        %v1558 = vmul.f32 %v1547, %v1557
        %v1559 = vsel %vm790, %v1555, 0.0
        %1560 = vadd.xlane.f32.xlu0 %v1559
        %v1561 = vpop.xlane.xlu0 %1560
        %v1562 = vadd.f32 %v1558, %v1561
        %1563 = vst.msk [vmem:[%s1556] sm:$0xff] %vm889, %v1562
        %s1564 = scalar_lea.vmem [#allocation5], 16
        %v1565 = vld [vmem:[%s1564] sm:$0xff]
        %1567 = vset.pattern.permute.xlu0 0
        %1568 = vperm.xlu0 %1567, %v1547
        %v1569 = vpop.permute.xlu0 %1568
        %v1571 = vmul.f32 %v1569, %v1565
        %v1573 = vsel %vm790, %v1555, 0
        %1575 = vmatprep.subr.mxu0 0.0
        %1576 = vmatpush1.msra.mxu0 %v1458
        %1577 = vmatprep.subr.mxu0 0.0
        %1578 = vmatpush1.msra.mxu0 0.0
        %1579 = vmatprep.subr.mxu0 0.0
        %1580 = vmatpush1.msra.mxu0 0.0
        %1581 = vmatprep.subr.mxu0 0.0
        %1582 = vmatpush1.msra.mxu0 0.0
        %1583 = vmatprep.subr.mxu0 0.0
        %1584 = vmatpush1.msra.mxu0 0.0
        %1585 = vmatprep.subr.mxu0 0.0
        %1586 = vmatpush1.msra.mxu0 0.0
        %1587 = vmatprep.subr.mxu0 0.0
        %1588 = vmatpush1.msra.mxu0 0.0
        %1589 = vmatprep.subr.mxu0 0.0
        %1590 = vmatpush1.msra.mxu0 0.0
        %1591 = vmatprep.subr.mxu0 0.0
        %1592 = vmatpush1.msra.mxu0 0.0
        %1593 = vmatprep.subr.mxu0 0.0
        %1594 = vmatpush1.msra.mxu0 0.0
        %1595 = vmatprep.subr.mxu0 0.0
        %1596 = vmatpush1.msra.mxu0 0.0
        %1597 = vmatprep.subr.mxu0 0.0
        %1598 = vmatpush1.msra.mxu0 0.0
        %1599 = vmatprep.subr.mxu0 0.0
        %1600 = vmatpush1.msra.mxu0 0.0
        %1601 = vmatprep.subr.mxu0 0.0
        %1602 = vmatpush1.msra.mxu0 0.0
        %1603 = vmatprep.subr.mxu0 0.0
        %1604 = vmatpush1.msra.mxu0 0.0
        %1605 = vmatprep.subr.mxu0 0.0
        %1606 = vmatpush1.msra.mxu0 0.0
        %1607 = vmatprep.subr.mxu0 0.0
        %1608 = vmatpush1.msra.mxu0 0.0
        %1609 = vmatprep.subr.mxu0 0.0
        %1610 = vmatpush1.msra.mxu0 0.0
        %1611 = vmatprep.subr.mxu0 0.0
        %1612 = vmatpush1.msra.mxu0 0.0
        %1613 = vmatprep.subr.mxu0 0.0
        %1614 = vmatpush1.msra.mxu0 0.0
        %1615 = vmatprep.subr.mxu0 0.0
        %1616 = vmatpush1.msra.mxu0 0.0
        %1617 = vmatprep.subr.mxu0 0.0
        %1618 = vmatpush1.msra.mxu0 0.0
        %1619 = vmatprep.subr.mxu0 0.0
        %1620 = vmatpush1.msra.mxu0 0.0
        %1621 = vmatprep.subr.mxu0 0.0
        %1622 = vmatpush1.msra.mxu0 0.0
        %1623 = vmatprep.subr.mxu0 0.0
        %1624 = vmatpush1.msra.mxu0 0.0
        %1625 = vmatprep.subr.mxu0 0.0
        %1626 = vmatpush1.msra.mxu0 0.0
        %1627 = vmatprep.subr.mxu0 0.0
        %1628 = vmatpush1.msra.mxu0 0.0
        %1629 = vmatprep.subr.mxu0 0.0
        %1630 = vmatpush1.msra.mxu0 0.0
        %1631 = vmatprep.subr.mxu0 0.0
        %1632 = vmatpush1.msra.mxu0 0.0
        %1633 = vmatprep.subr.mxu0 0.0
        %1634 = vmatpush1.msra.mxu0 0.0
        %1635 = vmatprep.subr.mxu0 0.0
        %1636 = vmatpush1.msra.mxu0 0.0
        %1637 = vmatprep.subr.mxu0 0.0
        %1638 = vmatpush1.msra.mxu0 0.0
        %1639 = vmatprep.mubr.f32.mxu0 0.0
        %1640 = vmatmul.mubr.f32.gmra.mrb[0].mxu0 %v1573
        %v1641 = vpop.f32.mrb[0].mxu0
        %v1642 = vadd.f32 0.0, %v1641
        %v1643 = vpop.f32.mrb[0].mxu0
        %1644 = vdwg.mxu0
        %v1645 = vadd.f32 %v1571, %v1642
        %1646 = vst.msk [vmem:[%s1564] sm:$0xff] %vm790, %v1645
        %1647 = vst.msk [vmem:[%s1539] sm:$0xff] %vm889, %v1544
        %s1648 = scalar_lea.vmem %s3, 96
        %v1649 = vld [vmem:[%s1648] sm:$0xff]
        %v1650 = vld [vmem:[%s1648 + $0x8] sm:$0xff]
        %v1651 = vld [vmem:[%s1648 + $0x10] sm:$0xff]
        %v1652 = vld [vmem:[%s1648 + $0x18] sm:$0xff]
        %1653 = vmatprep.subr.mxu0 0.0
        %1654 = vmatpush1.msra.mxu0 %v1649
        %1655 = vmatprep.subr.mxu0 0.0
        %1656 = vmatpush1.msra.mxu0 %v1650
        %1657 = vmatprep.subr.mxu0 0.0
        %1658 = vmatpush1.msra.mxu0 %v1651
        %1659 = vmatprep.subr.mxu0 0.0
        %1660 = vmatpush1.msra.mxu0 %v1652
        %1661 = vmatprep.subr.mxu0 0.0
        %1662 = vmatpush1.msra.mxu0 0.0
        %1663 = vmatprep.subr.mxu0 0.0
        %1664 = vmatpush1.msra.mxu0 0.0
        %1665 = vmatprep.subr.mxu0 0.0
        %1666 = vmatpush1.msra.mxu0 0.0
        %1667 = vmatprep.subr.mxu0 0.0
        %1668 = vmatpush1.msra.mxu0 0.0
        %1669 = vmatprep.subr.mxu0 0.0
        %1670 = vmatpush1.msra.mxu0 0.0
        %1671 = vmatprep.subr.mxu0 0.0
        %1672 = vmatpush1.msra.mxu0 0.0
        %1673 = vmatprep.subr.mxu0 0.0
        %1674 = vmatpush1.msra.mxu0 0.0
        %1675 = vmatprep.subr.mxu0 0.0
        %1676 = vmatpush1.msra.mxu0 0.0
        %1677 = vmatprep.subr.mxu0 0.0
        %1678 = vmatpush1.msra.mxu0 0.0
        %1679 = vmatprep.subr.mxu0 0.0
        %1680 = vmatpush1.msra.mxu0 0.0
        %1681 = vmatprep.subr.mxu0 0.0
        %1682 = vmatpush1.msra.mxu0 0.0
        %1683 = vmatprep.subr.mxu0 0.0
        %1684 = vmatpush1.msra.mxu0 0.0
        %1685 = vmatprep.subr.mxu0 0.0
        %1686 = vmatpush1.msra.mxu0 0.0
        %1687 = vmatprep.subr.mxu0 0.0
        %1688 = vmatpush1.msra.mxu0 0.0
        %1689 = vmatprep.subr.mxu0 0.0
        %1690 = vmatpush1.msra.mxu0 0.0
        %1691 = vmatprep.subr.mxu0 0.0
        %1692 = vmatpush1.msra.mxu0 0.0
        %1693 = vmatprep.subr.mxu0 0.0
        %1694 = vmatpush1.msra.mxu0 0.0
        %1695 = vmatprep.subr.mxu0 0.0
        %1696 = vmatpush1.msra.mxu0 0.0
        %1697 = vmatprep.subr.mxu0 0.0
        %1698 = vmatpush1.msra.mxu0 0.0
        %1699 = vmatprep.subr.mxu0 0.0
        %1700 = vmatpush1.msra.mxu0 0.0
        %1701 = vmatprep.subr.mxu0 0.0
        %1702 = vmatpush1.msra.mxu0 0.0
        %1703 = vmatprep.subr.mxu0 0.0
        %1704 = vmatpush1.msra.mxu0 0.0
        %1705 = vmatprep.subr.mxu0 0.0
        %1706 = vmatpush1.msra.mxu0 0.0
        %1707 = vmatprep.subr.mxu0 0.0
        %1708 = vmatpush1.msra.mxu0 0.0
        %1709 = vmatprep.subr.mxu0 0.0
        %1710 = vmatpush1.msra.mxu0 0.0
        %1711 = vmatprep.subr.mxu0 0.0
        %1712 = vmatpush1.msra.mxu0 0.0
        %1713 = vmatprep.subr.mxu0 0.0
        %1714 = vmatpush1.msra.mxu0 0.0
        %1715 = vmatprep.subr.mxu0 0.0
        %1716 = vmatpush1.msra.mxu0 0.0
        %1717 = vmatprep.mubr.f32.mxu0 0.0
        %1718 = vmatmul.mubr.f32.gmra.mrb[0].mxu0 %v643
        %v1719 = vpop.f32.mrb[0].mxu0
        %v1720 = vadd.f32 0.0, %v1719
        %v1721 = vpop.f32.mrb[0].mxu0
        %1722 = vdwg.mxu0
        %s1723 = scalar_lea.vmem %s4, 96
        %v1724 = vld [vmem:[%s1723] sm:$0xff]
        %v1725 = vld [vmem:[%s1723 + $0x8] sm:$0xff]
        %v1726 = vld [vmem:[%s1723 + $0x10] sm:$0xff]
        %v1727 = vld [vmem:[%s1723 + $0x18] sm:$0xff]
        %1728 = vmatprep.subr.mxu0 0.0
        %1729 = vmatpush1.msra.mxu0 %v1724
        %1730 = vmatprep.subr.mxu0 0.0
        %1731 = vmatpush1.msra.mxu0 %v1725
        %1732 = vmatprep.subr.mxu0 0.0
        %1733 = vmatpush1.msra.mxu0 %v1726
        %1734 = vmatprep.subr.mxu0 0.0
        %1735 = vmatpush1.msra.mxu0 %v1727
        %1736 = vmatprep.subr.mxu0 0.0
        %1737 = vmatpush1.msra.mxu0 0.0
        %1738 = vmatprep.subr.mxu0 0.0
        %1739 = vmatpush1.msra.mxu0 0.0
        %1740 = vmatprep.subr.mxu0 0.0
        %1741 = vmatpush1.msra.mxu0 0.0
        %1742 = vmatprep.subr.mxu0 0.0
        %1743 = vmatpush1.msra.mxu0 0.0
        %1744 = vmatprep.subr.mxu0 0.0
        %1745 = vmatpush1.msra.mxu0 0.0
        %1746 = vmatprep.subr.mxu0 0.0
        %1747 = vmatpush1.msra.mxu0 0.0
        %1748 = vmatprep.subr.mxu0 0.0
        %1749 = vmatpush1.msra.mxu0 0.0
        %1750 = vmatprep.subr.mxu0 0.0
        %1751 = vmatpush1.msra.mxu0 0.0
        %1752 = vmatprep.subr.mxu0 0.0
        %1753 = vmatpush1.msra.mxu0 0.0
        %1754 = vmatprep.subr.mxu0 0.0
        %1755 = vmatpush1.msra.mxu0 0.0
        %1756 = vmatprep.subr.mxu0 0.0
        %1757 = vmatpush1.msra.mxu0 0.0
        %1758 = vmatprep.subr.mxu0 0.0
        %1759 = vmatpush1.msra.mxu0 0.0
        %1760 = vmatprep.subr.mxu0 0.0
        %1761 = vmatpush1.msra.mxu0 0.0
        %1762 = vmatprep.subr.mxu0 0.0
        %1763 = vmatpush1.msra.mxu0 0.0
        %1764 = vmatprep.subr.mxu0 0.0
        %1765 = vmatpush1.msra.mxu0 0.0
        %1766 = vmatprep.subr.mxu0 0.0
        %1767 = vmatpush1.msra.mxu0 0.0
        %1768 = vmatprep.subr.mxu0 0.0
        %1769 = vmatpush1.msra.mxu0 0.0
        %1770 = vmatprep.subr.mxu0 0.0
        %1771 = vmatpush1.msra.mxu0 0.0
        %1772 = vmatprep.subr.mxu0 0.0
        %1773 = vmatpush1.msra.mxu0 0.0
        %1774 = vmatprep.subr.mxu0 0.0
        %1775 = vmatpush1.msra.mxu0 0.0
        %1776 = vmatprep.subr.mxu0 0.0
        %1777 = vmatpush1.msra.mxu0 0.0
        %1778 = vmatprep.subr.mxu0 0.0
        %1779 = vmatpush1.msra.mxu0 0.0
        %1780 = vmatprep.subr.mxu0 0.0
        %1781 = vmatpush1.msra.mxu0 0.0
        %1782 = vmatprep.subr.mxu0 0.0
        %1783 = vmatpush1.msra.mxu0 0.0
        %1784 = vmatprep.subr.mxu0 0.0
        %1785 = vmatpush1.msra.mxu0 0.0
        %1786 = vmatprep.subr.mxu0 0.0
        %1787 = vmatpush1.msra.mxu0 0.0
        %1788 = vmatprep.subr.mxu0 0.0
        %1789 = vmatpush1.msra.mxu0 0.0
        %1790 = vmatprep.subr.mxu0 0.0
        %1791 = vmatpush1.msra.mxu0 0.0
        %1792 = vmatprep.mubr.f32.mxu0 0.0
        %1793 = vmatmul.mubr.f32.gmra.mrb[0].mxu0 %v643
        %v1794 = vpop.f32.mrb[0].mxu0
        %v1795 = vadd.f32 0.0, %v1794
        %v1796 = vpop.f32.mrb[0].mxu0
        %1797 = vdwg.mxu0
        %s1798 = scalar_lea.vmem [#allocation2], 24
        %v1799 = vld [vmem:[%s1798] sm:$0xff]
        %v1801 = vsel %vm790, %v1799, 0
        %v1804 = vsel %vm790, %v1720, 0
        %1806 = vmatprep.subr.mxu0 0.0
        %1807 = vmatpush1.xpose.msra.mxu0 %v1804
        %1808 = vmatprep.subr.mxu0 0.0
        %1809 = vmatpush1.xpose.msra.mxu0 0.0
        %1810 = vmatprep.subr.mxu0 0.0
        %1811 = vmatpush1.xpose.msra.mxu0 0.0
        %1812 = vmatprep.subr.mxu0 0.0
        %1813 = vmatpush1.xpose.msra.mxu0 0.0
        %1814 = vmatprep.subr.mxu0 0.0
        %1815 = vmatpush1.xpose.msra.mxu0 0.0
        %1816 = vmatprep.subr.mxu0 0.0
        %1817 = vmatpush1.xpose.msra.mxu0 0.0
        %1818 = vmatprep.subr.mxu0 0.0
        %1819 = vmatpush1.xpose.msra.mxu0 0.0
        %1820 = vmatprep.subr.mxu0 0.0
        %1821 = vmatpush1.xpose.msra.mxu0 0.0
        %1822 = vmatprep.subr.mxu0 0.0
        %1823 = vmatpush1.xpose.msra.mxu0 0.0
        %1824 = vmatprep.subr.mxu0 0.0
        %1825 = vmatpush1.xpose.msra.mxu0 0.0
        %1826 = vmatprep.subr.mxu0 0.0
        %1827 = vmatpush1.xpose.msra.mxu0 0.0
        %1828 = vmatprep.subr.mxu0 0.0
        %1829 = vmatpush1.xpose.msra.mxu0 0.0
        %1830 = vmatprep.subr.mxu0 0.0
        %1831 = vmatpush1.xpose.msra.mxu0 0.0
        %1832 = vmatprep.subr.mxu0 0.0
        %1833 = vmatpush1.xpose.msra.mxu0 0.0
        %1834 = vmatprep.subr.mxu0 0.0
        %1835 = vmatpush1.xpose.msra.mxu0 0.0
        %1836 = vmatprep.subr.mxu0 0.0
        %1837 = vmatpush1.xpose.msra.mxu0 0.0
        %1838 = vmatprep.subr.mxu0 0.0
        %1839 = vmatpush1.xpose.msra.mxu0 0.0
        %1840 = vmatprep.subr.mxu0 0.0
        %1841 = vmatpush1.xpose.msra.mxu0 0.0
        %1842 = vmatprep.subr.mxu0 0.0
        %1843 = vmatpush1.xpose.msra.mxu0 0.0
        %1844 = vmatprep.subr.mxu0 0.0
        %1845 = vmatpush1.xpose.msra.mxu0 0.0
        %1846 = vmatprep.subr.mxu0 0.0
        %1847 = vmatpush1.xpose.msra.mxu0 0.0
        %1848 = vmatprep.subr.mxu0 0.0
        %1849 = vmatpush1.xpose.msra.mxu0 0.0
        %1850 = vmatprep.subr.mxu0 0.0
        %1851 = vmatpush1.xpose.msra.mxu0 0.0
        %1852 = vmatprep.subr.mxu0 0.0
        %1853 = vmatpush1.xpose.msra.mxu0 0.0
        %1854 = vmatprep.subr.mxu0 0.0
        %1855 = vmatpush1.xpose.msra.mxu0 0.0
        %1856 = vmatprep.subr.mxu0 0.0
        %1857 = vmatpush1.xpose.msra.mxu0 0.0
        %1858 = vmatprep.subr.mxu0 0.0
        %1859 = vmatpush1.xpose.msra.mxu0 0.0
        %1860 = vmatprep.subr.mxu0 0.0
        %1861 = vmatpush1.xpose.msra.mxu0 0.0
        %1862 = vmatprep.subr.mxu0 0.0
        %1863 = vmatpush1.xpose.msra.mxu0 0.0
        %1864 = vmatprep.subr.mxu0 0.0
        %1865 = vmatpush1.xpose.msra.mxu0 0.0
        %1866 = vmatprep.subr.mxu0 0.0
        %1867 = vmatpush1.xpose.msra.mxu0 0.0
        %1868 = vmatprep.subr.mxu0 0.0
        %1869 = vmatpush1.xpose.msra.mxu0 0.0
        %1870 = vmatprep.mubr.f32.mxu0 0.0
        %1871 = vmatmul.mubr.f32.gmra.mrb[0].mxu0 %v1801
        %v1872 = vpop.f32.mrb[0].mxu0
        %v1873 = vadd.f32 0.0, %v1872
        %v1874 = vpop.f32.mrb[0].mxu0
        %1875 = vdwg.mxu0
        %s1876 = scalar_lea.vmem [#allocation3], 24
        %v1877 = vld [vmem:[%s1876] sm:$0xff]
        %v1878 = vsel %vm790, %v1873, -inf
        %1879 = vmax.xlane.f32.xlu0 %v1878
        %v1880 = vpop.xlane.xlu0 %1879
        %v1881 = vmax.f32 %v1877, %v1880
        %v1882 = vsub.f32 %v1877, %v1881
        %v1883 = vmul.f32 %v1882, 1.442695
        %v1884 = vpow.pop %v1883
        %1886 = vset.pattern.permute.xlu0 0
        %1887 = vperm.xlu0 %1886, %v1881
        %v1888 = vpop.permute.xlu0 %1887
        %v1890 = vsub.f32 %v1873, %v1888
        %v1891 = vmul.f32 %v1890, 1.442695
        %v1892 = vpow.pop %v1891
        %s1893 = scalar_lea.vmem [#allocation4], 24
        %v1894 = vld [vmem:[%s1893] sm:$0xff]
        %v1895 = vmul.f32 %v1884, %v1894
        %v1896 = vsel %vm790, %v1892, 0.0
        %1897 = vadd.xlane.f32.xlu0 %v1896
        %v1898 = vpop.xlane.xlu0 %1897
        %v1899 = vadd.f32 %v1895, %v1898
        %1900 = vst.msk [vmem:[%s1893] sm:$0xff] %vm889, %v1899
        %s1901 = scalar_lea.vmem [#allocation5], 24
        %v1902 = vld [vmem:[%s1901] sm:$0xff]
        %1904 = vset.pattern.permute.xlu0 0
        %1905 = vperm.xlu0 %1904, %v1884
        %v1906 = vpop.permute.xlu0 %1905
        %v1908 = vmul.f32 %v1906, %v1902
        %v1910 = vsel %vm790, %v1892, 0
        %1912 = vmatprep.subr.mxu0 0.0
        %1913 = vmatpush1.msra.mxu0 %v1795
        %1914 = vmatprep.subr.mxu0 0.0
        %1915 = vmatpush1.msra.mxu0 0.0
        %1916 = vmatprep.subr.mxu0 0.0
        %1917 = vmatpush1.msra.mxu0 0.0
        %1918 = vmatprep.subr.mxu0 0.0
        %1919 = vmatpush1.msra.mxu0 0.0
        %1920 = vmatprep.subr.mxu0 0.0
        %1921 = vmatpush1.msra.mxu0 0.0
        %1922 = vmatprep.subr.mxu0 0.0
        %1923 = vmatpush1.msra.mxu0 0.0
        %1924 = vmatprep.subr.mxu0 0.0
        %1925 = vmatpush1.msra.mxu0 0.0
        %1926 = vmatprep.subr.mxu0 0.0
        %1927 = vmatpush1.msra.mxu0 0.0
        %1928 = vmatprep.subr.mxu0 0.0
        %1929 = vmatpush1.msra.mxu0 0.0
        %1930 = vmatprep.subr.mxu0 0.0
        %1931 = vmatpush1.msra.mxu0 0.0
        %1932 = vmatprep.subr.mxu0 0.0
        %1933 = vmatpush1.msra.mxu0 0.0
        %1934 = vmatprep.subr.mxu0 0.0
        %1935 = vmatpush1.msra.mxu0 0.0
        %1936 = vmatprep.subr.mxu0 0.0
        %1937 = vmatpush1.msra.mxu0 0.0
        %1938 = vmatprep.subr.mxu0 0.0
        %1939 = vmatpush1.msra.mxu0 0.0
        %1940 = vmatprep.subr.mxu0 0.0
        %1941 = vmatpush1.msra.mxu0 0.0
        %1942 = vmatprep.subr.mxu0 0.0
        %1943 = vmatpush1.msra.mxu0 0.0
        %1944 = vmatprep.subr.mxu0 0.0
        %1945 = vmatpush1.msra.mxu0 0.0
        %1946 = vmatprep.subr.mxu0 0.0
        %1947 = vmatpush1.msra.mxu0 0.0
        %1948 = vmatprep.subr.mxu0 0.0
        %1949 = vmatpush1.msra.mxu0 0.0
        %1950 = vmatprep.subr.mxu0 0.0
        %1951 = vmatpush1.msra.mxu0 0.0
        %1952 = vmatprep.subr.mxu0 0.0
        %1953 = vmatpush1.msra.mxu0 0.0
        %1954 = vmatprep.subr.mxu0 0.0
        %1955 = vmatpush1.msra.mxu0 0.0
        %1956 = vmatprep.subr.mxu0 0.0
        %1957 = vmatpush1.msra.mxu0 0.0
        %1958 = vmatprep.subr.mxu0 0.0
        %1959 = vmatpush1.msra.mxu0 0.0
        %1960 = vmatprep.subr.mxu0 0.0
        %1961 = vmatpush1.msra.mxu0 0.0
        %1962 = vmatprep.subr.mxu0 0.0
        %1963 = vmatpush1.msra.mxu0 0.0
        %1964 = vmatprep.subr.mxu0 0.0
        %1965 = vmatpush1.msra.mxu0 0.0
        %1966 = vmatprep.subr.mxu0 0.0
        %1967 = vmatpush1.msra.mxu0 0.0
        %1968 = vmatprep.subr.mxu0 0.0
        %1969 = vmatpush1.msra.mxu0 0.0
        %1970 = vmatprep.subr.mxu0 0.0
        %1971 = vmatpush1.msra.mxu0 0.0
        %1972 = vmatprep.subr.mxu0 0.0
        %1973 = vmatpush1.msra.mxu0 0.0
        %1974 = vmatprep.subr.mxu0 0.0
        %1975 = vmatpush1.msra.mxu0 0.0
        %1976 = vmatprep.mubr.f32.mxu0 0.0
        %1977 = vmatmul.mubr.f32.gmra.mrb[0].mxu0 %v1910
        %v1978 = vpop.f32.mrb[0].mxu0
        %v1979 = vadd.f32 0.0, %v1978
        %v1980 = vpop.f32.mrb[0].mxu0
        %1981 = vdwg.mxu0
        %v1982 = vadd.f32 %v1908, %v1979
        %1983 = vst.msk [vmem:[%s1901] sm:$0xff] %vm790, %v1982
        %1984 = vst.msk [vmem:[%s1876] sm:$0xff] %vm889, %v1881
        // Predicated region
        $region49: #{tpu_custom_call.1} parent=43 // pred_check
          %p1985 = pneg %p307
        $region50: #{tpu_custom_call.1} parent=43 // pred_check_branch
          %1987 = sbr.rel (%p1985) target = $region52
        $region51: #{tpu_custom_call.1} parent=43 // pred_region
          %v1988 = vld [vmem:[#allocation4] sm:$0xff]
          %v1989 = vrcp.pop %v1988
          %v1990 = vld [vmem:[#allocation5] sm:$0xff]
          %1992 = vset.pattern.permute.xlu0 0
          %1993 = vperm.xlu0 %1992, %v1989
          %v1994 = vpop.permute.xlu0 %1993
          %v1996 = vmul.f32 %v1990, %v1994
          %v1997 = vld [vmem:[%s5] sm:$0xff]
          %v1998 = vld [vmem:[%s1219] sm:$0xff]
          %v1999 = vrcp.pop %v1998
          %v2000 = vld [vmem:[%s1227] sm:$0xff]
          %2002 = vset.pattern.permute.xlu0 0
          %2003 = vperm.xlu0 %2002, %v1999
          %v2004 = vpop.permute.xlu0 %2003
          %v2006 = vmul.f32 %v2000, %v2004
          %s2007 = scalar_lea.vmem %s5, 8
          %v2008 = vld [vmem:[%s2007] sm:$0xff]
          %v2010 = vsel %vm790, %v2006, 0
          %2012 = vmatprep.subr.mxu0 0.0
          %2013 = vmatpush1.msra.mxu0 %v2008
          %2014 = vmatprep.subr.mxu0 0.0
          %2015 = vmatpush1.msra.mxu0 0.0
          %2016 = vmatprep.subr.mxu0 0.0
          %2017 = vmatpush1.msra.mxu0 0.0
          %2018 = vmatprep.subr.mxu0 0.0
          %2019 = vmatpush1.msra.mxu0 0.0
          %2020 = vmatprep.subr.mxu0 0.0
          %2021 = vmatpush1.msra.mxu0 0.0
          %2022 = vmatprep.subr.mxu0 0.0
          %2023 = vmatpush1.msra.mxu0 0.0
          %2024 = vmatprep.subr.mxu0 0.0
          %2025 = vmatpush1.msra.mxu0 0.0
          %2026 = vmatprep.subr.mxu0 0.0
          %2027 = vmatpush1.msra.mxu0 0.0
          %2028 = vmatprep.subr.mxu0 0.0
          %2029 = vmatpush1.msra.mxu0 0.0
          %2030 = vmatprep.subr.mxu0 0.0
          %2031 = vmatpush1.msra.mxu0 0.0
          %2032 = vmatprep.subr.mxu0 0.0
          %2033 = vmatpush1.msra.mxu0 0.0
          %2034 = vmatprep.subr.mxu0 0.0
          %2035 = vmatpush1.msra.mxu0 0.0
          %2036 = vmatprep.subr.mxu0 0.0
          %2037 = vmatpush1.msra.mxu0 0.0
          %2038 = vmatprep.subr.mxu0 0.0
          %2039 = vmatpush1.msra.mxu0 0.0
          %2040 = vmatprep.subr.mxu0 0.0
          %2041 = vmatpush1.msra.mxu0 0.0
          %2042 = vmatprep.subr.mxu0 0.0
          %2043 = vmatpush1.msra.mxu0 0.0
          %2044 = vmatprep.subr.mxu0 0.0
          %2045 = vmatpush1.msra.mxu0 0.0
          %2046 = vmatprep.subr.mxu0 0.0
          %2047 = vmatpush1.msra.mxu0 0.0
          %2048 = vmatprep.subr.mxu0 0.0
          %2049 = vmatpush1.msra.mxu0 0.0
          %2050 = vmatprep.subr.mxu0 0.0
          %2051 = vmatpush1.msra.mxu0 0.0
          %2052 = vmatprep.subr.mxu0 0.0
          %2053 = vmatpush1.msra.mxu0 0.0
          %2054 = vmatprep.subr.mxu0 0.0
          %2055 = vmatpush1.msra.mxu0 0.0
          %2056 = vmatprep.subr.mxu0 0.0
          %2057 = vmatpush1.msra.mxu0 0.0
          %2058 = vmatprep.subr.mxu0 0.0
          %2059 = vmatpush1.msra.mxu0 0.0
          %2060 = vmatprep.subr.mxu0 0.0
          %2061 = vmatpush1.msra.mxu0 0.0
          %2062 = vmatprep.subr.mxu0 0.0
          %2063 = vmatpush1.msra.mxu0 0.0
          %2064 = vmatprep.subr.mxu0 0.0
          %2065 = vmatpush1.msra.mxu0 0.0
          %2066 = vmatprep.subr.mxu0 0.0
          %2067 = vmatpush1.msra.mxu0 0.0
          %2068 = vmatprep.subr.mxu0 0.0
          %2069 = vmatpush1.msra.mxu0 0.0
          %2070 = vmatprep.subr.mxu0 0.0
          %2071 = vmatpush1.msra.mxu0 0.0
          %2072 = vmatprep.subr.mxu0 0.0
          %2073 = vmatpush1.msra.mxu0 0.0
          %2074 = vmatprep.subr.mxu0 0.0
          %2075 = vmatpush1.msra.mxu0 0.0
          %2076 = vmatprep.mubr.f32.mxu0 0.0
          %2077 = vmatmul.mubr.f32.gmra.mrb[0].mxu0 %v2010
          %v2078 = vpop.f32.mrb[0].mxu0
          %v2079 = vadd.f32 0.0, %v2078
          %v2080 = vpop.f32.mrb[0].mxu0
          %2081 = vdwg.mxu0
          %v2083 = vsel %vm790, %v1996, 0
          %2085 = vmatprep.subr.mxu0 0.0
          %2086 = vmatpush1.msra.mxu0 %v1997
          %2087 = vmatprep.subr.mxu0 0.0
          %2088 = vmatpush1.msra.mxu0 0.0
          %2089 = vmatprep.subr.mxu0 0.0
          %2090 = vmatpush1.msra.mxu0 0.0
          %2091 = vmatprep.subr.mxu0 0.0
          %2092 = vmatpush1.msra.mxu0 0.0
          %2093 = vmatprep.subr.mxu0 0.0
          %2094 = vmatpush1.msra.mxu0 0.0
          %2095 = vmatprep.subr.mxu0 0.0
          %2096 = vmatpush1.msra.mxu0 0.0
          %2097 = vmatprep.subr.mxu0 0.0
          %2098 = vmatpush1.msra.mxu0 0.0
          %2099 = vmatprep.subr.mxu0 0.0
          %2100 = vmatpush1.msra.mxu0 0.0
          %2101 = vmatprep.subr.mxu0 0.0
          %2102 = vmatpush1.msra.mxu0 0.0
          %2103 = vmatprep.subr.mxu0 0.0
          %2104 = vmatpush1.msra.mxu0 0.0
          %2105 = vmatprep.subr.mxu0 0.0
          %2106 = vmatpush1.msra.mxu0 0.0
          %2107 = vmatprep.subr.mxu0 0.0
          %2108 = vmatpush1.msra.mxu0 0.0
          %2109 = vmatprep.subr.mxu0 0.0
          %2110 = vmatpush1.msra.mxu0 0.0
          %2111 = vmatprep.subr.mxu0 0.0
          %2112 = vmatpush1.msra.mxu0 0.0
          %2113 = vmatprep.subr.mxu0 0.0
          %2114 = vmatpush1.msra.mxu0 0.0
          %2115 = vmatprep.subr.mxu0 0.0
          %2116 = vmatpush1.msra.mxu0 0.0
          %2117 = vmatprep.subr.mxu0 0.0
          %2118 = vmatpush1.msra.mxu0 0.0
          %2119 = vmatprep.subr.mxu0 0.0
          %2120 = vmatpush1.msra.mxu0 0.0
          %2121 = vmatprep.subr.mxu0 0.0
          %2122 = vmatpush1.msra.mxu0 0.0
          %2123 = vmatprep.subr.mxu0 0.0
          %2124 = vmatpush1.msra.mxu0 0.0
          %2125 = vmatprep.subr.mxu0 0.0
          %2126 = vmatpush1.msra.mxu0 0.0
          %2127 = vmatprep.subr.mxu0 0.0
          %2128 = vmatpush1.msra.mxu0 0.0
          %2129 = vmatprep.subr.mxu0 0.0
          %2130 = vmatpush1.msra.mxu0 0.0
          %2131 = vmatprep.subr.mxu0 0.0
          %2132 = vmatpush1.msra.mxu0 0.0
          %2133 = vmatprep.subr.mxu0 0.0
          %2134 = vmatpush1.msra.mxu0 0.0
          %2135 = vmatprep.subr.mxu0 0.0
          %2136 = vmatpush1.msra.mxu0 0.0
          %2137 = vmatprep.subr.mxu0 0.0
          %2138 = vmatpush1.msra.mxu0 0.0
          %2139 = vmatprep.subr.mxu0 0.0
          %2140 = vmatpush1.msra.mxu0 0.0
          %2141 = vmatprep.subr.mxu0 0.0
          %2142 = vmatpush1.msra.mxu0 0.0
          %2143 = vmatprep.subr.mxu0 0.0
          %2144 = vmatpush1.msra.mxu0 0.0
          %2145 = vmatprep.subr.mxu0 0.0
          %2146 = vmatpush1.msra.mxu0 0.0
          %2147 = vmatprep.subr.mxu0 0.0
          %2148 = vmatpush1.msra.mxu0 0.0
          %2149 = vmatprep.mubr.f32.mxu0 0.0
          %2150 = vmatmul.mubr.f32.gmra.mrb[0].mxu0 %v2083
          %v2151 = vpop.f32.mrb[0].mxu0
          %v2152 = vadd.f32 %v2079, %v2151
          %v2153 = vpop.f32.mrb[0].mxu0
          %2154 = vdwg.mxu0
          %v2155 = vld [vmem:[%s1556] sm:$0xff]
          %v2156 = vrcp.pop %v2155
          %v2157 = vld [vmem:[%s1564] sm:$0xff]
          %2159 = vset.pattern.permute.xlu0 0
          %2160 = vperm.xlu0 %2159, %v2156
          %v2161 = vpop.permute.xlu0 %2160
          %v2163 = vmul.f32 %v2157, %v2161
          %s2164 = scalar_lea.vmem %s5, 16
          %v2165 = vld [vmem:[%s2164] sm:$0xff]
          %v2167 = vsel %vm790, %v2163, 0
          %2169 = vmatprep.subr.mxu0 0.0
          %2170 = vmatpush1.msra.mxu0 %v2165
          %2171 = vmatprep.subr.mxu0 0.0
          %2172 = vmatpush1.msra.mxu0 0.0
          %2173 = vmatprep.subr.mxu0 0.0
          %2174 = vmatpush1.msra.mxu0 0.0
          %2175 = vmatprep.subr.mxu0 0.0
          %2176 = vmatpush1.msra.mxu0 0.0
          %2177 = vmatprep.subr.mxu0 0.0
          %2178 = vmatpush1.msra.mxu0 0.0
          %2179 = vmatprep.subr.mxu0 0.0
          %2180 = vmatpush1.msra.mxu0 0.0
          %2181 = vmatprep.subr.mxu0 0.0
          %2182 = vmatpush1.msra.mxu0 0.0
          %2183 = vmatprep.subr.mxu0 0.0
          %2184 = vmatpush1.msra.mxu0 0.0
          %2185 = vmatprep.subr.mxu0 0.0
          %2186 = vmatpush1.msra.mxu0 0.0
          %2187 = vmatprep.subr.mxu0 0.0
          %2188 = vmatpush1.msra.mxu0 0.0
          %2189 = vmatprep.subr.mxu0 0.0
          %2190 = vmatpush1.msra.mxu0 0.0
          %2191 = vmatprep.subr.mxu0 0.0
          %2192 = vmatpush1.msra.mxu0 0.0
          %2193 = vmatprep.subr.mxu0 0.0
          %2194 = vmatpush1.msra.mxu0 0.0
          %2195 = vmatprep.subr.mxu0 0.0
          %2196 = vmatpush1.msra.mxu0 0.0
          %2197 = vmatprep.subr.mxu0 0.0
          %2198 = vmatpush1.msra.mxu0 0.0
          %2199 = vmatprep.subr.mxu0 0.0
          %2200 = vmatpush1.msra.mxu0 0.0
          %2201 = vmatprep.subr.mxu0 0.0
          %2202 = vmatpush1.msra.mxu0 0.0
          %2203 = vmatprep.subr.mxu0 0.0
          %2204 = vmatpush1.msra.mxu0 0.0
          %2205 = vmatprep.subr.mxu0 0.0
          %2206 = vmatpush1.msra.mxu0 0.0
          %2207 = vmatprep.subr.mxu0 0.0
          %2208 = vmatpush1.msra.mxu0 0.0
          %2209 = vmatprep.subr.mxu0 0.0
          %2210 = vmatpush1.msra.mxu0 0.0
          %2211 = vmatprep.subr.mxu0 0.0
          %2212 = vmatpush1.msra.mxu0 0.0
          %2213 = vmatprep.subr.mxu0 0.0
          %2214 = vmatpush1.msra.mxu0 0.0
          %2215 = vmatprep.subr.mxu0 0.0
          %2216 = vmatpush1.msra.mxu0 0.0
          %2217 = vmatprep.subr.mxu0 0.0
          %2218 = vmatpush1.msra.mxu0 0.0
          %2219 = vmatprep.subr.mxu0 0.0
          %2220 = vmatpush1.msra.mxu0 0.0
          %2221 = vmatprep.subr.mxu0 0.0
          %2222 = vmatpush1.msra.mxu0 0.0
          %2223 = vmatprep.subr.mxu0 0.0
          %2224 = vmatpush1.msra.mxu0 0.0
          %2225 = vmatprep.subr.mxu0 0.0
          %2226 = vmatpush1.msra.mxu0 0.0
          %2227 = vmatprep.subr.mxu0 0.0
          %2228 = vmatpush1.msra.mxu0 0.0
          %2229 = vmatprep.subr.mxu0 0.0
          %2230 = vmatpush1.msra.mxu0 0.0
          %2231 = vmatprep.subr.mxu0 0.0
          %2232 = vmatpush1.msra.mxu0 0.0
          %2233 = vmatprep.mubr.f32.mxu0 0.0
          %2234 = vmatmul.mubr.f32.gmra.mrb[0].mxu0 %v2167
          %v2235 = vpop.f32.mrb[0].mxu0
          %v2236 = vadd.f32 0.0, %v2235
          %v2237 = vpop.f32.mrb[0].mxu0
          %2238 = vdwg.mxu0
          %v2239 = vadd.f32 %v2152, %v2236
          %v2240 = vld [vmem:[%s1893] sm:$0xff]
          %v2241 = vrcp.pop %v2240
          %v2242 = vld [vmem:[%s1901] sm:$0xff]
          %2244 = vset.pattern.permute.xlu0 0
          %2245 = vperm.xlu0 %2244, %v2241
          %v2246 = vpop.permute.xlu0 %2245
          %v2248 = vmul.f32 %v2242, %v2246
          %s2249 = scalar_lea.vmem %s5, 24
          %v2250 = vld [vmem:[%s2249] sm:$0xff]
          %v2252 = vsel %vm790, %v2248, 0
          %2254 = vmatprep.subr.mxu0 0.0
          %2255 = vmatpush1.msra.mxu0 %v2250
          %2256 = vmatprep.subr.mxu0 0.0
          %2257 = vmatpush1.msra.mxu0 0.0
          %2258 = vmatprep.subr.mxu0 0.0
          %2259 = vmatpush1.msra.mxu0 0.0
          %2260 = vmatprep.subr.mxu0 0.0
          %2261 = vmatpush1.msra.mxu0 0.0
          %2262 = vmatprep.subr.mxu0 0.0
          %2263 = vmatpush1.msra.mxu0 0.0
          %2264 = vmatprep.subr.mxu0 0.0
          %2265 = vmatpush1.msra.mxu0 0.0
          %2266 = vmatprep.subr.mxu0 0.0
          %2267 = vmatpush1.msra.mxu0 0.0
          %2268 = vmatprep.subr.mxu0 0.0
          %2269 = vmatpush1.msra.mxu0 0.0
          %2270 = vmatprep.subr.mxu0 0.0
          %2271 = vmatpush1.msra.mxu0 0.0
          %2272 = vmatprep.subr.mxu0 0.0
          %2273 = vmatpush1.msra.mxu0 0.0
          %2274 = vmatprep.subr.mxu0 0.0
          %2275 = vmatpush1.msra.mxu0 0.0
          %2276 = vmatprep.subr.mxu0 0.0
          %2277 = vmatpush1.msra.mxu0 0.0
          %2278 = vmatprep.subr.mxu0 0.0
          %2279 = vmatpush1.msra.mxu0 0.0
          %2280 = vmatprep.subr.mxu0 0.0
          %2281 = vmatpush1.msra.mxu0 0.0
          %2282 = vmatprep.subr.mxu0 0.0
          %2283 = vmatpush1.msra.mxu0 0.0
          %2284 = vmatprep.subr.mxu0 0.0
          %2285 = vmatpush1.msra.mxu0 0.0
          %2286 = vmatprep.subr.mxu0 0.0
          %2287 = vmatpush1.msra.mxu0 0.0
          %2288 = vmatprep.subr.mxu0 0.0
          %2289 = vmatpush1.msra.mxu0 0.0
          %2290 = vmatprep.subr.mxu0 0.0
          %2291 = vmatpush1.msra.mxu0 0.0
          %2292 = vmatprep.subr.mxu0 0.0
          %2293 = vmatpush1.msra.mxu0 0.0
          %2294 = vmatprep.subr.mxu0 0.0
          %2295 = vmatpush1.msra.mxu0 0.0
          %2296 = vmatprep.subr.mxu0 0.0
          %2297 = vmatpush1.msra.mxu0 0.0
          %2298 = vmatprep.subr.mxu0 0.0
          %2299 = vmatpush1.msra.mxu0 0.0
          %2300 = vmatprep.subr.mxu0 0.0
          %2301 = vmatpush1.msra.mxu0 0.0
          %2302 = vmatprep.subr.mxu0 0.0
          %2303 = vmatpush1.msra.mxu0 0.0
          %2304 = vmatprep.subr.mxu0 0.0
          %2305 = vmatpush1.msra.mxu0 0.0
          %2306 = vmatprep.subr.mxu0 0.0
          %2307 = vmatpush1.msra.mxu0 0.0
          %2308 = vmatprep.subr.mxu0 0.0
          %2309 = vmatpush1.msra.mxu0 0.0
          %2310 = vmatprep.subr.mxu0 0.0
          %2311 = vmatpush1.msra.mxu0 0.0
          %2312 = vmatprep.subr.mxu0 0.0
          %2313 = vmatpush1.msra.mxu0 0.0
          %2314 = vmatprep.subr.mxu0 0.0
          %2315 = vmatpush1.msra.mxu0 0.0
          %2316 = vmatprep.subr.mxu0 0.0
          %2317 = vmatpush1.msra.mxu0 0.0
          %2318 = vmatprep.mubr.f32.mxu0 0.0
          %2319 = vmatmul.mubr.f32.gmra.mrb[0].mxu0 %v2252
          %v2320 = vpop.f32.mrb[0].mxu0
          %v2321 = vadd.f32 0.0, %v2320
          %v2322 = vpop.f32.mrb[0].mxu0
          %2323 = vdwg.mxu0
          %v2324 = vadd.f32 %v2239, %v2321
          %2325 = vst.msk [vmem:[%s292] sm:$0xff] %vm641, %v2324
        $region52: #{tpu_custom_call.1} parent=43 // pred_fallthru
          _
        %s2326 = sand.u32 %s189, 1
        %s2327 = scalar_lea.sflag [#allocation7], %s2326
        %s2328 = sand.u32 %s189, 1
        %s2329 = smul.addr %s2328, 8
        %s2330 = scalar_lea.vmem [#allocation6], %s2329
        // Predicated region
        $region53: #{tpu_custom_call.1} parent=43 // pred_check
          %p2331 = pneg %p199
        $region54: #{tpu_custom_call.1} parent=43 // pred_check_branch
          %2333 = sbr.rel (%p2331) target = $region56
        $region55: #{tpu_custom_call.1} parent=43 // pred_region
          %s2335 = ssub.s32 128, 128
          %2336 = vsyncadd %s2327, %s2335
          %s2337 = sadd.s32 %s26, %s25
          %s2338 = smul.addr %s2337, 128
          %s2339 = scalar_lea.hbm %s6, %s2338
          %s2341 = sshll.u32 %s2330, 4
          %s2342 = int_to_ptr.vmem [resolvable:$true] %s2341
          %2344 = dma.vmem_to_hbm [thread:$0]  %s2342, 128, %s2339, %s2327
        $region56: #{tpu_custom_call.1} parent=43 // pred_fallthru
          _
      $region44: #{tpu_custom_call.1} parent=5 // pred_fallthru
        _
      %p2345 = scmp.le.s32.totalorder 2, %s15
      // Predicated region
      $region57: #{tpu_custom_call.1} parent=5 // pred_check
        %p2346 = pneg %p2345
      $region58: #{tpu_custom_call.1} parent=5 // pred_check_branch
        %2348 = sbr.rel (%p2346) target = $region60
      $region59: #{tpu_custom_call.1} parent=5 // pred_region
        %s2349 = ssub.s32 %s15, 2
        // Predicated region
        $region61: #{tpu_custom_call.1} parent=59 // pred_check
          %p2350 = pneg %p205
        $region62: #{tpu_custom_call.1} parent=59 // pred_check_branch
          %2352 = sbr.rel (%p2350) target = $region64
        $region63: #{tpu_custom_call.1} parent=59 // pred_region
          %s2353 = sand.u32 %s190, 1
          %s2354 = scalar_lea.sflag [#allocation7], %s2353
          %s2355 = sand.u32 %s190, 1
          %s2356 = smul.addr %s2355, 8
          %s2357 = scalar_lea.vmem [#allocation6], %s2356
          %2358 = dma.done %s2354, 128
        $region64: #{tpu_custom_call.1} parent=59 // pred_fallthru
          _
      $region60: #{tpu_custom_call.1} parent=5 // pred_fallthru
        _
    $region6: #{tpu_custom_call.1} parent=1 // loop_footer
      %s19 = sadd.s32 1, %s15
    $region7: #{tpu_custom_call.1} parent=1 // loop_footer_branch
      %14 = sbr.rel target = $region3
    $region8: #{tpu_custom_call.1} parent=1 // loop_exit
      _
    %2359 = vsyncpa [#allocation7], 1
    %s2360 = scalar_lea.sflag [#allocation7], 1
    %2361 = vsyncpa %s2360, 1

</llo_original>
